<compile_context>
chip_gen: v5e
topology: v5e:2x2
jax: 0.10.0
libtpu: 0.0.40
codegen_flags: <defaults>
</compile_context>

<pallas_src>
import jax
import jax.numpy as jnp
from jax.experimental import pallas as pl
from jax.experimental.pallas import tpu as pltpu

_LANE = 128
_SUBLANE = 8
_NEG = -1e30            # "minus infinity" for padded vocab lanes / batch rows


def _round_up(x, m):
    return ((x + m - 1) // m) * m


# ----------------------------------------------------------------------------
# Pallas kernel: all LSTM layers, full sequence resident in VMEM.
# grid = (num_batch_tiles,)  ("parallel" -- batch rows are independent)
# ----------------------------------------------------------------------------
def _fused_lstm_kernel(x_ref, wih0_ref, b0_ref, wihr_ref, br_ref, whh_ref,
                       out_ref, hn_ref, cn_ref, gates_sc, seq_sc):
    T, BT, E = x_ref.shape
    Hp = out_ref.shape[-1]
    num_layers = hn_ref.shape[0]
    cdtype = seq_sc.dtype
    unroll = T <= 16

    def batched_input_proj(x_flat, w, b):
        # One (T*BT, in) x (in, 4Hp) matmul for the whole sequence; bias folded.
        g = jnp.dot(x_flat, w, preferred_element_type=jnp.float32) + b
        gates_sc[...] = g.reshape(T, BT, 4 * Hp)

    def run_layer(layer):
        def step(t, carry):
            h, c = carry
            g = gates_sc[t] + jnp.dot(h.astype(cdtype), whh_ref[layer],
                                      preferred_element_type=jnp.float32)
            # Lane-aligned gate slabs (each of width Hp, multiple of 128).
            i = jax.nn.sigmoid(g[:, 0 * Hp:1 * Hp])
            f = jax.nn.sigmoid(g[:, 1 * Hp:2 * Hp])
            gc = jnp.tanh(g[:, 2 * Hp:3 * Hp])
            o = jax.nn.sigmoid(g[:, 3 * Hp:4 * Hp])
            c = f * c + i * gc
            h = o * jnp.tanh(c)
            seq_sc[t] = h.astype(cdtype)
            return h, c

        zeros = jnp.zeros((BT, Hp), jnp.float32)   # hidden=None -> zero state
        h_n, c_n = jax.lax.fori_loop(0, T, step, (zeros, zeros), unroll=unroll)
        hn_ref[layer] = h_n                        # final state only, once
        cn_ref[layer] = c_n

    # layer 0: embedded inputs
    batched_input_proj(x_ref[...].reshape(T * BT, E), wih0_ref[...], b0_ref[...])
    run_layer(0)
    # layers 1..L-1: previous layer outputs (still resident in VMEM scratch)
    for layer in range(1, num_layers):
        batched_input_proj(seq_sc[...].reshape(T * BT, Hp),
                           wihr_ref[layer - 1], br_ref[layer - 1])
        run_layer(layer)

    out_ref[...] = seq_sc[...]


def _pack_gate_cols(w_t, H, Hp):
    """(in, 4H) with PyTorch gate order i,f,g,o -> (in, 4Hp) lane-aligned."""
    in_dim = w_t.shape[0]
    out = jnp.zeros((in_dim, 4 * Hp), w_t.dtype)
    for g in range(4):
        out = out.at[:, g * Hp:g * Hp + H].set(w_t[:, g * H:(g + 1) * H])
    return out


def _pack_bias(b, H, Hp):
    out = jnp.zeros((1, 4 * Hp), jnp.float32)
    for g in range(4):
        out = out.at[0, g * Hp:g * Hp + H].set(b[g * H:(g + 1) * H])
    return out


def fused_lstm(params, x, compute_dtype):
    """x: (T, B, E). Returns padded (out (T,Bp,Hp), h_n (L,Bp,Hp), c_n (L,Bp,Hp))."""
    T, B, E = x.shape
    H = params["hidden_size"]
    L = params["num_layers"]
    Hp = _round_up(H, _LANE)
    Bp = _round_up(B, _SUBLANE)
    BT = Bp if Bp <= 128 else 128          # batch tile -> "parallel" grid axis
    Bp = _round_up(Bp, BT)

    x_p = jnp.zeros((T, Bp, E), compute_dtype).at[:, :B, :].set(
        x.astype(compute_dtype))

    # layer-0 input weights (E, 4Hp); biases fused (b_ih + b_hh), kept f32.
    wih0 = _pack_gate_cols(params["w_ih_0"].T, H, Hp).astype(compute_dtype)
    b0 = _pack_bias(params["b_ih_0"] + params["b_hh_0"], H, Hp)

    whh_list, wihr_list, br_list = [], [], []
    for l in range(L):
        whh = jnp.zeros((Hp, 4 * Hp), jnp.float32).at[:H, :].set(
            _pack_gate_cols(params[f"w_hh_{l}"].T, H, Hp))
        whh_list.append(whh.astype(compute_dtype))
        if l >= 1:
            wih = jnp.zeros((Hp, 4 * Hp), jnp.float32).at[:H, :].set(
                _pack_gate_cols(params[f"w_ih_{l}"].T, H, Hp))
            wihr_list.append(wih.astype(compute_dtype))
            br_list.append(_pack_bias(params[f"b_ih_{l}"] + params[f"b_hh_{l}"],
                                      H, Hp))
    whh_stack = jnp.stack(whh_list)                          # (L, Hp, 4Hp)
    if L > 1:
        wihr_stack = jnp.stack(wihr_list)                    # (L-1, Hp, 4Hp)
        br_stack = jnp.stack(br_list)                        # (L-1, 1, 4Hp)
    else:
        wihr_stack = jnp.zeros((1, Hp, 4 * Hp), compute_dtype)
        br_stack = jnp.zeros((1, 1, 4 * Hp), jnp.float32)
    Lr = wihr_stack.shape[0]

    grid_spec = pltpu.PrefetchScalarGridSpec(
        num_scalar_prefetch=0,
        grid=(Bp // BT,),
        in_specs=[
            pl.BlockSpec((T, BT, E), lambda b: (0, b, 0)),
            pl.BlockSpec((E, 4 * Hp), lambda b: (0, 0)),
            pl.BlockSpec((1, 4 * Hp), lambda b: (0, 0)),
            pl.BlockSpec((Lr, Hp, 4 * Hp), lambda b: (0, 0, 0)),
            pl.BlockSpec((Lr, 1, 4 * Hp), lambda b: (0, 0, 0)),
            pl.BlockSpec((L, Hp, 4 * Hp), lambda b: (0, 0, 0)),
        ],
        out_specs=[
            pl.BlockSpec((T, BT, Hp), lambda b: (0, b, 0)),
            pl.BlockSpec((L, BT, Hp), lambda b: (0, b, 0)),
            pl.BlockSpec((L, BT, Hp), lambda b: (0, b, 0)),
        ],
        scratch_shapes=[
            pltpu.VMEM((T, BT, 4 * Hp), jnp.float32),   # precomputed gates
            pltpu.VMEM((T, BT, Hp), compute_dtype),     # layer output sequence
        ],
    )
    return pl.pallas_call(
        _fused_lstm_kernel,
        out_shape=(
            jax.ShapeDtypeStruct((T, Bp, Hp), compute_dtype),
            jax.ShapeDtypeStruct((L, Bp, Hp), jnp.float32),
            jax.ShapeDtypeStruct((L, Bp, Hp), jnp.float32),
        ),
        grid_spec=grid_spec,
        compiler_params=pltpu.CompilerParams(
            dimension_semantics=("parallel",),
            vmem_limit_bytes=48 * 1024 * 1024),
    )(x_p, wih0, b0, wihr_stack, br_stack, whh_stack)


# ----------------------------------------------------------------------------
# Pallas kernel: split Linear (H -> V) + per-batch src term + log_softmax.
# grid tiles the time axis ("parallel").
# ----------------------------------------------------------------------------
def _proj_logsoftmax_kernel(x_ref, w_ref, s_ref, o_ref):
    TT, Bp, Hp = x_ref.shape
    Vp = w_ref.shape[-1]
    z = jnp.dot(x_ref[...].reshape(TT * Bp, Hp), w_ref[...],
                preferred_element_type=jnp.float32).reshape(TT, Bp, Vp)
    z = z + s_ref[...][None, :, :]          # h_src term, broadcast over time
    m = jnp.max(z, axis=-1, keepdims=True)
    lse = m + jnp.log(jnp.sum(jnp.exp(z - m), axis=-1, keepdims=True))
    o_ref[...] = z - lse


def proj_logsoftmax(lstm_out, w_o, src_term):
    """lstm_out: (T,Bp,Hp), w_o: (Hp,Vp), src_term: (Bp,Vp). Returns (Tp,Bp,Vp)."""
    T, Bp, Hp = lstm_out.shape
    Vp = w_o.shape[-1]
    TT = max(1, min(T, max(1, 256 // Bp)))   # ~256 rows per MXU tile
    Tp = _round_up(T, TT)
    if Tp != T:
        lstm_out = jnp.zeros((Tp, Bp, Hp), lstm_out.dtype).at[:T].set(lstm_out)
    return pl.pallas_call(
        _proj_logsoftmax_kernel,
        out_shape=jax.ShapeDtypeStruct((Tp, Bp, Vp), jnp.float32),
        grid=(Tp // TT,),
        in_specs=[
            pl.BlockSpec((TT, Bp, Hp), lambda t: (t, 0, 0)),
            pl.BlockSpec((Hp, Vp), lambda t: (0, 0)),
            pl.BlockSpec((Bp, Vp), lambda t: (0, 0)),
        ],
        out_specs=pl.BlockSpec((TT, Bp, Vp), lambda t: (t, 0, 0)),
        compiler_params=pltpu.CompilerParams(
            dimension_semantics=("parallel",),
            vmem_limit_bytes=48 * 1024 * 1024),
    )(lstm_out, w_o, src_term)


# ----------------------------------------------------------------------------
# Parameter init (deterministic, PyTorch-like uniform(-1/sqrt(H), 1/sqrt(H)))
# ----------------------------------------------------------------------------
def init_params(key, vocab_size, embed_size, hidden_size, num_layers):
    params = {"vocab_size": vocab_size, "embed_size": embed_size,
              "hidden_size": hidden_size, "num_layers": num_layers}
    k_emb, k_lin_w, k_lin_b, k_lstm = jax.random.split(key, 4)
    params["embedding"] = jax.random.normal(
        k_emb, (vocab_size, embed_size), jnp.float32)

    klin = 1.0 / jnp.sqrt(3.0 * hidden_size)
    params["lin_w"] = jax.random.uniform(
        k_lin_w, (vocab_size, 3 * hidden_size), jnp.float32, -klin, klin)
    params["lin_b"] = jax.random.uniform(
        k_lin_b, (vocab_size,), jnp.float32, -klin, klin)

    k = 1.0 / jnp.sqrt(float(hidden_size))
    lstm_keys = jax.random.split(k_lstm, num_layers * 4)
    for l in range(num_layers):
        in_size = embed_size if l == 0 else hidden_size
        k0, k1, k2, k3 = lstm_keys[4 * l: 4 * l + 4]
        params[f"w_ih_{l}"] = jax.random.uniform(
            k0, (4 * hidden_size, in_size), jnp.float32, -k, k)
        params[f"w_hh_{l}"] = jax.random.uniform(
            k1, (4 * hidden_size, hidden_size), jnp.float32, -k, k)
        params[f"b_ih_{l}"] = jax.random.uniform(
            k2, (4 * hidden_size,), jnp.float32, -k, k)
        params[f"b_hh_{l}"] = jax.random.uniform(
            k3, (4 * hidden_size,), jnp.float32, -k, k)
    return params


# ----------------------------------------------------------------------------
# Forward pass (matches BasicDecoder.forward with hidden=None, eval mode)
# ----------------------------------------------------------------------------
def basic_decoder_forward(params, trg, encoded_src,
                          compute_dtype=jnp.float32):
    T, B = trg.shape
    H = params["hidden_size"]
    V = params["vocab_size"]

    # embedding lookup (glue gather)
    x = jnp.take(params["embedding"], trg, axis=0)            # (T, B, E)
    # TODO(synk): nn.Dropout and LSTM inter-layer dropout are eval-mode identity.

    out_p, hn_p, cn_p = fused_lstm(params, x, compute_dtype)  # padded shapes
    _, Bp, Hp = out_p.shape
    Vp = _round_up(V, _LANE)

    # Split output linear: cat(out, h_src) @ W.T + b
    #   == out @ W[:, :H].T + (h_src @ W[:, H:].T + b)
    # The h_src term is identical for every timestep -> compute once per batch row.
    h_src = encoded_src[-1]                                   # (B, 2H)
    w_h = params["lin_w"][:, :H]                              # (V, H)
    w_src = params["lin_w"][:, H:]                            # (V, 2H)
    src_term = h_src @ w_src.T + params["lin_b"]              # (B, V), once

    w_o = jnp.zeros((Hp, Vp), compute_dtype).at[:H, :V].set(
        w_h.T.astype(compute_dtype))
    # Padded vocab lanes / padded batch rows get a huge negative logit so
    # log_softmax ignores them (no in-kernel masking needed).
    src_pad = jnp.pad(src_term.astype(jnp.float32),
                      ((0, Bp - B), (0, Vp - V)), constant_values=_NEG)

    logp_p = proj_logsoftmax(out_p, w_o, src_pad)             # (Tp, Bp, Vp)
    logp = logp_p[:T, :B, :V]
    hidden = (hn_p[:, :B, :H], cn_p[:, :B, :H])               # (L, B, H) each
    return logp, hidden


# ----------------------------------------------------------------------------
# Pure-JAX reference (for correctness check)
# ----------------------------------------------------------------------------
def reference_forward(params, trg, encoded_src):
    T, B = trg.shape
    H = params["hidden_size"]
    num_layers = params["num_layers"]
    x = jnp.take(params["embedding"], trg, axis=0)

    def one_layer(xseq, w_ih, w_hh, b_ih, b_hh):
        def step(carry, xt):
            h, c = carry
            gates = xt @ w_ih.T + b_ih + h @ w_hh.T + b_hh
            i, f, g, o = jnp.split(gates, 4, axis=-1)
            i, f, o = jax.nn.sigmoid(i), jax.nn.sigmoid(f), jax.nn.sigmoid(o)
            g = jnp.tanh(g)
            c = f * c + i * g
            h = o * jnp.tanh(c)
            return (h, c), h
        h0 = jnp.zeros((B, H), jnp.float32)
        (hn, cn), out = jax.lax.scan(step, (h0, h0), xseq)
        return out, hn, cn

    h_ns, c_ns = [], []
    layer_in = x
    for l in range(num_layers):
        layer_in, hn, cn = one_layer(layer_in,
                                     params[f"w_ih_{l}"], params[f"w_hh_{l}"],
                                     params[f"b_ih_{l}"], params[f"b_hh_{l}"])
        h_ns.append(hn)
        c_ns.append(cn)

    h_src = encoded_src[-1, :, :]
    feat = jnp.concatenate(
        [layer_in, jnp.broadcast_to(h_src[None], (T, B, 2 * H))], axis=-1)
    z = feat @ params["lin_w"].T + params["lin_b"]
    logp = jax.nn.log_softmax(z, axis=2)
    return logp, (jnp.stack(h_ns), jnp.stack(c_ns))


if __name__ == "__main__":
    vocab_size, embed_size, hidden_size, num_layers = 32, 16, 32, 2
    T, B, src_len = 8, 4, 6

    key = jax.random.PRNGKey(0)
    k_params, k_trg, k_src = jax.random.split(key, 3)

    params = init_params(k_params, vocab_size, embed_size, hidden_size, num_layers)
    trg = jax.random.randint(k_trg, (T, B), 0, vocab_size, jnp.int32)
    encoded_src = jax.random.normal(k_src, (src_len, B, 2 * hidden_size), jnp.float32)

    # f32 matmul path (v5e-friendly default)
    logp, (h_n, c_n) = basic_decoder_forward(params, trg, encoded_src)
    jax.block_until_ready((logp, h_n, c_n))

    ref_logp, (ref_h, ref_c) = reference_forward(params, trg, encoded_src)
    assert logp.shape == (T, B, vocab_size)
    assert h_n.shape == (num_layers, B, hidden_size)
    assert c_n.shape == (num_layers, B, hidden_size)
    assert jnp.allclose(logp, ref_logp, atol=2e-3, rtol=2e-3)
    assert jnp.allclose(h_n, ref_h, atol=2e-3, rtol=2e-3)
    assert jnp.allclose(c_n, ref_c, atol=2e-3, rtol=2e-3)

    # bf16 matmul path (v6e / v7x): bf16 operands, f32 accumulation,
    # f32 gate nonlinearities and log_softmax.
    logp16, (h16, c16) = basic_decoder_forward(
        params, trg, encoded_src, compute_dtype=jnp.bfloat16)
    jax.block_until_ready((logp16, h16, c16))
    assert jnp.all(jnp.isfinite(logp16))
    assert jnp.allclose(logp16, ref_logp, atol=1e-1, rtol=1e-1)
    assert jnp.allclose(h16, ref_h, atol=1e-1, rtol=1e-1)

    print("KERNEL_OK")
</pallas_src>

<mosaic_0001>
module attributes {stable_mosaic.version = 11 : i64} {
  func.func @_fused_lstm_kernel(%arg0: i32, %arg1: memref<8x8x16xf32, #tpu.memory_space<vmem>>, %arg2: memref<16x512xf32, #tpu.memory_space<vmem>>, %arg3: memref<1x512xf32, #tpu.memory_space<vmem>>, %arg4: memref<1x128x512xf32, #tpu.memory_space<vmem>>, %arg5: memref<1x1x512xf32, #tpu.memory_space<vmem>>, %arg6: memref<2x128x512xf32, #tpu.memory_space<vmem>>, %arg7: memref<8x8x128xf32, #tpu.memory_space<vmem>>, %arg8: memref<2x8x128xf32, #tpu.memory_space<vmem>>, %arg9: memref<2x8x128xf32, #tpu.memory_space<vmem>>, %arg10: memref<8x8x512xf32, #tpu.memory_space<vmem>>, %arg11: memref<8x8x128xf32, #tpu.memory_space<vmem>>) attributes {dimension_semantics = [#tpu.dimension_semantics<parallel>], iteration_bounds = array<i64: 1>, scalar_prefetch = 0 : i64, scratch_operands = 2 : i64, tpu.core_type = #tpu.core_type<tc>, window_params = [{transform_indices = @transform_0, window_bounds = array<i64: 8, 8, 16>}, {pipeline_mode = #tpu.pipeline_mode<synchronous>, transform_indices = @transform_1, window_bounds = array<i64: 16, 512>}, {pipeline_mode = #tpu.pipeline_mode<synchronous>, transform_indices = @transform_2, window_bounds = array<i64: 1, 512>}, {pipeline_mode = #tpu.pipeline_mode<synchronous>, transform_indices = @transform_3, window_bounds = array<i64: 1, 128, 512>}, {pipeline_mode = #tpu.pipeline_mode<synchronous>, transform_indices = @transform_4, window_bounds = array<i64: 1, 1, 512>}, {pipeline_mode = #tpu.pipeline_mode<synchronous>, transform_indices = @transform_5, window_bounds = array<i64: 2, 128, 512>}, {transform_indices = @transform_6, window_bounds = array<i64: 8, 8, 128>}, {transform_indices = @transform_7, window_bounds = array<i64: 2, 8, 128>}, {transform_indices = @transform_8, window_bounds = array<i64: 2, 8, 128>}]} {
    %c0 = arith.constant 0 : index
    %c0_0 = arith.constant 0 : index
    %c0_1 = arith.constant 0 : index
    %0 = vector.load %arg1[%c0, %c0_0, %c0_1] : memref<8x8x16xf32, #tpu.memory_space<vmem>>, vector<8x8x16xf32>
    %1 = vector.shape_cast %0 : vector<8x8x16xf32> to vector<64x16xf32>
    %c0_2 = arith.constant 0 : index
    %c0_3 = arith.constant 0 : index
    %2 = vector.load %arg2[%c0_2, %c0_3] : memref<16x512xf32, #tpu.memory_space<vmem>>, vector<16x512xf32>
    %c0_4 = arith.constant 0 : index
    %c0_5 = arith.constant 0 : index
    %3 = vector.load %arg3[%c0_4, %c0_5] : memref<1x512xf32, #tpu.memory_space<vmem>>, vector<1x512xf32>
    %cst = arith.constant dense<0.000000e+00> : vector<64x512xf32>
    %4 = tpu.matmul %1, %2, %cst {dimension_numbers = #tpu.dot_dimension_numbers<[1], [0], [0], [1], [0, 0, 1, 1], [], []>} : vector<64x16xf32>, vector<16x512xf32>, vector<64x512xf32> -> vector<64x512xf32>
    %5 = vector.broadcast %3 : vector<1x512xf32> to vector<64x512xf32>
    %6 = arith.addf %4, %5 : vector<64x512xf32>
    %7 = vector.shape_cast %6 : vector<64x512xf32> to vector<8x8x512xf32>
    %c0_6 = arith.constant 0 : index
    %c0_7 = arith.constant 0 : index
    %c0_8 = arith.constant 0 : index
    %8 = vector.load %arg10[%c0_6, %c0_7, %c0_8] : memref<8x8x512xf32, #tpu.memory_space<vmem>>, vector<8x8x512xf32>
    tpu.vector_store %arg10[%c0_6, %c0_7, %c0_8], %7 {strides = array<i32>} : memref<8x8x512xf32, #tpu.memory_space<vmem>>, vector<8x8x512xf32>,
    %cst_9 = arith.constant 0.000000e+00 : f32
    %9 = vector.broadcast %cst_9 : f32 to vector<8x128xf32>
    %c0_i32 = arith.constant 0 : i32
    %10 = arith.index_cast %c0_i32 : i32 to index
    %c0_10 = arith.constant 0 : index
    %c0_11 = arith.constant 0 : index
    %11 = vector.load %arg10[%10, %c0_10, %c0_11] : memref<8x8x512xf32, #tpu.memory_space<vmem>>, vector<1x8x512xf32>
    %12 = vector.shape_cast %11 : vector<1x8x512xf32> to vector<8x512xf32>
    %c0_12 = arith.constant 0 : index
    %c0_13 = arith.constant 0 : index
    %c0_14 = arith.constant 0 : index
    %13 = vector.load %arg6[%c0_12, %c0_13, %c0_14] : memref<2x128x512xf32, #tpu.memory_space<vmem>>, vector<1x128x512xf32>
    %14 = vector.shape_cast %13 : vector<1x128x512xf32> to vector<128x512xf32>
    %cst_15 = arith.constant dense<0.000000e+00> : vector<8x512xf32>
    %15 = tpu.matmul %9, %14, %cst_15 {dimension_numbers = #tpu.dot_dimension_numbers<[1], [0], [0], [1], [0, 0, 1, 1], [], []>} : vector<8x128xf32>, vector<128x512xf32>, vector<8x512xf32> -> vector<8x512xf32>
    %16 = arith.addf %12, %15 : vector<8x512xf32>
    %17 = vector.extract_strided_slice %16 {offsets = [0, 0], sizes = [8, 128], strides = [1, 1]} : vector<8x512xf32> to vector<8x128xf32>
    %18 = arith.negf %17 : vector<8x128xf32>
    %19 = math.exp %18 : vector<8x128xf32>
    %cst_16 = arith.constant 1.000000e+00 : f32
    %20 = vector.broadcast %cst_16 : f32 to vector<8x128xf32>
    %21 = arith.addf %20, %19 : vector<8x128xf32>
    %22 = arith.divf %20, %21 : vector<8x128xf32>
    %23 = vector.extract_strided_slice %16 {offsets = [0, 128], sizes = [8, 128], strides = [1, 1]} : vector<8x512xf32> to vector<8x128xf32>
    %24 = arith.negf %23 : vector<8x128xf32>
    %25 = math.exp %24 : vector<8x128xf32>
    %cst_17 = arith.constant 1.000000e+00 : f32
    %26 = vector.broadcast %cst_17 : f32 to vector<8x128xf32>
    %27 = arith.addf %26, %25 : vector<8x128xf32>
    %28 = arith.divf %26, %27 : vector<8x128xf32>
    %29 = vector.extract_strided_slice %16 {offsets = [0, 256], sizes = [8, 128], strides = [1, 1]} : vector<8x512xf32> to vector<8x128xf32>
    %30 = math.tanh %29 : vector<8x128xf32>
    %31 = vector.extract_strided_slice %16 {offsets = [0, 384], sizes = [8, 128], strides = [1, 1]} : vector<8x512xf32> to vector<8x128xf32>
    %32 = arith.negf %31 : vector<8x128xf32>
    %33 = math.exp %32 : vector<8x128xf32>
    %cst_18 = arith.constant 1.000000e+00 : f32
    %34 = vector.broadcast %cst_18 : f32 to vector<8x128xf32>
    %35 = arith.addf %34, %33 : vector<8x128xf32>
    %36 = arith.divf %34, %35 : vector<8x128xf32>
    %37 = arith.mulf %28, %9 : vector<8x128xf32>
    %38 = arith.mulf %22, %30 : vector<8x128xf32>
    %39 = arith.addf %37, %38 : vector<8x128xf32>
    %40 = math.tanh %39 : vector<8x128xf32>
    %41 = arith.mulf %36, %40 : vector<8x128xf32>
    %42 = arith.index_cast %c0_i32 : i32 to index
    %c0_19 = arith.constant 0 : index
    %c0_20 = arith.constant 0 : index
    %43 = vector.load %arg11[%42, %c0_19, %c0_20] : memref<8x8x128xf32, #tpu.memory_space<vmem>>, vector<1x8x128xf32>
    %44 = vector.shape_cast %43 : vector<1x8x128xf32> to vector<8x128xf32>
    %45 = vector.shape_cast %41 : vector<8x128xf32> to vector<1x8x128xf32>
    tpu.vector_store %arg11[%42, %c0_19, %c0_20], %45 {strides = array<i32>} : memref<8x8x128xf32, #tpu.memory_space<vmem>>, vector<1x8x128xf32>,
    %c1_i32 = arith.constant 1 : i32
    %46 = arith.index_cast %c1_i32 : i32 to index
    %c0_21 = arith.constant 0 : index
    %c0_22 = arith.constant 0 : index
    %47 = vector.load %arg10[%46, %c0_21, %c0_22] : memref<8x8x512xf32, #tpu.memory_space<vmem>>, vector<1x8x512xf32>
    %48 = vector.shape_cast %47 : vector<1x8x512xf32> to vector<8x512xf32>
    %c0_23 = arith.constant 0 : index
    %c0_24 = arith.constant 0 : index
    %c0_25 = arith.constant 0 : index
    %49 = vector.load %arg6[%c0_23, %c0_24, %c0_25] : memref<2x128x512xf32, #tpu.memory_space<vmem>>, vector<1x128x512xf32>
    %50 = vector.shape_cast %49 : vector<1x128x512xf32> to vector<128x512xf32>
    %cst_26 = arith.constant dense<0.000000e+00> : vector<8x512xf32>
    %51 = tpu.matmul %41, %50, %cst_26 {dimension_numbers = #tpu.dot_dimension_numbers<[1], [0], [0], [1], [0, 0, 1, 1], [], []>} : vector<8x128xf32>, vector<128x512xf32>, vector<8x512xf32> -> vector<8x512xf32>
    %52 = arith.addf %48, %51 : vector<8x512xf32>
    %53 = vector.extract_strided_slice %52 {offsets = [0, 0], sizes = [8, 128], strides = [1, 1]} : vector<8x512xf32> to vector<8x128xf32>
    %54 = arith.negf %53 : vector<8x128xf32>
    %55 = math.exp %54 : vector<8x128xf32>
    %cst_27 = arith.constant 1.000000e+00 : f32
    %56 = vector.broadcast %cst_27 : f32 to vector<8x128xf32>
    %57 = arith.addf %56, %55 : vector<8x128xf32>
    %58 = arith.divf %56, %57 : vector<8x128xf32>
    %59 = vector.extract_strided_slice %52 {offsets = [0, 128], sizes = [8, 128], strides = [1, 1]} : vector<8x512xf32> to vector<8x128xf32>
    %60 = arith.negf %59 : vector<8x128xf32>
    %61 = math.exp %60 : vector<8x128xf32>
    %cst_28 = arith.constant 1.000000e+00 : f32
    %62 = vector.broadcast %cst_28 : f32 to vector<8x128xf32>
    %63 = arith.addf %62, %61 : vector<8x128xf32>
    %64 = arith.divf %62, %63 : vector<8x128xf32>
    %65 = vector.extract_strided_slice %52 {offsets = [0, 256], sizes = [8, 128], strides = [1, 1]} : vector<8x512xf32> to vector<8x128xf32>
    %66 = math.tanh %65 : vector<8x128xf32>
    %67 = vector.extract_strided_slice %52 {offsets = [0, 384], sizes = [8, 128], strides = [1, 1]} : vector<8x512xf32> to vector<8x128xf32>
    %68 = arith.negf %67 : vector<8x128xf32>
    %69 = math.exp %68 : vector<8x128xf32>
    %cst_29 = arith.constant 1.000000e+00 : f32
    %70 = vector.broadcast %cst_29 : f32 to vector<8x128xf32>
    %71 = arith.addf %70, %69 : vector<8x128xf32>
    %72 = arith.divf %70, %71 : vector<8x128xf32>
    %73 = arith.mulf %64, %39 : vector<8x128xf32>
    %74 = arith.mulf %58, %66 : vector<8x128xf32>
    %75 = arith.addf %73, %74 : vector<8x128xf32>
    %76 = math.tanh %75 : vector<8x128xf32>
    %77 = arith.mulf %72, %76 : vector<8x128xf32>
    %78 = arith.index_cast %c1_i32 : i32 to index
    %c0_30 = arith.constant 0 : index
    %c0_31 = arith.constant 0 : index
    %79 = vector.load %arg11[%78, %c0_30, %c0_31] : memref<8x8x128xf32, #tpu.memory_space<vmem>>, vector<1x8x128xf32>
    %80 = vector.shape_cast %79 : vector<1x8x128xf32> to vector<8x128xf32>
    %81 = vector.shape_cast %77 : vector<8x128xf32> to vector<1x8x128xf32>
    tpu.vector_store %arg11[%78, %c0_30, %c0_31], %81 {strides = array<i32>} : memref<8x8x128xf32, #tpu.memory_space<vmem>>, vector<1x8x128xf32>,
    %c2_i32 = arith.constant 2 : i32
    %82 = arith.index_cast %c2_i32 : i32 to index
    %c0_32 = arith.constant 0 : index
    %c0_33 = arith.constant 0 : index
    %83 = vector.load %arg10[%82, %c0_32, %c0_33] : memref<8x8x512xf32, #tpu.memory_space<vmem>>, vector<1x8x512xf32>
    %84 = vector.shape_cast %83 : vector<1x8x512xf32> to vector<8x512xf32>
    %c0_34 = arith.constant 0 : index
    %c0_35 = arith.constant 0 : index
    %c0_36 = arith.constant 0 : index
    %85 = vector.load %arg6[%c0_34, %c0_35, %c0_36] : memref<2x128x512xf32, #tpu.memory_space<vmem>>, vector<1x128x512xf32>
    %86 = vector.shape_cast %85 : vector<1x128x512xf32> to vector<128x512xf32>
    %cst_37 = arith.constant dense<0.000000e+00> : vector<8x512xf32>
    %87 = tpu.matmul %77, %86, %cst_37 {dimension_numbers = #tpu.dot_dimension_numbers<[1], [0], [0], [1], [0, 0, 1, 1], [], []>} : vector<8x128xf32>, vector<128x512xf32>, vector<8x512xf32> -> vector<8x512xf32>
    %88 = arith.addf %84, %87 : vector<8x512xf32>
    %89 = vector.extract_strided_slice %88 {offsets = [0, 0], sizes = [8, 128], strides = [1, 1]} : vector<8x512xf32> to vector<8x128xf32>
    %90 = arith.negf %89 : vector<8x128xf32>
    %91 = math.exp %90 : vector<8x128xf32>
    %cst_38 = arith.constant 1.000000e+00 : f32
    %92 = vector.broadcast %cst_38 : f32 to vector<8x128xf32>
    %93 = arith.addf %92, %91 : vector<8x128xf32>
    %94 = arith.divf %92, %93 : vector<8x128xf32>
    %95 = vector.extract_strided_slice %88 {offsets = [0, 128], sizes = [8, 128], strides = [1, 1]} : vector<8x512xf32> to vector<8x128xf32>
    %96 = arith.negf %95 : vector<8x128xf32>
    %97 = math.exp %96 : vector<8x128xf32>
    %cst_39 = arith.constant 1.000000e+00 : f32
    %98 = vector.broadcast %cst_39 : f32 to vector<8x128xf32>
    %99 = arith.addf %98, %97 : vector<8x128xf32>
    %100 = arith.divf %98, %99 : vector<8x128xf32>
    %101 = vector.extract_strided_slice %88 {offsets = [0, 256], sizes = [8, 128], strides = [1, 1]} : vector<8x512xf32> to vector<8x128xf32>
    %102 = math.tanh %101 : vector<8x128xf32>
    %103 = vector.extract_strided_slice %88 {offsets = [0, 384], sizes = [8, 128], strides = [1, 1]} : vector<8x512xf32> to vector<8x128xf32>
    %104 = arith.negf %103 : vector<8x128xf32>
    %105 = math.exp %104 : vector<8x128xf32>
    %cst_40 = arith.constant 1.000000e+00 : f32
    %106 = vector.broadcast %cst_40 : f32 to vector<8x128xf32>
    %107 = arith.addf %106, %105 : vector<8x128xf32>
    %108 = arith.divf %106, %107 : vector<8x128xf32>
    %109 = arith.mulf %100, %75 : vector<8x128xf32>
    %110 = arith.mulf %94, %102 : vector<8x128xf32>
    %111 = arith.addf %109, %110 : vector<8x128xf32>
    %112 = math.tanh %111 : vector<8x128xf32>
    %113 = arith.mulf %108, %112 : vector<8x128xf32>
    %114 = arith.index_cast %c2_i32 : i32 to index
    %c0_41 = arith.constant 0 : index
    %c0_42 = arith.constant 0 : index
    %115 = vector.load %arg11[%114, %c0_41, %c0_42] : memref<8x8x128xf32, #tpu.memory_space<vmem>>, vector<1x8x128xf32>
    %116 = vector.shape_cast %115 : vector<1x8x128xf32> to vector<8x128xf32>
    %117 = vector.shape_cast %113 : vector<8x128xf32> to vector<1x8x128xf32>
    tpu.vector_store %arg11[%114, %c0_41, %c0_42], %117 {strides = array<i32>} : memref<8x8x128xf32, #tpu.memory_space<vmem>>, vector<1x8x128xf32>,
    %c3_i32 = arith.constant 3 : i32
    %118 = arith.index_cast %c3_i32 : i32 to index
    %c0_43 = arith.constant 0 : index
    %c0_44 = arith.constant 0 : index
    %119 = vector.load %arg10[%118, %c0_43, %c0_44] : memref<8x8x512xf32, #tpu.memory_space<vmem>>, vector<1x8x512xf32>
    %120 = vector.shape_cast %119 : vector<1x8x512xf32> to vector<8x512xf32>
    %c0_45 = arith.constant 0 : index
    %c0_46 = arith.constant 0 : index
    %c0_47 = arith.constant 0 : index
    %121 = vector.load %arg6[%c0_45, %c0_46, %c0_47] : memref<2x128x512xf32, #tpu.memory_space<vmem>>, vector<1x128x512xf32>
    %122 = vector.shape_cast %121 : vector<1x128x512xf32> to vector<128x512xf32>
    %cst_48 = arith.constant dense<0.000000e+00> : vector<8x512xf32>
    %123 = tpu.matmul %113, %122, %cst_48 {dimension_numbers = #tpu.dot_dimension_numbers<[1], [0], [0], [1], [0, 0, 1, 1], [], []>} : vector<8x128xf32>, vector<128x512xf32>, vector<8x512xf32> -> vector<8x512xf32>
    %124 = arith.addf %120, %123 : vector<8x512xf32>
    %125 = vector.extract_strided_slice %124 {offsets = [0, 0], sizes = [8, 128], strides = [1, 1]} : vector<8x512xf32> to vector<8x128xf32>
    %126 = arith.negf %125 : vector<8x128xf32>
    %127 = math.exp %126 : vector<8x128xf32>
    %cst_49 = arith.constant 1.000000e+00 : f32
    %128 = vector.broadcast %cst_49 : f32 to vector<8x128xf32>
    %129 = arith.addf %128, %127 : vector<8x128xf32>
    %130 = arith.divf %128, %129 : vector<8x128xf32>
    %131 = vector.extract_strided_slice %124 {offsets = [0, 128], sizes = [8, 128], strides = [1, 1]} : vector<8x512xf32> to vector<8x128xf32>
    %132 = arith.negf %131 : vector<8x128xf32>
    %133 = math.exp %132 : vector<8x128xf32>
    %cst_50 = arith.constant 1.000000e+00 : f32
    %134 = vector.broadcast %cst_50 : f32 to vector<8x128xf32>
    %135 = arith.addf %134, %133 : vector<8x128xf32>
    %136 = arith.divf %134, %135 : vector<8x128xf32>
    %137 = vector.extract_strided_slice %124 {offsets = [0, 256], sizes = [8, 128], strides = [1, 1]} : vector<8x512xf32> to vector<8x128xf32>
    %138 = math.tanh %137 : vector<8x128xf32>
    %139 = vector.extract_strided_slice %124 {offsets = [0, 384], sizes = [8, 128], strides = [1, 1]} : vector<8x512xf32> to vector<8x128xf32>
    %140 = arith.negf %139 : vector<8x128xf32>
    %141 = math.exp %140 : vector<8x128xf32>
    %cst_51 = arith.constant 1.000000e+00 : f32
    %142 = vector.broadcast %cst_51 : f32 to vector<8x128xf32>
    %143 = arith.addf %142, %141 : vector<8x128xf32>
    %144 = arith.divf %142, %143 : vector<8x128xf32>
    %145 = arith.mulf %136, %111 : vector<8x128xf32>
    %146 = arith.mulf %130, %138 : vector<8x128xf32>
    %147 = arith.addf %145, %146 : vector<8x128xf32>
    %148 = math.tanh %147 : vector<8x128xf32>
    %149 = arith.mulf %144, %148 : vector<8x128xf32>
    %150 = arith.index_cast %c3_i32 : i32 to index
    %c0_52 = arith.constant 0 : index
    %c0_53 = arith.constant 0 : index
    %151 = vector.load %arg11[%150, %c0_52, %c0_53] : memref<8x8x128xf32, #tpu.memory_space<vmem>>, vector<1x8x128xf32>
    %152 = vector.shape_cast %151 : vector<1x8x128xf32> to vector<8x128xf32>
    %153 = vector.shape_cast %149 : vector<8x128xf32> to vector<1x8x128xf32>
    tpu.vector_store %arg11[%150, %c0_52, %c0_53], %153 {strides = array<i32>} : memref<8x8x128xf32, #tpu.memory_space<vmem>>, vector<1x8x128xf32>,
    %c4_i32 = arith.constant 4 : i32
    %154 = arith.index_cast %c4_i32 : i32 to index
    %c0_54 = arith.constant 0 : index
    %c0_55 = arith.constant 0 : index
    %155 = vector.load %arg10[%154, %c0_54, %c0_55] : memref<8x8x512xf32, #tpu.memory_space<vmem>>, vector<1x8x512xf32>
    %156 = vector.shape_cast %155 : vector<1x8x512xf32> to vector<8x512xf32>
    %c0_56 = arith.constant 0 : index
    %c0_57 = arith.constant 0 : index
    %c0_58 = arith.constant 0 : index
    %157 = vector.load %arg6[%c0_56, %c0_57, %c0_58] : memref<2x128x512xf32, #tpu.memory_space<vmem>>, vector<1x128x512xf32>
    %158 = vector.shape_cast %157 : vector<1x128x512xf32> to vector<128x512xf32>
    %cst_59 = arith.constant dense<0.000000e+00> : vector<8x512xf32>
    %159 = tpu.matmul %149, %158, %cst_59 {dimension_numbers = #tpu.dot_dimension_numbers<[1], [0], [0], [1], [0, 0, 1, 1], [], []>} : vector<8x128xf32>, vector<128x512xf32>, vector<8x512xf32> -> vector<8x512xf32>
    %160 = arith.addf %156, %159 : vector<8x512xf32>
    %161 = vector.extract_strided_slice %160 {offsets = [0, 0], sizes = [8, 128], strides = [1, 1]} : vector<8x512xf32> to vector<8x128xf32>
    %162 = arith.negf %161 : vector<8x128xf32>
    %163 = math.exp %162 : vector<8x128xf32>
    %cst_60 = arith.constant 1.000000e+00 : f32
    %164 = vector.broadcast %cst_60 : f32 to vector<8x128xf32>
    %165 = arith.addf %164, %163 : vector<8x128xf32>
    %166 = arith.divf %164, %165 : vector<8x128xf32>
    %167 = vector.extract_strided_slice %160 {offsets = [0, 128], sizes = [8, 128], strides = [1, 1]} : vector<8x512xf32> to vector<8x128xf32>
    %168 = arith.negf %167 : vector<8x128xf32>
    %169 = math.exp %168 : vector<8x128xf32>
    %cst_61 = arith.constant 1.000000e+00 : f32
    %170 = vector.broadcast %cst_61 : f32 to vector<8x128xf32>
    %171 = arith.addf %170, %169 : vector<8x128xf32>
    %172 = arith.divf %170, %171 : vector<8x128xf32>
    %173 = vector.extract_strided_slice %160 {offsets = [0, 256], sizes = [8, 128], strides = [1, 1]} : vector<8x512xf32> to vector<8x128xf32>
    %174 = math.tanh %173 : vector<8x128xf32>
    %175 = vector.extract_strided_slice %160 {offsets = [0, 384], sizes = [8, 128], strides = [1, 1]} : vector<8x512xf32> to vector<8x128xf32>
    %176 = arith.negf %175 : vector<8x128xf32>
    %177 = math.exp %176 : vector<8x128xf32>
    %cst_62 = arith.constant 1.000000e+00 : f32
    %178 = vector.broadcast %cst_62 : f32 to vector<8x128xf32>
    %179 = arith.addf %178, %177 : vector<8x128xf32>
    %180 = arith.divf %178, %179 : vector<8x128xf32>
    %181 = arith.mulf %172, %147 : vector<8x128xf32>
    %182 = arith.mulf %166, %174 : vector<8x128xf32>
    %183 = arith.addf %181, %182 : vector<8x128xf32>
    %184 = math.tanh %183 : vector<8x128xf32>
    %185 = arith.mulf %180, %184 : vector<8x128xf32>
    %186 = arith.index_cast %c4_i32 : i32 to index
    %c0_63 = arith.constant 0 : index
    %c0_64 = arith.constant 0 : index
    %187 = vector.load %arg11[%186, %c0_63, %c0_64] : memref<8x8x128xf32, #tpu.memory_space<vmem>>, vector<1x8x128xf32>
    %188 = vector.shape_cast %187 : vector<1x8x128xf32> to vector<8x128xf32>
    %189 = vector.shape_cast %185 : vector<8x128xf32> to vector<1x8x128xf32>
    tpu.vector_store %arg11[%186, %c0_63, %c0_64], %189 {strides = array<i32>} : memref<8x8x128xf32, #tpu.memory_space<vmem>>, vector<1x8x128xf32>,
    %c5_i32 = arith.constant 5 : i32
    %190 = arith.index_cast %c5_i32 : i32 to index
    %c0_65 = arith.constant 0 : index
    %c0_66 = arith.constant 0 : index
    %191 = vector.load %arg10[%190, %c0_65, %c0_66] : memref<8x8x512xf32, #tpu.memory_space<vmem>>, vector<1x8x512xf32>
    %192 = vector.shape_cast %191 : vector<1x8x512xf32> to vector<8x512xf32>
    %c0_67 = arith.constant 0 : index
    %c0_68 = arith.constant 0 : index
    %c0_69 = arith.constant 0 : index
    %193 = vector.load %arg6[%c0_67, %c0_68, %c0_69] : memref<2x128x512xf32, #tpu.memory_space<vmem>>, vector<1x128x512xf32>
    %194 = vector.shape_cast %193 : vector<1x128x512xf32> to vector<128x512xf32>
    %cst_70 = arith.constant dense<0.000000e+00> : vector<8x512xf32>
    %195 = tpu.matmul %185, %194, %cst_70 {dimension_numbers = #tpu.dot_dimension_numbers<[1], [0], [0], [1], [0, 0, 1, 1], [], []>} : vector<8x128xf32>, vector<128x512xf32>, vector<8x512xf32> -> vector<8x512xf32>
    %196 = arith.addf %192, %195 : vector<8x512xf32>
    %197 = vector.extract_strided_slice %196 {offsets = [0, 0], sizes = [8, 128], strides = [1, 1]} : vector<8x512xf32> to vector<8x128xf32>
    %198 = arith.negf %197 : vector<8x128xf32>
    %199 = math.exp %198 : vector<8x128xf32>
    %cst_71 = arith.constant 1.000000e+00 : f32
    %200 = vector.broadcast %cst_71 : f32 to vector<8x128xf32>
    %201 = arith.addf %200, %199 : vector<8x128xf32>
    %202 = arith.divf %200, %201 : vector<8x128xf32>
    %203 = vector.extract_strided_slice %196 {offsets = [0, 128], sizes = [8, 128], strides = [1, 1]} : vector<8x512xf32> to vector<8x128xf32>
    %204 = arith.negf %203 : vector<8x128xf32>
    %205 = math.exp %204 : vector<8x128xf32>
    %cst_72 = arith.constant 1.000000e+00 : f32
    %206 = vector.broadcast %cst_72 : f32 to vector<8x128xf32>
    %207 = arith.addf %206, %205 : vector<8x128xf32>
    %208 = arith.divf %206, %207 : vector<8x128xf32>
    %209 = vector.extract_strided_slice %196 {offsets = [0, 256], sizes = [8, 128], strides = [1, 1]} : vector<8x512xf32> to vector<8x128xf32>
    %210 = math.tanh %209 : vector<8x128xf32>
    %211 = vector.extract_strided_slice %196 {offsets = [0, 384], sizes = [8, 128], strides = [1, 1]} : vector<8x512xf32> to vector<8x128xf32>
    %212 = arith.negf %211 : vector<8x128xf32>
    %213 = math.exp %212 : vector<8x128xf32>
    %cst_73 = arith.constant 1.000000e+00 : f32
    %214 = vector.broadcast %cst_73 : f32 to vector<8x128xf32>
    %215 = arith.addf %214, %213 : vector<8x128xf32>
    %216 = arith.divf %214, %215 : vector<8x128xf32>
    %217 = arith.mulf %208, %183 : vector<8x128xf32>
    %218 = arith.mulf %202, %210 : vector<8x128xf32>
    %219 = arith.addf %217, %218 : vector<8x128xf32>
    %220 = math.tanh %219 : vector<8x128xf32>
    %221 = arith.mulf %216, %220 : vector<8x128xf32>
    %222 = arith.index_cast %c5_i32 : i32 to index
    %c0_74 = arith.constant 0 : index
    %c0_75 = arith.constant 0 : index
    %223 = vector.load %arg11[%222, %c0_74, %c0_75] : memref<8x8x128xf32, #tpu.memory_space<vmem>>, vector<1x8x128xf32>
    %224 = vector.shape_cast %223 : vector<1x8x128xf32> to vector<8x128xf32>
    %225 = vector.shape_cast %221 : vector<8x128xf32> to vector<1x8x128xf32>
    tpu.vector_store %arg11[%222, %c0_74, %c0_75], %225 {strides = array<i32>} : memref<8x8x128xf32, #tpu.memory_space<vmem>>, vector<1x8x128xf32>,
    %c6_i32 = arith.constant 6 : i32
    %226 = arith.index_cast %c6_i32 : i32 to index
    %c0_76 = arith.constant 0 : index
    %c0_77 = arith.constant 0 : index
    %227 = vector.load %arg10[%226, %c0_76, %c0_77] : memref<8x8x512xf32, #tpu.memory_space<vmem>>, vector<1x8x512xf32>
    %228 = vector.shape_cast %227 : vector<1x8x512xf32> to vector<8x512xf32>
    %c0_78 = arith.constant 0 : index
    %c0_79 = arith.constant 0 : index
    %c0_80 = arith.constant 0 : index
    %229 = vector.load %arg6[%c0_78, %c0_79, %c0_80] : memref<2x128x512xf32, #tpu.memory_space<vmem>>, vector<1x128x512xf32>
    %230 = vector.shape_cast %229 : vector<1x128x512xf32> to vector<128x512xf32>
    %cst_81 = arith.constant dense<0.000000e+00> : vector<8x512xf32>
    %231 = tpu.matmul %221, %230, %cst_81 {dimension_numbers = #tpu.dot_dimension_numbers<[1], [0], [0], [1], [0, 0, 1, 1], [], []>} : vector<8x128xf32>, vector<128x512xf32>, vector<8x512xf32> -> vector<8x512xf32>
    %232 = arith.addf %228, %231 : vector<8x512xf32>
    %233 = vector.extract_strided_slice %232 {offsets = [0, 0], sizes = [8, 128], strides = [1, 1]} : vector<8x512xf32> to vector<8x128xf32>
    %234 = arith.negf %233 : vector<8x128xf32>
    %235 = math.exp %234 : vector<8x128xf32>
    %cst_82 = arith.constant 1.000000e+00 : f32
    %236 = vector.broadcast %cst_82 : f32 to vector<8x128xf32>
    %237 = arith.addf %236, %235 : vector<8x128xf32>
    %238 = arith.divf %236, %237 : vector<8x128xf32>
    %239 = vector.extract_strided_slice %232 {offsets = [0, 128], sizes = [8, 128], strides = [1, 1]} : vector<8x512xf32> to vector<8x128xf32>
    %240 = arith.negf %239 : vector<8x128xf32>
    %241 = math.exp %240 : vector<8x128xf32>
    %cst_83 = arith.constant 1.000000e+00 : f32
    %242 = vector.broadcast %cst_83 : f32 to vector<8x128xf32>
    %243 = arith.addf %242, %241 : vector<8x128xf32>
    %244 = arith.divf %242, %243 : vector<8x128xf32>
    %245 = vector.extract_strided_slice %232 {offsets = [0, 256], sizes = [8, 128], strides = [1, 1]} : vector<8x512xf32> to vector<8x128xf32>
    %246 = math.tanh %245 : vector<8x128xf32>
    %247 = vector.extract_strided_slice %232 {offsets = [0, 384], sizes = [8, 128], strides = [1, 1]} : vector<8x512xf32> to vector<8x128xf32>
    %248 = arith.negf %247 : vector<8x128xf32>
    %249 = math.exp %248 : vector<8x128xf32>
    %cst_84 = arith.constant 1.000000e+00 : f32
    %250 = vector.broadcast %cst_84 : f32 to vector<8x128xf32>
    %251 = arith.addf %250, %249 : vector<8x128xf32>
    %252 = arith.divf %250, %251 : vector<8x128xf32>
    %253 = arith.mulf %244, %219 : vector<8x128xf32>
    %254 = arith.mulf %238, %246 : vector<8x128xf32>
    %255 = arith.addf %253, %254 : vector<8x128xf32>
    %256 = math.tanh %255 : vector<8x128xf32>
    %257 = arith.mulf %252, %256 : vector<8x128xf32>
    %258 = arith.index_cast %c6_i32 : i32 to index
    %c0_85 = arith.constant 0 : index
    %c0_86 = arith.constant 0 : index
    %259 = vector.load %arg11[%258, %c0_85, %c0_86] : memref<8x8x128xf32, #tpu.memory_space<vmem>>, vector<1x8x128xf32>
    %260 = vector.shape_cast %259 : vector<1x8x128xf32> to vector<8x128xf32>
    %261 = vector.shape_cast %257 : vector<8x128xf32> to vector<1x8x128xf32>
    tpu.vector_store %arg11[%258, %c0_85, %c0_86], %261 {strides = array<i32>} : memref<8x8x128xf32, #tpu.memory_space<vmem>>, vector<1x8x128xf32>,
    %c7_i32 = arith.constant 7 : i32
    %262 = arith.index_cast %c7_i32 : i32 to index
    %c0_87 = arith.constant 0 : index
    %c0_88 = arith.constant 0 : index
    %263 = vector.load %arg10[%262, %c0_87, %c0_88] : memref<8x8x512xf32, #tpu.memory_space<vmem>>, vector<1x8x512xf32>
    %264 = vector.shape_cast %263 : vector<1x8x512xf32> to vector<8x512xf32>
    %c0_89 = arith.constant 0 : index
    %c0_90 = arith.constant 0 : index
    %c0_91 = arith.constant 0 : index
    %265 = vector.load %arg6[%c0_89, %c0_90, %c0_91] : memref<2x128x512xf32, #tpu.memory_space<vmem>>, vector<1x128x512xf32>
    %266 = vector.shape_cast %265 : vector<1x128x512xf32> to vector<128x512xf32>
    %cst_92 = arith.constant dense<0.000000e+00> : vector<8x512xf32>
    %267 = tpu.matmul %257, %266, %cst_92 {dimension_numbers = #tpu.dot_dimension_numbers<[1], [0], [0], [1], [0, 0, 1, 1], [], []>} : vector<8x128xf32>, vector<128x512xf32>, vector<8x512xf32> -> vector<8x512xf32>
    %268 = arith.addf %264, %267 : vector<8x512xf32>
    %269 = vector.extract_strided_slice %268 {offsets = [0, 0], sizes = [8, 128], strides = [1, 1]} : vector<8x512xf32> to vector<8x128xf32>
    %270 = arith.negf %269 : vector<8x128xf32>
    %271 = math.exp %270 : vector<8x128xf32>
    %cst_93 = arith.constant 1.000000e+00 : f32
    %272 = vector.broadcast %cst_93 : f32 to vector<8x128xf32>
    %273 = arith.addf %272, %271 : vector<8x128xf32>
    %274 = arith.divf %272, %273 : vector<8x128xf32>
    %275 = vector.extract_strided_slice %268 {offsets = [0, 128], sizes = [8, 128], strides = [1, 1]} : vector<8x512xf32> to vector<8x128xf32>
    %276 = arith.negf %275 : vector<8x128xf32>
    %277 = math.exp %276 : vector<8x128xf32>
    %cst_94 = arith.constant 1.000000e+00 : f32
    %278 = vector.broadcast %cst_94 : f32 to vector<8x128xf32>
    %279 = arith.addf %278, %277 : vector<8x128xf32>
    %280 = arith.divf %278, %279 : vector<8x128xf32>
    %281 = vector.extract_strided_slice %268 {offsets = [0, 256], sizes = [8, 128], strides = [1, 1]} : vector<8x512xf32> to vector<8x128xf32>
    %282 = math.tanh %281 : vector<8x128xf32>
    %283 = vector.extract_strided_slice %268 {offsets = [0, 384], sizes = [8, 128], strides = [1, 1]} : vector<8x512xf32> to vector<8x128xf32>
    %284 = arith.negf %283 : vector<8x128xf32>
    %285 = math.exp %284 : vector<8x128xf32>
    %cst_95 = arith.constant 1.000000e+00 : f32
    %286 = vector.broadcast %cst_95 : f32 to vector<8x128xf32>
    %287 = arith.addf %286, %285 : vector<8x128xf32>
    %288 = arith.divf %286, %287 : vector<8x128xf32>
    %289 = arith.mulf %280, %255 : vector<8x128xf32>
    %290 = arith.mulf %274, %282 : vector<8x128xf32>
    %291 = arith.addf %289, %290 : vector<8x128xf32>
    %292 = math.tanh %291 : vector<8x128xf32>
    %293 = arith.mulf %288, %292 : vector<8x128xf32>
    %294 = arith.index_cast %c7_i32 : i32 to index
    %c0_96 = arith.constant 0 : index
    %c0_97 = arith.constant 0 : index
    %295 = vector.load %arg11[%294, %c0_96, %c0_97] : memref<8x8x128xf32, #tpu.memory_space<vmem>>, vector<1x8x128xf32>
    %296 = vector.shape_cast %295 : vector<1x8x128xf32> to vector<8x128xf32>
    %297 = vector.shape_cast %293 : vector<8x128xf32> to vector<1x8x128xf32>
    tpu.vector_store %arg11[%294, %c0_96, %c0_97], %297 {strides = array<i32>} : memref<8x8x128xf32, #tpu.memory_space<vmem>>, vector<1x8x128xf32>,
    %c8_i32 = arith.constant 8 : i32
    %c0_98 = arith.constant 0 : index
    %c0_99 = arith.constant 0 : index
    %c0_100 = arith.constant 0 : index
    %298 = vector.load %arg8[%c0_98, %c0_99, %c0_100] : memref<2x8x128xf32, #tpu.memory_space<vmem>>, vector<1x8x128xf32>
    %299 = vector.shape_cast %298 : vector<1x8x128xf32> to vector<8x128xf32>
    %300 = vector.shape_cast %293 : vector<8x128xf32> to vector<1x8x128xf32>
    tpu.vector_store %arg8[%c0_98, %c0_99, %c0_100], %300 {strides = array<i32>} : memref<2x8x128xf32, #tpu.memory_space<vmem>>, vector<1x8x128xf32>,
    %c0_101 = arith.constant 0 : index
    %c0_102 = arith.constant 0 : index
    %c0_103 = arith.constant 0 : index
    %301 = vector.load %arg9[%c0_101, %c0_102, %c0_103] : memref<2x8x128xf32, #tpu.memory_space<vmem>>, vector<1x8x128xf32>
    %302 = vector.shape_cast %301 : vector<1x8x128xf32> to vector<8x128xf32>
    %303 = vector.shape_cast %291 : vector<8x128xf32> to vector<1x8x128xf32>
    tpu.vector_store %arg9[%c0_101, %c0_102, %c0_103], %303 {strides = array<i32>} : memref<2x8x128xf32, #tpu.memory_space<vmem>>, vector<1x8x128xf32>,
    %c0_104 = arith.constant 0 : index
    %c0_105 = arith.constant 0 : index
    %c0_106 = arith.constant 0 : index
    %304 = vector.load %arg11[%c0_104, %c0_105, %c0_106] : memref<8x8x128xf32, #tpu.memory_space<vmem>>, vector<8x8x128xf32>
    %305 = vector.shape_cast %304 : vector<8x8x128xf32> to vector<64x128xf32>
    %c0_107 = arith.constant 0 : index
    %c0_108 = arith.constant 0 : index
    %c0_109 = arith.constant 0 : index
    %306 = vector.load %arg4[%c0_107, %c0_108, %c0_109] : memref<1x128x512xf32, #tpu.memory_space<vmem>>, vector<1x128x512xf32>
    %307 = vector.shape_cast %306 : vector<1x128x512xf32> to vector<128x512xf32>
    %c0_110 = arith.constant 0 : index
    %c0_111 = arith.constant 0 : index
    %c0_112 = arith.constant 0 : index
    %308 = vector.load %arg5[%c0_110, %c0_111, %c0_112] : memref<1x1x512xf32, #tpu.memory_space<vmem>>, vector<1x1x512xf32>
    %309 = vector.shape_cast %308 : vector<1x1x512xf32> to vector<1x512xf32>
    %cst_113 = arith.constant dense<0.000000e+00> : vector<64x512xf32>
    %310 = tpu.matmul %305, %307, %cst_113 {dimension_numbers = #tpu.dot_dimension_numbers<[1], [0], [0], [1], [0, 0, 1, 1], [], []>} : vector<64x128xf32>, vector<128x512xf32>, vector<64x512xf32> -> vector<64x512xf32>
    %311 = vector.broadcast %309 : vector<1x512xf32> to vector<64x512xf32>
    %312 = arith.addf %310, %311 : vector<64x512xf32>
    %313 = vector.shape_cast %312 : vector<64x512xf32> to vector<8x8x512xf32>
    %c0_114 = arith.constant 0 : index
    %c0_115 = arith.constant 0 : index
    %c0_116 = arith.constant 0 : index
    %314 = vector.load %arg10[%c0_114, %c0_115, %c0_116] : memref<8x8x512xf32, #tpu.memory_space<vmem>>, vector<8x8x512xf32>
    tpu.vector_store %arg10[%c0_114, %c0_115, %c0_116], %313 {strides = array<i32>} : memref<8x8x512xf32, #tpu.memory_space<vmem>>, vector<8x8x512xf32>,
    %cst_117 = arith.constant 0.000000e+00 : f32
    %315 = vector.broadcast %cst_117 : f32 to vector<8x128xf32>
    %c0_i32_118 = arith.constant 0 : i32
    %316 = arith.index_cast %c0_i32_118 : i32 to index
    %c0_119 = arith.constant 0 : index
    %c0_120 = arith.constant 0 : index
    %317 = vector.load %arg10[%316, %c0_119, %c0_120] : memref<8x8x512xf32, #tpu.memory_space<vmem>>, vector<1x8x512xf32>
    %318 = vector.shape_cast %317 : vector<1x8x512xf32> to vector<8x512xf32>
    %c1 = arith.constant 1 : index
    %c0_121 = arith.constant 0 : index
    %c0_122 = arith.constant 0 : index
    %319 = vector.load %arg6[%c1, %c0_121, %c0_122] : memref<2x128x512xf32, #tpu.memory_space<vmem>>, vector<1x128x512xf32>
    %320 = vector.shape_cast %319 : vector<1x128x512xf32> to vector<128x512xf32>
    %cst_123 = arith.constant dense<0.000000e+00> : vector<8x512xf32>
    %321 = tpu.matmul %315, %320, %cst_123 {dimension_numbers = #tpu.dot_dimension_numbers<[1], [0], [0], [1], [0, 0, 1, 1], [], []>} : vector<8x128xf32>, vector<128x512xf32>, vector<8x512xf32> -> vector<8x512xf32>
    %322 = arith.addf %318, %321 : vector<8x512xf32>
    %323 = vector.extract_strided_slice %322 {offsets = [0, 0], sizes = [8, 128], strides = [1, 1]} : vector<8x512xf32> to vector<8x128xf32>
    %324 = arith.negf %323 : vector<8x128xf32>
    %325 = math.exp %324 : vector<8x128xf32>
    %cst_124 = arith.constant 1.000000e+00 : f32
    %326 = vector.broadcast %cst_124 : f32 to vector<8x128xf32>
    %327 = arith.addf %326, %325 : vector<8x128xf32>
    %328 = arith.divf %326, %327 : vector<8x128xf32>
    %329 = vector.extract_strided_slice %322 {offsets = [0, 128], sizes = [8, 128], strides = [1, 1]} : vector<8x512xf32> to vector<8x128xf32>
    %330 = arith.negf %329 : vector<8x128xf32>
    %331 = math.exp %330 : vector<8x128xf32>
    %cst_125 = arith.constant 1.000000e+00 : f32
    %332 = vector.broadcast %cst_125 : f32 to vector<8x128xf32>
    %333 = arith.addf %332, %331 : vector<8x128xf32>
    %334 = arith.divf %332, %333 : vector<8x128xf32>
    %335 = vector.extract_strided_slice %322 {offsets = [0, 256], sizes = [8, 128], strides = [1, 1]} : vector<8x512xf32> to vector<8x128xf32>
    %336 = math.tanh %335 : vector<8x128xf32>
    %337 = vector.extract_strided_slice %322 {offsets = [0, 384], sizes = [8, 128], strides = [1, 1]} : vector<8x512xf32> to vector<8x128xf32>
    %338 = arith.negf %337 : vector<8x128xf32>
    %339 = math.exp %338 : vector<8x128xf32>
    %cst_126 = arith.constant 1.000000e+00 : f32
    %340 = vector.broadcast %cst_126 : f32 to vector<8x128xf32>
    %341 = arith.addf %340, %339 : vector<8x128xf32>
    %342 = arith.divf %340, %341 : vector<8x128xf32>
    %343 = arith.mulf %334, %315 : vector<8x128xf32>
    %344 = arith.mulf %328, %336 : vector<8x128xf32>
    %345 = arith.addf %343, %344 : vector<8x128xf32>
    %346 = math.tanh %345 : vector<8x128xf32>
    %347 = arith.mulf %342, %346 : vector<8x128xf32>
    %348 = arith.index_cast %c0_i32_118 : i32 to index
    %c0_127 = arith.constant 0 : index
    %c0_128 = arith.constant 0 : index
    %349 = vector.load %arg11[%348, %c0_127, %c0_128] : memref<8x8x128xf32, #tpu.memory_space<vmem>>, vector<1x8x128xf32>
    %350 = vector.shape_cast %349 : vector<1x8x128xf32> to vector<8x128xf32>
    %351 = vector.shape_cast %347 : vector<8x128xf32> to vector<1x8x128xf32>
    tpu.vector_store %arg11[%348, %c0_127, %c0_128], %351 {strides = array<i32>} : memref<8x8x128xf32, #tpu.memory_space<vmem>>, vector<1x8x128xf32>,
    %c1_i32_129 = arith.constant 1 : i32
    %352 = arith.index_cast %c1_i32_129 : i32 to index
    %c0_130 = arith.constant 0 : index
    %c0_131 = arith.constant 0 : index
    %353 = vector.load %arg10[%352, %c0_130, %c0_131] : memref<8x8x512xf32, #tpu.memory_space<vmem>>, vector<1x8x512xf32>
    %354 = vector.shape_cast %353 : vector<1x8x512xf32> to vector<8x512xf32>
    %c1_132 = arith.constant 1 : index
    %c0_133 = arith.constant 0 : index
    %c0_134 = arith.constant 0 : index
    %355 = vector.load %arg6[%c1_132, %c0_133, %c0_134] : memref<2x128x512xf32, #tpu.memory_space<vmem>>, vector<1x128x512xf32>
    %356 = vector.shape_cast %355 : vector<1x128x512xf32> to vector<128x512xf32>
    %cst_135 = arith.constant dense<0.000000e+00> : vector<8x512xf32>
    %357 = tpu.matmul %347, %356, %cst_135 {dimension_numbers = #tpu.dot_dimension_numbers<[1], [0], [0], [1], [0, 0, 1, 1], [], []>} : vector<8x128xf32>, vector<128x512xf32>, vector<8x512xf32> -> vector<8x512xf32>
    %358 = arith.addf %354, %357 : vector<8x512xf32>
    %359 = vector.extract_strided_slice %358 {offsets = [0, 0], sizes = [8, 128], strides = [1, 1]} : vector<8x512xf32> to vector<8x128xf32>
    %360 = arith.negf %359 : vector<8x128xf32>
    %361 = math.exp %360 : vector<8x128xf32>
    %cst_136 = arith.constant 1.000000e+00 : f32
    %362 = vector.broadcast %cst_136 : f32 to vector<8x128xf32>
    %363 = arith.addf %362, %361 : vector<8x128xf32>
    %364 = arith.divf %362, %363 : vector<8x128xf32>
    %365 = vector.extract_strided_slice %358 {offsets = [0, 128], sizes = [8, 128], strides = [1, 1]} : vector<8x512xf32> to vector<8x128xf32>
    %366 = arith.negf %365 : vector<8x128xf32>
    %367 = math.exp %366 : vector<8x128xf32>
    %cst_137 = arith.constant 1.000000e+00 : f32
    %368 = vector.broadcast %cst_137 : f32 to vector<8x128xf32>
    %369 = arith.addf %368, %367 : vector<8x128xf32>
    %370 = arith.divf %368, %369 : vector<8x128xf32>
    %371 = vector.extract_strided_slice %358 {offsets = [0, 256], sizes = [8, 128], strides = [1, 1]} : vector<8x512xf32> to vector<8x128xf32>
    %372 = math.tanh %371 : vector<8x128xf32>
    %373 = vector.extract_strided_slice %358 {offsets = [0, 384], sizes = [8, 128], strides = [1, 1]} : vector<8x512xf32> to vector<8x128xf32>
    %374 = arith.negf %373 : vector<8x128xf32>
    %375 = math.exp %374 : vector<8x128xf32>
    %cst_138 = arith.constant 1.000000e+00 : f32
    %376 = vector.broadcast %cst_138 : f32 to vector<8x128xf32>
    %377 = arith.addf %376, %375 : vector<8x128xf32>
    %378 = arith.divf %376, %377 : vector<8x128xf32>
    %379 = arith.mulf %370, %345 : vector<8x128xf32>
    %380 = arith.mulf %364, %372 : vector<8x128xf32>
    %381 = arith.addf %379, %380 : vector<8x128xf32>
    %382 = math.tanh %381 : vector<8x128xf32>
    %383 = arith.mulf %378, %382 : vector<8x128xf32>
    %384 = arith.index_cast %c1_i32_129 : i32 to index
    %c0_139 = arith.constant 0 : index
    %c0_140 = arith.constant 0 : index
    %385 = vector.load %arg11[%384, %c0_139, %c0_140] : memref<8x8x128xf32, #tpu.memory_space<vmem>>, vector<1x8x128xf32>
    %386 = vector.shape_cast %385 : vector<1x8x128xf32> to vector<8x128xf32>
    %387 = vector.shape_cast %383 : vector<8x128xf32> to vector<1x8x128xf32>
    tpu.vector_store %arg11[%384, %c0_139, %c0_140], %387 {strides = array<i32>} : memref<8x8x128xf32, #tpu.memory_space<vmem>>, vector<1x8x128xf32>,
    %c2_i32_141 = arith.constant 2 : i32
    %388 = arith.index_cast %c2_i32_141 : i32 to index
    %c0_142 = arith.constant 0 : index
    %c0_143 = arith.constant 0 : index
    %389 = vector.load %arg10[%388, %c0_142, %c0_143] : memref<8x8x512xf32, #tpu.memory_space<vmem>>, vector<1x8x512xf32>
    %390 = vector.shape_cast %389 : vector<1x8x512xf32> to vector<8x512xf32>
    %c1_144 = arith.constant 1 : index
    %c0_145 = arith.constant 0 : index
    %c0_146 = arith.constant 0 : index
    %391 = vector.load %arg6[%c1_144, %c0_145, %c0_146] : memref<2x128x512xf32, #tpu.memory_space<vmem>>, vector<1x128x512xf32>
    %392 = vector.shape_cast %391 : vector<1x128x512xf32> to vector<128x512xf32>
    %cst_147 = arith.constant dense<0.000000e+00> : vector<8x512xf32>
    %393 = tpu.matmul %383, %392, %cst_147 {dimension_numbers = #tpu.dot_dimension_numbers<[1], [0], [0], [1], [0, 0, 1, 1], [], []>} : vector<8x128xf32>, vector<128x512xf32>, vector<8x512xf32> -> vector<8x512xf32>
    %394 = arith.addf %390, %393 : vector<8x512xf32>
    %395 = vector.extract_strided_slice %394 {offsets = [0, 0], sizes = [8, 128], strides = [1, 1]} : vector<8x512xf32> to vector<8x128xf32>
    %396 = arith.negf %395 : vector<8x128xf32>
    %397 = math.exp %396 : vector<8x128xf32>
    %cst_148 = arith.constant 1.000000e+00 : f32
    %398 = vector.broadcast %cst_148 : f32 to vector<8x128xf32>
    %399 = arith.addf %398, %397 : vector<8x128xf32>
    %400 = arith.divf %398, %399 : vector<8x128xf32>
    %401 = vector.extract_strided_slice %394 {offsets = [0, 128], sizes = [8, 128], strides = [1, 1]} : vector<8x512xf32> to vector<8x128xf32>
    %402 = arith.negf %401 : vector<8x128xf32>
    %403 = math.exp %402 : vector<8x128xf32>
    %cst_149 = arith.constant 1.000000e+00 : f32
    %404 = vector.broadcast %cst_149 : f32 to vector<8x128xf32>
    %405 = arith.addf %404, %403 : vector<8x128xf32>
    %406 = arith.divf %404, %405 : vector<8x128xf32>
    %407 = vector.extract_strided_slice %394 {offsets = [0, 256], sizes = [8, 128], strides = [1, 1]} : vector<8x512xf32> to vector<8x128xf32>
    %408 = math.tanh %407 : vector<8x128xf32>
    %409 = vector.extract_strided_slice %394 {offsets = [0, 384], sizes = [8, 128], strides = [1, 1]} : vector<8x512xf32> to vector<8x128xf32>
    %410 = arith.negf %409 : vector<8x128xf32>
    %411 = math.exp %410 : vector<8x128xf32>
    %cst_150 = arith.constant 1.000000e+00 : f32
    %412 = vector.broadcast %cst_150 : f32 to vector<8x128xf32>
    %413 = arith.addf %412, %411 : vector<8x128xf32>
    %414 = arith.divf %412, %413 : vector<8x128xf32>
    %415 = arith.mulf %406, %381 : vector<8x128xf32>
    %416 = arith.mulf %400, %408 : vector<8x128xf32>
    %417 = arith.addf %415, %416 : vector<8x128xf32>
    %418 = math.tanh %417 : vector<8x128xf32>
    %419 = arith.mulf %414, %418 : vector<8x128xf32>
    %420 = arith.index_cast %c2_i32_141 : i32 to index
    %c0_151 = arith.constant 0 : index
    %c0_152 = arith.constant 0 : index
    %421 = vector.load %arg11[%420, %c0_151, %c0_152] : memref<8x8x128xf32, #tpu.memory_space<vmem>>, vector<1x8x128xf32>
    %422 = vector.shape_cast %421 : vector<1x8x128xf32> to vector<8x128xf32>
    %423 = vector.shape_cast %419 : vector<8x128xf32> to vector<1x8x128xf32>
    tpu.vector_store %arg11[%420, %c0_151, %c0_152], %423 {strides = array<i32>} : memref<8x8x128xf32, #tpu.memory_space<vmem>>, vector<1x8x128xf32>,
    %c3_i32_153 = arith.constant 3 : i32
    %424 = arith.index_cast %c3_i32_153 : i32 to index
    %c0_154 = arith.constant 0 : index
    %c0_155 = arith.constant 0 : index
    %425 = vector.load %arg10[%424, %c0_154, %c0_155] : memref<8x8x512xf32, #tpu.memory_space<vmem>>, vector<1x8x512xf32>
    %426 = vector.shape_cast %425 : vector<1x8x512xf32> to vector<8x512xf32>
    %c1_156 = arith.constant 1 : index
    %c0_157 = arith.constant 0 : index
    %c0_158 = arith.constant 0 : index
    %427 = vector.load %arg6[%c1_156, %c0_157, %c0_158] : memref<2x128x512xf32, #tpu.memory_space<vmem>>, vector<1x128x512xf32>
    %428 = vector.shape_cast %427 : vector<1x128x512xf32> to vector<128x512xf32>
    %cst_159 = arith.constant dense<0.000000e+00> : vector<8x512xf32>
    %429 = tpu.matmul %419, %428, %cst_159 {dimension_numbers = #tpu.dot_dimension_numbers<[1], [0], [0], [1], [0, 0, 1, 1], [], []>} : vector<8x128xf32>, vector<128x512xf32>, vector<8x512xf32> -> vector<8x512xf32>
    %430 = arith.addf %426, %429 : vector<8x512xf32>
    %431 = vector.extract_strided_slice %430 {offsets = [0, 0], sizes = [8, 128], strides = [1, 1]} : vector<8x512xf32> to vector<8x128xf32>
    %432 = arith.negf %431 : vector<8x128xf32>
    %433 = math.exp %432 : vector<8x128xf32>
    %cst_160 = arith.constant 1.000000e+00 : f32
    %434 = vector.broadcast %cst_160 : f32 to vector<8x128xf32>
    %435 = arith.addf %434, %433 : vector<8x128xf32>
    %436 = arith.divf %434, %435 : vector<8x128xf32>
    %437 = vector.extract_strided_slice %430 {offsets = [0, 128], sizes = [8, 128], strides = [1, 1]} : vector<8x512xf32> to vector<8x128xf32>
    %438 = arith.negf %437 : vector<8x128xf32>
    %439 = math.exp %438 : vector<8x128xf32>
    %cst_161 = arith.constant 1.000000e+00 : f32
    %440 = vector.broadcast %cst_161 : f32 to vector<8x128xf32>
    %441 = arith.addf %440, %439 : vector<8x128xf32>
    %442 = arith.divf %440, %441 : vector<8x128xf32>
    %443 = vector.extract_strided_slice %430 {offsets = [0, 256], sizes = [8, 128], strides = [1, 1]} : vector<8x512xf32> to vector<8x128xf32>
    %444 = math.tanh %443 : vector<8x128xf32>
    %445 = vector.extract_strided_slice %430 {offsets = [0, 384], sizes = [8, 128], strides = [1, 1]} : vector<8x512xf32> to vector<8x128xf32>
    %446 = arith.negf %445 : vector<8x128xf32>
    %447 = math.exp %446 : vector<8x128xf32>
    %cst_162 = arith.constant 1.000000e+00 : f32
    %448 = vector.broadcast %cst_162 : f32 to vector<8x128xf32>
    %449 = arith.addf %448, %447 : vector<8x128xf32>
    %450 = arith.divf %448, %449 : vector<8x128xf32>
    %451 = arith.mulf %442, %417 : vector<8x128xf32>
    %452 = arith.mulf %436, %444 : vector<8x128xf32>
    %453 = arith.addf %451, %452 : vector<8x128xf32>
    %454 = math.tanh %453 : vector<8x128xf32>
    %455 = arith.mulf %450, %454 : vector<8x128xf32>
    %456 = arith.index_cast %c3_i32_153 : i32 to index
    %c0_163 = arith.constant 0 : index
    %c0_164 = arith.constant 0 : index
    %457 = vector.load %arg11[%456, %c0_163, %c0_164] : memref<8x8x128xf32, #tpu.memory_space<vmem>>, vector<1x8x128xf32>
    %458 = vector.shape_cast %457 : vector<1x8x128xf32> to vector<8x128xf32>
    %459 = vector.shape_cast %455 : vector<8x128xf32> to vector<1x8x128xf32>
    tpu.vector_store %arg11[%456, %c0_163, %c0_164], %459 {strides = array<i32>} : memref<8x8x128xf32, #tpu.memory_space<vmem>>, vector<1x8x128xf32>,
    %c4_i32_165 = arith.constant 4 : i32
    %460 = arith.index_cast %c4_i32_165 : i32 to index
    %c0_166 = arith.constant 0 : index
    %c0_167 = arith.constant 0 : index
    %461 = vector.load %arg10[%460, %c0_166, %c0_167] : memref<8x8x512xf32, #tpu.memory_space<vmem>>, vector<1x8x512xf32>
    %462 = vector.shape_cast %461 : vector<1x8x512xf32> to vector<8x512xf32>
    %c1_168 = arith.constant 1 : index
    %c0_169 = arith.constant 0 : index
    %c0_170 = arith.constant 0 : index
    %463 = vector.load %arg6[%c1_168, %c0_169, %c0_170] : memref<2x128x512xf32, #tpu.memory_space<vmem>>, vector<1x128x512xf32>
    %464 = vector.shape_cast %463 : vector<1x128x512xf32> to vector<128x512xf32>
    %cst_171 = arith.constant dense<0.000000e+00> : vector<8x512xf32>
    %465 = tpu.matmul %455, %464, %cst_171 {dimension_numbers = #tpu.dot_dimension_numbers<[1], [0], [0], [1], [0, 0, 1, 1], [], []>} : vector<8x128xf32>, vector<128x512xf32>, vector<8x512xf32> -> vector<8x512xf32>
    %466 = arith.addf %462, %465 : vector<8x512xf32>
    %467 = vector.extract_strided_slice %466 {offsets = [0, 0], sizes = [8, 128], strides = [1, 1]} : vector<8x512xf32> to vector<8x128xf32>
    %468 = arith.negf %467 : vector<8x128xf32>
    %469 = math.exp %468 : vector<8x128xf32>
    %cst_172 = arith.constant 1.000000e+00 : f32
    %470 = vector.broadcast %cst_172 : f32 to vector<8x128xf32>
    %471 = arith.addf %470, %469 : vector<8x128xf32>
    %472 = arith.divf %470, %471 : vector<8x128xf32>
    %473 = vector.extract_strided_slice %466 {offsets = [0, 128], sizes = [8, 128], strides = [1, 1]} : vector<8x512xf32> to vector<8x128xf32>
    %474 = arith.negf %473 : vector<8x128xf32>
    %475 = math.exp %474 : vector<8x128xf32>
    %cst_173 = arith.constant 1.000000e+00 : f32
    %476 = vector.broadcast %cst_173 : f32 to vector<8x128xf32>
    %477 = arith.addf %476, %475 : vector<8x128xf32>
    %478 = arith.divf %476, %477 : vector<8x128xf32>
    %479 = vector.extract_strided_slice %466 {offsets = [0, 256], sizes = [8, 128], strides = [1, 1]} : vector<8x512xf32> to vector<8x128xf32>
    %480 = math.tanh %479 : vector<8x128xf32>
    %481 = vector.extract_strided_slice %466 {offsets = [0, 384], sizes = [8, 128], strides = [1, 1]} : vector<8x512xf32> to vector<8x128xf32>
    %482 = arith.negf %481 : vector<8x128xf32>
    %483 = math.exp %482 : vector<8x128xf32>
    %cst_174 = arith.constant 1.000000e+00 : f32
    %484 = vector.broadcast %cst_174 : f32 to vector<8x128xf32>
    %485 = arith.addf %484, %483 : vector<8x128xf32>
    %486 = arith.divf %484, %485 : vector<8x128xf32>
    %487 = arith.mulf %478, %453 : vector<8x128xf32>
    %488 = arith.mulf %472, %480 : vector<8x128xf32>
    %489 = arith.addf %487, %488 : vector<8x128xf32>
    %490 = math.tanh %489 : vector<8x128xf32>
    %491 = arith.mulf %486, %490 : vector<8x128xf32>
    %492 = arith.index_cast %c4_i32_165 : i32 to index
    %c0_175 = arith.constant 0 : index
    %c0_176 = arith.constant 0 : index
    %493 = vector.load %arg11[%492, %c0_175, %c0_176] : memref<8x8x128xf32, #tpu.memory_space<vmem>>, vector<1x8x128xf32>
    %494 = vector.shape_cast %493 : vector<1x8x128xf32> to vector<8x128xf32>
    %495 = vector.shape_cast %491 : vector<8x128xf32> to vector<1x8x128xf32>
    tpu.vector_store %arg11[%492, %c0_175, %c0_176], %495 {strides = array<i32>} : memref<8x8x128xf32, #tpu.memory_space<vmem>>, vector<1x8x128xf32>,
    %c5_i32_177 = arith.constant 5 : i32
    %496 = arith.index_cast %c5_i32_177 : i32 to index
    %c0_178 = arith.constant 0 : index
    %c0_179 = arith.constant 0 : index
    %497 = vector.load %arg10[%496, %c0_178, %c0_179] : memref<8x8x512xf32, #tpu.memory_space<vmem>>, vector<1x8x512xf32>
    %498 = vector.shape_cast %497 : vector<1x8x512xf32> to vector<8x512xf32>
    %c1_180 = arith.constant 1 : index
    %c0_181 = arith.constant 0 : index
    %c0_182 = arith.constant 0 : index
    %499 = vector.load %arg6[%c1_180, %c0_181, %c0_182] : memref<2x128x512xf32, #tpu.memory_space<vmem>>, vector<1x128x512xf32>
    %500 = vector.shape_cast %499 : vector<1x128x512xf32> to vector<128x512xf32>
    %cst_183 = arith.constant dense<0.000000e+00> : vector<8x512xf32>
    %501 = tpu.matmul %491, %500, %cst_183 {dimension_numbers = #tpu.dot_dimension_numbers<[1], [0], [0], [1], [0, 0, 1, 1], [], []>} : vector<8x128xf32>, vector<128x512xf32>, vector<8x512xf32> -> vector<8x512xf32>
    %502 = arith.addf %498, %501 : vector<8x512xf32>
    %503 = vector.extract_strided_slice %502 {offsets = [0, 0], sizes = [8, 128], strides = [1, 1]} : vector<8x512xf32> to vector<8x128xf32>
    %504 = arith.negf %503 : vector<8x128xf32>
    %505 = math.exp %504 : vector<8x128xf32>
    %cst_184 = arith.constant 1.000000e+00 : f32
    %506 = vector.broadcast %cst_184 : f32 to vector<8x128xf32>
    %507 = arith.addf %506, %505 : vector<8x128xf32>
    %508 = arith.divf %506, %507 : vector<8x128xf32>
    %509 = vector.extract_strided_slice %502 {offsets = [0, 128], sizes = [8, 128], strides = [1, 1]} : vector<8x512xf32> to vector<8x128xf32>
    %510 = arith.negf %509 : vector<8x128xf32>
    %511 = math.exp %510 : vector<8x128xf32>
    %cst_185 = arith.constant 1.000000e+00 : f32
    %512 = vector.broadcast %cst_185 : f32 to vector<8x128xf32>
    %513 = arith.addf %512, %511 : vector<8x128xf32>
    %514 = arith.divf %512, %513 : vector<8x128xf32>
    %515 = vector.extract_strided_slice %502 {offsets = [0, 256], sizes = [8, 128], strides = [1, 1]} : vector<8x512xf32> to vector<8x128xf32>
    %516 = math.tanh %515 : vector<8x128xf32>
    %517 = vector.extract_strided_slice %502 {offsets = [0, 384], sizes = [8, 128], strides = [1, 1]} : vector<8x512xf32> to vector<8x128xf32>
    %518 = arith.negf %517 : vector<8x128xf32>
    %519 = math.exp %518 : vector<8x128xf32>
    %cst_186 = arith.constant 1.000000e+00 : f32
    %520 = vector.broadcast %cst_186 : f32 to vector<8x128xf32>
    %521 = arith.addf %520, %519 : vector<8x128xf32>
    %522 = arith.divf %520, %521 : vector<8x128xf32>
    %523 = arith.mulf %514, %489 : vector<8x128xf32>
    %524 = arith.mulf %508, %516 : vector<8x128xf32>
    %525 = arith.addf %523, %524 : vector<8x128xf32>
    %526 = math.tanh %525 : vector<8x128xf32>
    %527 = arith.mulf %522, %526 : vector<8x128xf32>
    %528 = arith.index_cast %c5_i32_177 : i32 to index
    %c0_187 = arith.constant 0 : index
    %c0_188 = arith.constant 0 : index
    %529 = vector.load %arg11[%528, %c0_187, %c0_188] : memref<8x8x128xf32, #tpu.memory_space<vmem>>, vector<1x8x128xf32>
    %530 = vector.shape_cast %529 : vector<1x8x128xf32> to vector<8x128xf32>
    %531 = vector.shape_cast %527 : vector<8x128xf32> to vector<1x8x128xf32>
    tpu.vector_store %arg11[%528, %c0_187, %c0_188], %531 {strides = array<i32>} : memref<8x8x128xf32, #tpu.memory_space<vmem>>, vector<1x8x128xf32>,
    %c6_i32_189 = arith.constant 6 : i32
    %532 = arith.index_cast %c6_i32_189 : i32 to index
    %c0_190 = arith.constant 0 : index
    %c0_191 = arith.constant 0 : index
    %533 = vector.load %arg10[%532, %c0_190, %c0_191] : memref<8x8x512xf32, #tpu.memory_space<vmem>>, vector<1x8x512xf32>
    %534 = vector.shape_cast %533 : vector<1x8x512xf32> to vector<8x512xf32>
    %c1_192 = arith.constant 1 : index
    %c0_193 = arith.constant 0 : index
    %c0_194 = arith.constant 0 : index
    %535 = vector.load %arg6[%c1_192, %c0_193, %c0_194] : memref<2x128x512xf32, #tpu.memory_space<vmem>>, vector<1x128x512xf32>
    %536 = vector.shape_cast %535 : vector<1x128x512xf32> to vector<128x512xf32>
    %cst_195 = arith.constant dense<0.000000e+00> : vector<8x512xf32>
    %537 = tpu.matmul %527, %536, %cst_195 {dimension_numbers = #tpu.dot_dimension_numbers<[1], [0], [0], [1], [0, 0, 1, 1], [], []>} : vector<8x128xf32>, vector<128x512xf32>, vector<8x512xf32> -> vector<8x512xf32>
    %538 = arith.addf %534, %537 : vector<8x512xf32>
    %539 = vector.extract_strided_slice %538 {offsets = [0, 0], sizes = [8, 128], strides = [1, 1]} : vector<8x512xf32> to vector<8x128xf32>
    %540 = arith.negf %539 : vector<8x128xf32>
    %541 = math.exp %540 : vector<8x128xf32>
    %cst_196 = arith.constant 1.000000e+00 : f32
    %542 = vector.broadcast %cst_196 : f32 to vector<8x128xf32>
    %543 = arith.addf %542, %541 : vector<8x128xf32>
    %544 = arith.divf %542, %543 : vector<8x128xf32>
    %545 = vector.extract_strided_slice %538 {offsets = [0, 128], sizes = [8, 128], strides = [1, 1]} : vector<8x512xf32> to vector<8x128xf32>
    %546 = arith.negf %545 : vector<8x128xf32>
    %547 = math.exp %546 : vector<8x128xf32>
    %cst_197 = arith.constant 1.000000e+00 : f32
    %548 = vector.broadcast %cst_197 : f32 to vector<8x128xf32>
    %549 = arith.addf %548, %547 : vector<8x128xf32>
    %550 = arith.divf %548, %549 : vector<8x128xf32>
    %551 = vector.extract_strided_slice %538 {offsets = [0, 256], sizes = [8, 128], strides = [1, 1]} : vector<8x512xf32> to vector<8x128xf32>
    %552 = math.tanh %551 : vector<8x128xf32>
    %553 = vector.extract_strided_slice %538 {offsets = [0, 384], sizes = [8, 128], strides = [1, 1]} : vector<8x512xf32> to vector<8x128xf32>
    %554 = arith.negf %553 : vector<8x128xf32>
    %555 = math.exp %554 : vector<8x128xf32>
    %cst_198 = arith.constant 1.000000e+00 : f32
    %556 = vector.broadcast %cst_198 : f32 to vector<8x128xf32>
    %557 = arith.addf %556, %555 : vector<8x128xf32>
    %558 = arith.divf %556, %557 : vector<8x128xf32>
    %559 = arith.mulf %550, %525 : vector<8x128xf32>
    %560 = arith.mulf %544, %552 : vector<8x128xf32>
    %561 = arith.addf %559, %560 : vector<8x128xf32>
    %562 = math.tanh %561 : vector<8x128xf32>
    %563 = arith.mulf %558, %562 : vector<8x128xf32>
    %564 = arith.index_cast %c6_i32_189 : i32 to index
    %c0_199 = arith.constant 0 : index
    %c0_200 = arith.constant 0 : index
    %565 = vector.load %arg11[%564, %c0_199, %c0_200] : memref<8x8x128xf32, #tpu.memory_space<vmem>>, vector<1x8x128xf32>
    %566 = vector.shape_cast %565 : vector<1x8x128xf32> to vector<8x128xf32>
    %567 = vector.shape_cast %563 : vector<8x128xf32> to vector<1x8x128xf32>
    tpu.vector_store %arg11[%564, %c0_199, %c0_200], %567 {strides = array<i32>} : memref<8x8x128xf32, #tpu.memory_space<vmem>>, vector<1x8x128xf32>,
    %c7_i32_201 = arith.constant 7 : i32
    %568 = arith.index_cast %c7_i32_201 : i32 to index
    %c0_202 = arith.constant 0 : index
    %c0_203 = arith.constant 0 : index
    %569 = vector.load %arg10[%568, %c0_202, %c0_203] : memref<8x8x512xf32, #tpu.memory_space<vmem>>, vector<1x8x512xf32>
    %570 = vector.shape_cast %569 : vector<1x8x512xf32> to vector<8x512xf32>
    %c1_204 = arith.constant 1 : index
    %c0_205 = arith.constant 0 : index
    %c0_206 = arith.constant 0 : index
    %571 = vector.load %arg6[%c1_204, %c0_205, %c0_206] : memref<2x128x512xf32, #tpu.memory_space<vmem>>, vector<1x128x512xf32>
    %572 = vector.shape_cast %571 : vector<1x128x512xf32> to vector<128x512xf32>
    %cst_207 = arith.constant dense<0.000000e+00> : vector<8x512xf32>
    %573 = tpu.matmul %563, %572, %cst_207 {dimension_numbers = #tpu.dot_dimension_numbers<[1], [0], [0], [1], [0, 0, 1, 1], [], []>} : vector<8x128xf32>, vector<128x512xf32>, vector<8x512xf32> -> vector<8x512xf32>
    %574 = arith.addf %570, %573 : vector<8x512xf32>
    %575 = vector.extract_strided_slice %574 {offsets = [0, 0], sizes = [8, 128], strides = [1, 1]} : vector<8x512xf32> to vector<8x128xf32>
    %576 = arith.negf %575 : vector<8x128xf32>
    %577 = math.exp %576 : vector<8x128xf32>
    %cst_208 = arith.constant 1.000000e+00 : f32
    %578 = vector.broadcast %cst_208 : f32 to vector<8x128xf32>
    %579 = arith.addf %578, %577 : vector<8x128xf32>
    %580 = arith.divf %578, %579 : vector<8x128xf32>
    %581 = vector.extract_strided_slice %574 {offsets = [0, 128], sizes = [8, 128], strides = [1, 1]} : vector<8x512xf32> to vector<8x128xf32>
    %582 = arith.negf %581 : vector<8x128xf32>
    %583 = math.exp %582 : vector<8x128xf32>
    %cst_209 = arith.constant 1.000000e+00 : f32
    %584 = vector.broadcast %cst_209 : f32 to vector<8x128xf32>
    %585 = arith.addf %584, %583 : vector<8x128xf32>
    %586 = arith.divf %584, %585 : vector<8x128xf32>
    %587 = vector.extract_strided_slice %574 {offsets = [0, 256], sizes = [8, 128], strides = [1, 1]} : vector<8x512xf32> to vector<8x128xf32>
    %588 = math.tanh %587 : vector<8x128xf32>
    %589 = vector.extract_strided_slice %574 {offsets = [0, 384], sizes = [8, 128], strides = [1, 1]} : vector<8x512xf32> to vector<8x128xf32>
    %590 = arith.negf %589 : vector<8x128xf32>
    %591 = math.exp %590 : vector<8x128xf32>
    %cst_210 = arith.constant 1.000000e+00 : f32
    %592 = vector.broadcast %cst_210 : f32 to vector<8x128xf32>
    %593 = arith.addf %592, %591 : vector<8x128xf32>
    %594 = arith.divf %592, %593 : vector<8x128xf32>
    %595 = arith.mulf %586, %561 : vector<8x128xf32>
    %596 = arith.mulf %580, %588 : vector<8x128xf32>
    %597 = arith.addf %595, %596 : vector<8x128xf32>
    %598 = math.tanh %597 : vector<8x128xf32>
    %599 = arith.mulf %594, %598 : vector<8x128xf32>
    %600 = arith.index_cast %c7_i32_201 : i32 to index
    %c0_211 = arith.constant 0 : index
    %c0_212 = arith.constant 0 : index
    %601 = vector.load %arg11[%600, %c0_211, %c0_212] : memref<8x8x128xf32, #tpu.memory_space<vmem>>, vector<1x8x128xf32>
    %602 = vector.shape_cast %601 : vector<1x8x128xf32> to vector<8x128xf32>
    %603 = vector.shape_cast %599 : vector<8x128xf32> to vector<1x8x128xf32>
    tpu.vector_store %arg11[%600, %c0_211, %c0_212], %603 {strides = array<i32>} : memref<8x8x128xf32, #tpu.memory_space<vmem>>, vector<1x8x128xf32>,
    %c8_i32_213 = arith.constant 8 : i32
    %c1_214 = arith.constant 1 : index
    %c0_215 = arith.constant 0 : index
    %c0_216 = arith.constant 0 : index
    %604 = vector.load %arg8[%c1_214, %c0_215, %c0_216] : memref<2x8x128xf32, #tpu.memory_space<vmem>>, vector<1x8x128xf32>
    %605 = vector.shape_cast %604 : vector<1x8x128xf32> to vector<8x128xf32>
    %606 = vector.shape_cast %599 : vector<8x128xf32> to vector<1x8x128xf32>
    tpu.vector_store %arg8[%c1_214, %c0_215, %c0_216], %606 {strides = array<i32>} : memref<2x8x128xf32, #tpu.memory_space<vmem>>, vector<1x8x128xf32>,
    %c1_217 = arith.constant 1 : index
    %c0_218 = arith.constant 0 : index
    %c0_219 = arith.constant 0 : index
    %607 = vector.load %arg9[%c1_217, %c0_218, %c0_219] : memref<2x8x128xf32, #tpu.memory_space<vmem>>, vector<1x8x128xf32>
    %608 = vector.shape_cast %607 : vector<1x8x128xf32> to vector<8x128xf32>
    %609 = vector.shape_cast %597 : vector<8x128xf32> to vector<1x8x128xf32>
    tpu.vector_store %arg9[%c1_217, %c0_218, %c0_219], %609 {strides = array<i32>} : memref<2x8x128xf32, #tpu.memory_space<vmem>>, vector<1x8x128xf32>,
    %c0_220 = arith.constant 0 : index
    %c0_221 = arith.constant 0 : index
    %c0_222 = arith.constant 0 : index
    %610 = vector.load %arg11[%c0_220, %c0_221, %c0_222] : memref<8x8x128xf32, #tpu.memory_space<vmem>>, vector<8x8x128xf32>
    %c0_223 = arith.constant 0 : index
    %c0_224 = arith.constant 0 : index
    %c0_225 = arith.constant 0 : index
    %611 = vector.load %arg7[%c0_223, %c0_224, %c0_225] : memref<8x8x128xf32, #tpu.memory_space<vmem>>, vector<8x8x128xf32>
    tpu.vector_store %arg7[%c0_223, %c0_224, %c0_225], %610 {strides = array<i32>} : memref<8x8x128xf32, #tpu.memory_space<vmem>>, vector<8x8x128xf32>,
    return
  }
  func.func @transform_0(%arg0: i32) -> (i32, i32, i32) {
    %c0_i32 = arith.constant 0 : i32
    %c0_i32_0 = arith.constant 0 : i32
    %c0_i32_1 = arith.constant 0 : i32
    return %c0_i32, %arg0, %c0_i32_0 : i32, i32, i32
  }
  func.func @transform_1(%arg0: i32) -> (i32, i32) {
    %c0_i32 = arith.constant 0 : i32
    %c0_i32_0 = arith.constant 0 : i32
    %c0_i32_1 = arith.constant 0 : i32
    return %c0_i32, %c0_i32_0 : i32, i32
  }
  func.func @transform_2(%arg0: i32) -> (i32, i32) {
    %c0_i32 = arith.constant 0 : i32
    %c0_i32_0 = arith.constant 0 : i32
    %c0_i32_1 = arith.constant 0 : i32
    return %c0_i32, %c0_i32_0 : i32, i32
  }
  func.func @transform_3(%arg0: i32) -> (i32, i32, i32) {
    %c0_i32 = arith.constant 0 : i32
    %c0_i32_0 = arith.constant 0 : i32
    %c0_i32_1 = arith.constant 0 : i32
    %c0_i32_2 = arith.constant 0 : i32
    return %c0_i32, %c0_i32_0, %c0_i32_1 : i32, i32, i32
  }
  func.func @transform_4(%arg0: i32) -> (i32, i32, i32) {
    %c0_i32 = arith.constant 0 : i32
    %c0_i32_0 = arith.constant 0 : i32
    %c0_i32_1 = arith.constant 0 : i32
    %c0_i32_2 = arith.constant 0 : i32
    return %c0_i32, %c0_i32_0, %c0_i32_1 : i32, i32, i32
  }
  func.func @transform_5(%arg0: i32) -> (i32, i32, i32) {
    %c0_i32 = arith.constant 0 : i32
    %c0_i32_0 = arith.constant 0 : i32
    %c0_i32_1 = arith.constant 0 : i32
    %c0_i32_2 = arith.constant 0 : i32
    return %c0_i32, %c0_i32_0, %c0_i32_1 : i32, i32, i32
  }
  func.func @transform_6(%arg0: i32) -> (i32, i32, i32) {
    %c0_i32 = arith.constant 0 : i32
    %c0_i32_0 = arith.constant 0 : i32
    %c0_i32_1 = arith.constant 0 : i32
    return %c0_i32, %arg0, %c0_i32_0 : i32, i32, i32
  }
  func.func @transform_7(%arg0: i32) -> (i32, i32, i32) {
    %c0_i32 = arith.constant 0 : i32
    %c0_i32_0 = arith.constant 0 : i32
    %c0_i32_1 = arith.constant 0 : i32
    return %c0_i32, %arg0, %c0_i32_0 : i32, i32, i32
  }
  func.func @transform_8(%arg0: i32) -> (i32, i32, i32) {
    %c0_i32 = arith.constant 0 : i32
    %c0_i32_0 = arith.constant 0 : i32
    %c0_i32_1 = arith.constant 0 : i32
    return %c0_i32, %arg0, %c0_i32_0 : i32, i32, i32
  }
}

</mosaic_0001>

<llo_original>
// kernel: tpu_custom_call.1
$region0: #{tpu_custom_call.1}
  #allocation0 [shape = 'u32[]', space=smem, size = 0x4, offset = 0x4, fixed_abs, tag = 'smem constant byte address 0x4 - core index']
  #allocation1 [shape = 'u32[72,128]{1,0:T(1,128)}', space=vmem, size = 0x9000, scoped, tag = 'internal scratch']
  #allocation2 [shape = 'f32[8,8,512]{2,1,0:T(8,128)}', space=vmem, size = 0x20000, scoped, tag = 'scratch operand']
  #allocation3 [shape = 'f32[8,8,128]{2,1,0:T(8,128)}', space=vmem, size = 0x8000, scoped, tag = 'scratch operand']
  %s0 = inlined_call_operand.hbm [shape: f32[8,8,16], index: 0, kind: input, shape index: {}]
  %s1 = inlined_call_operand.hbm [shape: f32[16,512], index: 1, kind: input, shape index: {}]
  %s2 = inlined_call_operand.hbm [shape: f32[1,512], index: 2, kind: input, shape index: {}]
  %s3 = inlined_call_operand.hbm [shape: f32[1,128,512], index: 3, kind: input, shape index: {}]
  %s4 = inlined_call_operand.hbm [shape: f32[1,1,512], index: 4, kind: input, shape index: {}]
  %s5 = inlined_call_operand.hbm [shape: f32[2,128,512], index: 5, kind: input, shape index: {}]
  %s6 = inlined_call_operand.hbm [shape: f32[8,8,128], index: 6, kind: output, shape index: {0}]
  %s7 = inlined_call_operand.hbm [shape: f32[2,8,128], index: 7, kind: output, shape index: {1}]
  %s8 = inlined_call_operand.hbm [shape: f32[2,8,128], index: 8, kind: output, shape index: {2}]
  %9 = xla_tuple %s6, %s7, %s8
  %s10 = sld [smem:[#allocation0]]
  $region74: #{tpu_custom_call.1} parent=0
    _
  %s12 = ssub.s32 1, %s10
  %s13 = scalar_select 0, %s12, %s10
  $region1: #{tpu_custom_call.1} parent=0
    #allocation4 [shape = 'u8[32768]{0}', space=vmem, size = 0x8000, scoped, tag = 'input window, operand 0, single buffered']
    #allocation5 [shape = 's32[1]{0}', space=sflag, size = 0x4, scoped, tag = 'scoped memory for tpu_custom_call.1']
    #allocation6 [shape = 's32[1]{0}', space=sflag, size = 0x4, scoped, tag = 'scoped memory for tpu_custom_call.1']
    #allocation7 [shape = 'u8[32768]{0}', space=vmem, size = 0x8000, scoped, tag = 'input window, operand 1, single buffered']
    #allocation8 [shape = 's32[1]{0}', space=sflag, size = 0x4, scoped, tag = 'scoped memory for tpu_custom_call.1']
    #allocation9 [shape = 'u8[2048]{0}', space=vmem, size = 0x800, scoped, tag = 'input window, operand 2, single buffered']
    #allocation10 [shape = 'u8[262144]{0}', space=vmem, size = 0x40000, scoped, tag = 'input window, operand 3, single buffered']
    #allocation11 [shape = 's32[1]{0}', space=sflag, size = 0x4, scoped, tag = 'scoped memory for tpu_custom_call.1']
    #allocation12 [shape = 'u8[2048]{0}', space=vmem, size = 0x800, scoped, tag = 'input window, operand 4, single buffered']
    #allocation13 [shape = 'u8[524288]{0}', space=vmem, size = 0x80000, scoped, tag = 'input window, operand 5, single buffered']
    #allocation14 [shape = 's32[1]{0}', space=sflag, size = 0x4, scoped, tag = 'scoped memory for tpu_custom_call.1']
    #allocation15 [shape = 'u8[32768]{0}', space=vmem, size = 0x8000, scoped, tag = 'output window, operand 0, single buffered']
    #allocation16 [shape = 'u8[8192]{0}', space=vmem, size = 0x2000, scoped, tag = 'output window, operand 1, single buffered']
    #allocation17 [shape = 's32[1]{0}', space=sflag, size = 0x4, scoped, tag = 'scoped memory for tpu_custom_call.1']
    #allocation18 [shape = 'u8[8192]{0}', space=vmem, size = 0x2000, scoped, tag = 'output window, operand 2, single buffered']
    %14 = vsyncpa [#allocation5], 0
    %15 = vsyncpa [#allocation8], 0
    %16 = vsyncpa [#allocation11], 0
    %17 = vsyncpa [#allocation14], 0
    %18 = vsyncpa [#allocation6], 0
    %19 = vsyncpa [#allocation17], 0
    // Predicated region
    $region2: #{tpu_custom_call.1} parent=1 // pred_check
      _
    $region3: #{tpu_custom_call.1} parent=1 // pred_check_branch
      %21 = sbr.rel (0) target = $region5
    $region4: #{tpu_custom_call.1} parent=1 // pred_region
      %23 = vsyncadd [#allocation5], 0
      %s24 = sshll.u32 %s0, 4
      %s25 = int_to_ptr.hbm [resolvable:$true] %s24
      %s26 = sshll.u32 [#allocation4], 4
      %s27 = int_to_ptr.vmem [resolvable:$true] %s26
      %32 = dma.hbm_to_vmem [thread:$0]  %s25, 1024, %s27, [#allocation5], 128, 128, 8
    $region5: #{tpu_custom_call.1} parent=1 // pred_fallthru
      _
    // Predicated region
    $region6: #{tpu_custom_call.1} parent=1 // pred_check
      _
    $region7: #{tpu_custom_call.1} parent=1 // pred_check_branch
      %34 = sbr.rel (0) target = $region9
    $region8: #{tpu_custom_call.1} parent=1 // pred_region
      %36 = vsyncadd [#allocation8], 0
      %s37 = sshll.u32 %s1, 4
      %s38 = int_to_ptr.hbm [resolvable:$true] %s37
      %s39 = sshll.u32 [#allocation7], 4
      %s40 = int_to_ptr.vmem [resolvable:$true] %s39
      %45 = dma.hbm_to_vmem [thread:$0]  %s38, 1024, %s40, [#allocation8], 512, 512, 32
    $region9: #{tpu_custom_call.1} parent=1 // pred_fallthru
      _
    // Predicated region
    $region10: #{tpu_custom_call.1} parent=1 // pred_check
      _
    $region11: #{tpu_custom_call.1} parent=1 // pred_check_branch
      %47 = sbr.rel (0) target = $region13
    $region12: #{tpu_custom_call.1} parent=1 // pred_region
      %49 = vsyncadd [#allocation8], 0
      %s51 = sshll.u32 %s2, 4
      %s52 = int_to_ptr.hbm [resolvable:$true] %s51
      %s53 = sshll.u32 [#allocation9], 4
      %s54 = int_to_ptr.vmem [resolvable:$true] %s53
      %56 = dma.hbm_to_vmem [thread:$0]  %s52, 64, %s54, [#allocation8]
    $region13: #{tpu_custom_call.1} parent=1 // pred_fallthru
      _
    // Predicated region
    $region14: #{tpu_custom_call.1} parent=1 // pred_check
      _
    $region15: #{tpu_custom_call.1} parent=1 // pred_check_branch
      %58 = sbr.rel (0) target = $region17
    $region16: #{tpu_custom_call.1} parent=1 // pred_region
      %60 = vsyncadd [#allocation11], 0
      %s61 = sshll.u32 %s3, 4
      %s62 = int_to_ptr.hbm [resolvable:$true] %s61
      %s63 = sshll.u32 [#allocation10], 4
      %s64 = int_to_ptr.vmem [resolvable:$true] %s63
      %69 = dma.hbm_to_vmem [thread:$0]  %s62, 8192, %s64, [#allocation11], 512, 512, 32
    $region17: #{tpu_custom_call.1} parent=1 // pred_fallthru
      _
    // Predicated region
    $region18: #{tpu_custom_call.1} parent=1 // pred_check
      _
    $region19: #{tpu_custom_call.1} parent=1 // pred_check_branch
      %71 = sbr.rel (0) target = $region21
    $region20: #{tpu_custom_call.1} parent=1 // pred_region
      %73 = vsyncadd [#allocation11], 0
      %s75 = sshll.u32 %s4, 4
      %s76 = int_to_ptr.hbm [resolvable:$true] %s75
      %s77 = sshll.u32 [#allocation12], 4
      %s78 = int_to_ptr.vmem [resolvable:$true] %s77
      %80 = dma.hbm_to_vmem [thread:$0]  %s76, 64, %s78, [#allocation11]
    $region21: #{tpu_custom_call.1} parent=1 // pred_fallthru
      _
    // Predicated region
    $region22: #{tpu_custom_call.1} parent=1 // pred_check
      _
    $region23: #{tpu_custom_call.1} parent=1 // pred_check_branch
      %82 = sbr.rel (0) target = $region25
    $region24: #{tpu_custom_call.1} parent=1 // pred_region
      %84 = vsyncadd [#allocation14], 0
      %s85 = sshll.u32 %s5, 4
      %s86 = int_to_ptr.hbm [resolvable:$true] %s85
      %s87 = sshll.u32 [#allocation13], 4
      %s88 = int_to_ptr.vmem [resolvable:$true] %s87
      %93 = dma.hbm_to_vmem [thread:$0]  %s86, 16384, %s88, [#allocation14], 512, 512, 32
    $region25: #{tpu_custom_call.1} parent=1 // pred_fallthru
      _
    // Predicated region
    $region26: #{tpu_custom_call.1} parent=1 // pred_check
      _
    $region27: #{tpu_custom_call.1} parent=1 // pred_check_branch
      %95 = sbr.rel (0) target = $region29
    $region28: #{tpu_custom_call.1} parent=1 // pred_region
      %97 = dma.done [#allocation5], 1024
    $region29: #{tpu_custom_call.1} parent=1 // pred_fallthru
      _
    // Predicated region
    $region30: #{tpu_custom_call.1} parent=1 // pred_check
      _
    $region31: #{tpu_custom_call.1} parent=1 // pred_check_branch
      %99 = sbr.rel (0) target = $region33
    $region32: #{tpu_custom_call.1} parent=1 // pred_region
      %101 = dma.done [#allocation8], 1024
    $region33: #{tpu_custom_call.1} parent=1 // pred_fallthru
      _
    // Predicated region
    $region34: #{tpu_custom_call.1} parent=1 // pred_check
      _
    $region35: #{tpu_custom_call.1} parent=1 // pred_check_branch
      %103 = sbr.rel (0) target = $region37
    $region36: #{tpu_custom_call.1} parent=1 // pred_region
      %105 = dma.done [#allocation8], 64
    $region37: #{tpu_custom_call.1} parent=1 // pred_fallthru
      _
    // Predicated region
    $region38: #{tpu_custom_call.1} parent=1 // pred_check
      _
    $region39: #{tpu_custom_call.1} parent=1 // pred_check_branch
      %107 = sbr.rel (0) target = $region41
    $region40: #{tpu_custom_call.1} parent=1 // pred_region
      %109 = dma.done [#allocation11], 8192
    $region41: #{tpu_custom_call.1} parent=1 // pred_fallthru
      _
    // Predicated region
    $region42: #{tpu_custom_call.1} parent=1 // pred_check
      _
    $region43: #{tpu_custom_call.1} parent=1 // pred_check_branch
      %111 = sbr.rel (0) target = $region45
    $region44: #{tpu_custom_call.1} parent=1 // pred_region
      %113 = dma.done [#allocation11], 64
    $region45: #{tpu_custom_call.1} parent=1 // pred_fallthru
      _
    // Predicated region
    $region46: #{tpu_custom_call.1} parent=1 // pred_check
      _
    $region47: #{tpu_custom_call.1} parent=1 // pred_check_branch
      %115 = sbr.rel (0) target = $region49
    $region48: #{tpu_custom_call.1} parent=1 // pred_region
      %117 = dma.done [#allocation14], 16384
    $region49: #{tpu_custom_call.1} parent=1 // pred_fallthru
      _
    %v118 = vld [vmem:[#allocation4] sm:$0xff]
    %v119 = vld [vmem:[#allocation4 + $0x8] sm:$0xff]
    %v120 = vld [vmem:[#allocation4 + $0x10] sm:$0xff]
    %v121 = vld [vmem:[#allocation4 + $0x18] sm:$0xff]
    %v122 = vld [vmem:[#allocation4 + $0x20] sm:$0xff]
    %v123 = vld [vmem:[#allocation4 + $0x28] sm:$0xff]
    %v124 = vld [vmem:[#allocation4 + $0x30] sm:$0xff]
    %v125 = vld [vmem:[#allocation4 + $0x38] sm:$0xff]
    %v126 = vld [vmem:[#allocation7] sm:$0xff]
    %v127 = vld [vmem:[#allocation7 + $0x8] sm:$0xff]
    %v128 = vld [vmem:[#allocation7 + $0x10] sm:$0xff]
    %v129 = vld [vmem:[#allocation7 + $0x18] sm:$0xff]
    %v130 = vld [vmem:[#allocation7 + $0x20] sm:$0xff]
    %v131 = vld [vmem:[#allocation7 + $0x28] sm:$0xff]
    %v132 = vld [vmem:[#allocation7 + $0x30] sm:$0xff]
    %v133 = vld [vmem:[#allocation7 + $0x38] sm:$0xff]
    %v134 = vld [vmem:[#allocation9] sm:$0xf]
    %v136 = vperm.slane %v134, 0
    %v137 = vperm.slane %v134, 1
    %v138 = vperm.slane %v134, 2
    %v139 = vperm.slane %v134, 3
    %vm144 = vcmask 130048
    %v146 = vsel %vm144, %v118, 0
    %v149 = vsel %vm144, %v119, 0
    %v152 = vsel %vm144, %v120, 0
    %v155 = vsel %vm144, %v121, 0
    %v158 = vsel %vm144, %v122, 0
    %v161 = vsel %vm144, %v123, 0
    %v164 = vsel %vm144, %v124, 0
    %v167 = vsel %vm144, %v125, 0
    %169 = vmatpush.msra.mxu0 0.0
    %170 = vmatpush.msra.mxu0 0.0
    %171 = vmatpush.msra.mxu0 0.0
    %172 = vmatpush.msra.mxu0 0.0
    %173 = vmatpush.msra.mxu0 0.0
    %174 = vmatpush.msra.mxu0 0.0
    %175 = vmatpush.msra.mxu0 0.0
    %176 = vmatpush.msra.mxu0 0.0
    %177 = vmatpush.msra.mxu0 0.0
    %178 = vmatpush.msra.mxu0 0.0
    %179 = vmatpush.msra.mxu0 0.0
    %180 = vmatpush.msra.mxu0 0.0
    %181 = vmatpush.msra.mxu0 0.0
    %182 = vmatpush.msra.mxu0 0.0
    %183 = vmatpush.msra.mxu0 %v130
    %184 = vmatpush.msra.mxu0 %v126
    %185 = vmatmul.f32.gmra.mxu0 %v146
    %v186 = vpop.f32.mrf.mxu0
    %v187 = vadd.f32 %v136, %v186
    %188 = vmatmul.f32.gmra.mxu0 %v149
    %v189 = vpop.f32.mrf.mxu0
    %v190 = vadd.f32 %v136, %v189
    %191 = vmatmul.f32.gmra.mxu0 %v152
    %v192 = vpop.f32.mrf.mxu0
    %v193 = vadd.f32 %v136, %v192
    %194 = vmatmul.f32.gmra.mxu0 %v155
    %v195 = vpop.f32.mrf.mxu0
    %v196 = vadd.f32 %v136, %v195
    %197 = vmatmul.f32.gmra.mxu0 %v158
    %v198 = vpop.f32.mrf.mxu0
    %v199 = vadd.f32 %v136, %v198
    %200 = vmatmul.f32.gmra.mxu0 %v161
    %v201 = vpop.f32.mrf.mxu0
    %v202 = vadd.f32 %v136, %v201
    %203 = vmatmul.f32.gmra.mxu0 %v164
    %v204 = vpop.f32.mrf.mxu0
    %v205 = vadd.f32 %v136, %v204
    %206 = vmatmul.f32.gmra.mxu0 %v167
    %v207 = vpop.f32.mrf.mxu0
    %v208 = vadd.f32 %v136, %v207
    %209 = vdwg.mxu0
    %210 = vmatpush.msra.mxu0 0.0
    %211 = vmatpush.msra.mxu0 0.0
    %212 = vmatpush.msra.mxu0 0.0
    %213 = vmatpush.msra.mxu0 0.0
    %214 = vmatpush.msra.mxu0 0.0
    %215 = vmatpush.msra.mxu0 0.0
    %216 = vmatpush.msra.mxu0 0.0
    %217 = vmatpush.msra.mxu0 0.0
    %218 = vmatpush.msra.mxu0 0.0
    %219 = vmatpush.msra.mxu0 0.0
    %220 = vmatpush.msra.mxu0 0.0
    %221 = vmatpush.msra.mxu0 0.0
    %222 = vmatpush.msra.mxu0 0.0
    %223 = vmatpush.msra.mxu0 0.0
    %224 = vmatpush.msra.mxu0 %v131
    %225 = vmatpush.msra.mxu0 %v127
    %226 = vmatmul.f32.gmra.mxu0 %v146
    %v227 = vpop.f32.mrf.mxu0
    %v228 = vadd.f32 %v137, %v227
    %229 = vmatmul.f32.gmra.mxu0 %v149
    %v230 = vpop.f32.mrf.mxu0
    %v231 = vadd.f32 %v137, %v230
    %232 = vmatmul.f32.gmra.mxu0 %v152
    %v233 = vpop.f32.mrf.mxu0
    %v234 = vadd.f32 %v137, %v233
    %235 = vmatmul.f32.gmra.mxu0 %v155
    %v236 = vpop.f32.mrf.mxu0
    %v237 = vadd.f32 %v137, %v236
    %238 = vmatmul.f32.gmra.mxu0 %v158
    %v239 = vpop.f32.mrf.mxu0
    %v240 = vadd.f32 %v137, %v239
    %241 = vmatmul.f32.gmra.mxu0 %v161
    %v242 = vpop.f32.mrf.mxu0
    %v243 = vadd.f32 %v137, %v242
    %244 = vmatmul.f32.gmra.mxu0 %v164
    %v245 = vpop.f32.mrf.mxu0
    %v246 = vadd.f32 %v137, %v245
    %247 = vmatmul.f32.gmra.mxu0 %v167
    %v248 = vpop.f32.mrf.mxu0
    %v249 = vadd.f32 %v137, %v248
    %250 = vdwg.mxu0
    %251 = vmatpush.msra.mxu0 0.0
    %252 = vmatpush.msra.mxu0 0.0
    %253 = vmatpush.msra.mxu0 0.0
    %254 = vmatpush.msra.mxu0 0.0
    %255 = vmatpush.msra.mxu0 0.0
    %256 = vmatpush.msra.mxu0 0.0
    %257 = vmatpush.msra.mxu0 0.0
    %258 = vmatpush.msra.mxu0 0.0
    %259 = vmatpush.msra.mxu0 0.0
    %260 = vmatpush.msra.mxu0 0.0
    %261 = vmatpush.msra.mxu0 0.0
    %262 = vmatpush.msra.mxu0 0.0
    %263 = vmatpush.msra.mxu0 0.0
    %264 = vmatpush.msra.mxu0 0.0
    %265 = vmatpush.msra.mxu0 %v132
    %266 = vmatpush.msra.mxu0 %v128
    %267 = vmatmul.f32.gmra.mxu0 %v146
    %v268 = vpop.f32.mrf.mxu0
    %v269 = vadd.f32 %v138, %v268
    %270 = vmatmul.f32.gmra.mxu0 %v149
    %v271 = vpop.f32.mrf.mxu0
    %v272 = vadd.f32 %v138, %v271
    %273 = vmatmul.f32.gmra.mxu0 %v152
    %v274 = vpop.f32.mrf.mxu0
    %v275 = vadd.f32 %v138, %v274
    %276 = vmatmul.f32.gmra.mxu0 %v155
    %v277 = vpop.f32.mrf.mxu0
    %v278 = vadd.f32 %v138, %v277
    %279 = vmatmul.f32.gmra.mxu0 %v158
    %v280 = vpop.f32.mrf.mxu0
    %v281 = vadd.f32 %v138, %v280
    %282 = vmatmul.f32.gmra.mxu0 %v161
    %v283 = vpop.f32.mrf.mxu0
    %v284 = vadd.f32 %v138, %v283
    %285 = vmatmul.f32.gmra.mxu0 %v164
    %v286 = vpop.f32.mrf.mxu0
    %v287 = vadd.f32 %v138, %v286
    %288 = vmatmul.f32.gmra.mxu0 %v167
    %v289 = vpop.f32.mrf.mxu0
    %v290 = vadd.f32 %v138, %v289
    %291 = vdwg.mxu0
    %292 = vmatpush.msra.mxu0 0.0
    %293 = vmatpush.msra.mxu0 0.0
    %294 = vmatpush.msra.mxu0 0.0
    %295 = vmatpush.msra.mxu0 0.0
    %296 = vmatpush.msra.mxu0 0.0
    %297 = vmatpush.msra.mxu0 0.0
    %298 = vmatpush.msra.mxu0 0.0
    %299 = vmatpush.msra.mxu0 0.0
    %300 = vmatpush.msra.mxu0 0.0
    %301 = vmatpush.msra.mxu0 0.0
    %302 = vmatpush.msra.mxu0 0.0
    %303 = vmatpush.msra.mxu0 0.0
    %304 = vmatpush.msra.mxu0 0.0
    %305 = vmatpush.msra.mxu0 0.0
    %306 = vmatpush.msra.mxu0 %v133
    %307 = vmatpush.msra.mxu0 %v129
    %308 = vmatmul.f32.gmra.mxu0 %v146
    %v309 = vpop.f32.mrf.mxu0
    %v310 = vadd.f32 %v139, %v309
    %311 = vmatmul.f32.gmra.mxu0 %v149
    %v312 = vpop.f32.mrf.mxu0
    %v313 = vadd.f32 %v139, %v312
    %314 = vmatmul.f32.gmra.mxu0 %v152
    %v315 = vpop.f32.mrf.mxu0
    %v316 = vadd.f32 %v139, %v315
    %317 = vmatmul.f32.gmra.mxu0 %v155
    %v318 = vpop.f32.mrf.mxu0
    %v319 = vadd.f32 %v139, %v318
    %320 = vmatmul.f32.gmra.mxu0 %v158
    %v321 = vpop.f32.mrf.mxu0
    %v322 = vadd.f32 %v139, %v321
    %323 = vmatmul.f32.gmra.mxu0 %v161
    %v324 = vpop.f32.mrf.mxu0
    %v325 = vadd.f32 %v139, %v324
    %326 = vmatmul.f32.gmra.mxu0 %v164
    %v327 = vpop.f32.mrf.mxu0
    %v328 = vadd.f32 %v139, %v327
    %329 = vmatmul.f32.gmra.mxu0 %v167
    %v330 = vpop.f32.mrf.mxu0
    %v331 = vadd.f32 %v139, %v330
    %332 = vdwg.mxu0
    %333 = vst [vmem:[#allocation2] sm:$0xff] %v187
    %334 = vst [vmem:[#allocation2 + $0x8] sm:$0xff] %v228
    %335 = vst [vmem:[#allocation2 + $0x10] sm:$0xff] %v269
    %336 = vst [vmem:[#allocation2 + $0x18] sm:$0xff] %v310
    %337 = vst [vmem:[#allocation2 + $0x20] sm:$0xff] %v190
    %338 = vst [vmem:[#allocation2 + $0x28] sm:$0xff] %v231
    %339 = vst [vmem:[#allocation2 + $0x30] sm:$0xff] %v272
    %340 = vst [vmem:[#allocation2 + $0x38] sm:$0xff] %v313
    %341 = vst [vmem:[#allocation2 + $0x40] sm:$0xff] %v193
    %342 = vst [vmem:[#allocation2 + $0x48] sm:$0xff] %v234
    %343 = vst [vmem:[#allocation2 + $0x50] sm:$0xff] %v275
    %344 = vst [vmem:[#allocation2 + $0x58] sm:$0xff] %v316
    %345 = vst [vmem:[#allocation2 + $0x60] sm:$0xff] %v196
    %346 = vst [vmem:[#allocation2 + $0x68] sm:$0xff] %v237
    %347 = vst [vmem:[#allocation2 + $0x70] sm:$0xff] %v278
    %348 = vst [vmem:[#allocation2 + $0x78] sm:$0xff] %v319
    %349 = vst [vmem:[#allocation2 + $0x80] sm:$0xff] %v199
    %350 = vst [vmem:[#allocation2 + $0x88] sm:$0xff] %v240
    %351 = vst [vmem:[#allocation2 + $0x90] sm:$0xff] %v281
    %352 = vst [vmem:[#allocation2 + $0x98] sm:$0xff] %v322
    %353 = vst [vmem:[#allocation2 + $0xa0] sm:$0xff] %v202
    %354 = vst [vmem:[#allocation2 + $0xa8] sm:$0xff] %v243
    %355 = vst [vmem:[#allocation2 + $0xb0] sm:$0xff] %v284
    %356 = vst [vmem:[#allocation2 + $0xb8] sm:$0xff] %v325
    %357 = vst [vmem:[#allocation2 + $0xc0] sm:$0xff] %v205
    %358 = vst [vmem:[#allocation2 + $0xc8] sm:$0xff] %v246
    %359 = vst [vmem:[#allocation2 + $0xd0] sm:$0xff] %v287
    %360 = vst [vmem:[#allocation2 + $0xd8] sm:$0xff] %v328
    %361 = vst [vmem:[#allocation2 + $0xe0] sm:$0xff] %v208
    %362 = vst [vmem:[#allocation2 + $0xe8] sm:$0xff] %v249
    %363 = vst [vmem:[#allocation2 + $0xf0] sm:$0xff] %v290
    %364 = vst [vmem:[#allocation2 + $0xf8] sm:$0xff] %v331
    %v365 = vld [vmem:[#allocation2] sm:$0xff]
    %v366 = vld [vmem:[#allocation2 + $0x8] sm:$0xff]
    %v367 = vld [vmem:[#allocation2 + $0x10] sm:$0xff]
    %v368 = vld [vmem:[#allocation2 + $0x18] sm:$0xff]
    %v369 = vld [vmem:[#allocation13] sm:$0xff]
    %v370 = vld [vmem:[#allocation13 + $0x8] sm:$0xff]
    %v371 = vld [vmem:[#allocation13 + $0x10] sm:$0xff]
    %v372 = vld [vmem:[#allocation13 + $0x18] sm:$0xff]
    %v373 = vld [vmem:[#allocation13 + $0x20] sm:$0xff]
    %v374 = vld [vmem:[#allocation13 + $0x28] sm:$0xff]
    %v375 = vld [vmem:[#allocation13 + $0x30] sm:$0xff]
    %v376 = vld [vmem:[#allocation13 + $0x38] sm:$0xff]
    %v377 = vld [vmem:[#allocation13 + $0x40] sm:$0xff]
    %v378 = vld [vmem:[#allocation13 + $0x48] sm:$0xff]
    %v379 = vld [vmem:[#allocation13 + $0x50] sm:$0xff]
    %v380 = vld [vmem:[#allocation13 + $0x58] sm:$0xff]
    %v381 = vld [vmem:[#allocation13 + $0x60] sm:$0xff]
    %v382 = vld [vmem:[#allocation13 + $0x68] sm:$0xff]
    %v383 = vld [vmem:[#allocation13 + $0x70] sm:$0xff]
    %v384 = vld [vmem:[#allocation13 + $0x78] sm:$0xff]
    %v385 = vld [vmem:[#allocation13 + $0x80] sm:$0xff]
    %v386 = vld [vmem:[#allocation13 + $0x88] sm:$0xff]
    %v387 = vld [vmem:[#allocation13 + $0x90] sm:$0xff]
    %v388 = vld [vmem:[#allocation13 + $0x98] sm:$0xff]
    %v389 = vld [vmem:[#allocation13 + $0xa0] sm:$0xff]
    %v390 = vld [vmem:[#allocation13 + $0xa8] sm:$0xff]
    %v391 = vld [vmem:[#allocation13 + $0xb0] sm:$0xff]
    %v392 = vld [vmem:[#allocation13 + $0xb8] sm:$0xff]
    %v393 = vld [vmem:[#allocation13 + $0xc0] sm:$0xff]
    %v394 = vld [vmem:[#allocation13 + $0xc8] sm:$0xff]
    %v395 = vld [vmem:[#allocation13 + $0xd0] sm:$0xff]
    %v396 = vld [vmem:[#allocation13 + $0xd8] sm:$0xff]
    %v397 = vld [vmem:[#allocation13 + $0xe0] sm:$0xff]
    %v398 = vld [vmem:[#allocation13 + $0xe8] sm:$0xff]
    %v399 = vld [vmem:[#allocation13 + $0xf0] sm:$0xff]
    %v400 = vld [vmem:[#allocation13 + $0xf8] sm:$0xff]
    %v401 = vld [vmem:[#allocation13 + $0x100] sm:$0xff]
    %v402 = vld [vmem:[#allocation13 + $0x108] sm:$0xff]
    %v403 = vld [vmem:[#allocation13 + $0x110] sm:$0xff]
    %v404 = vld [vmem:[#allocation13 + $0x118] sm:$0xff]
    %v405 = vld [vmem:[#allocation13 + $0x120] sm:$0xff]
    %v406 = vld [vmem:[#allocation13 + $0x128] sm:$0xff]
    %v407 = vld [vmem:[#allocation13 + $0x130] sm:$0xff]
    %v408 = vld [vmem:[#allocation13 + $0x138] sm:$0xff]
    %v409 = vld [vmem:[#allocation13 + $0x140] sm:$0xff]
    %v410 = vld [vmem:[#allocation13 + $0x148] sm:$0xff]
    %v411 = vld [vmem:[#allocation13 + $0x150] sm:$0xff]
    %v412 = vld [vmem:[#allocation13 + $0x158] sm:$0xff]
    %v413 = vld [vmem:[#allocation13 + $0x160] sm:$0xff]
    %v414 = vld [vmem:[#allocation13 + $0x168] sm:$0xff]
    %v415 = vld [vmem:[#allocation13 + $0x170] sm:$0xff]
    %v416 = vld [vmem:[#allocation13 + $0x178] sm:$0xff]
    %v417 = vld [vmem:[#allocation13 + $0x180] sm:$0xff]
    %v418 = vld [vmem:[#allocation13 + $0x188] sm:$0xff]
    %v419 = vld [vmem:[#allocation13 + $0x190] sm:$0xff]
    %v420 = vld [vmem:[#allocation13 + $0x198] sm:$0xff]
    %v421 = vld [vmem:[#allocation13 + $0x1a0] sm:$0xff]
    %v422 = vld [vmem:[#allocation13 + $0x1a8] sm:$0xff]
    %v423 = vld [vmem:[#allocation13 + $0x1b0] sm:$0xff]
    %v424 = vld [vmem:[#allocation13 + $0x1b8] sm:$0xff]
    %v425 = vld [vmem:[#allocation13 + $0x1c0] sm:$0xff]
    %v426 = vld [vmem:[#allocation13 + $0x1c8] sm:$0xff]
    %v427 = vld [vmem:[#allocation13 + $0x1d0] sm:$0xff]
    %v428 = vld [vmem:[#allocation13 + $0x1d8] sm:$0xff]
    %v429 = vld [vmem:[#allocation13 + $0x1e0] sm:$0xff]
    %v430 = vld [vmem:[#allocation13 + $0x1e8] sm:$0xff]
    %v431 = vld [vmem:[#allocation13 + $0x1f0] sm:$0xff]
    %v432 = vld [vmem:[#allocation13 + $0x1f8] sm:$0xff]
    %433 = vmatpush.msra.mxu0 %v429
    %434 = vmatpush.msra.mxu0 %v425
    %435 = vmatpush.msra.mxu0 %v421
    %436 = vmatpush.msra.mxu0 %v417
    %437 = vmatpush.msra.mxu0 %v413
    %438 = vmatpush.msra.mxu0 %v409
    %439 = vmatpush.msra.mxu0 %v405
    %440 = vmatpush.msra.mxu0 %v401
    %441 = vmatpush.msra.mxu0 %v397
    %442 = vmatpush.msra.mxu0 %v393
    %443 = vmatpush.msra.mxu0 %v389
    %444 = vmatpush.msra.mxu0 %v385
    %445 = vmatpush.msra.mxu0 %v381
    %446 = vmatpush.msra.mxu0 %v377
    %447 = vmatpush.msra.mxu0 %v373
    %448 = vmatpush.msra.mxu0 %v369
    %449 = vmatmul.f32.gmra.mxu0 0.0
    %v450 = vpop.f32.mrf.mxu0
    %v451 = vadd.f32 0.0, %v450
    %452 = vdwg.mxu0
    %453 = vmatpush.msra.mxu0 %v430
    %454 = vmatpush.msra.mxu0 %v426
    %455 = vmatpush.msra.mxu0 %v422
    %456 = vmatpush.msra.mxu0 %v418
    %457 = vmatpush.msra.mxu0 %v414
    %458 = vmatpush.msra.mxu0 %v410
    %459 = vmatpush.msra.mxu0 %v406
    %460 = vmatpush.msra.mxu0 %v402
    %461 = vmatpush.msra.mxu0 %v398
    %462 = vmatpush.msra.mxu0 %v394
    %463 = vmatpush.msra.mxu0 %v390
    %464 = vmatpush.msra.mxu0 %v386
    %465 = vmatpush.msra.mxu0 %v382
    %466 = vmatpush.msra.mxu0 %v378
    %467 = vmatpush.msra.mxu0 %v374
    %468 = vmatpush.msra.mxu0 %v370
    %469 = vmatmul.f32.gmra.mxu0 0.0
    %v470 = vpop.f32.mrf.mxu0
    %v471 = vadd.f32 0.0, %v470
    %472 = vdwg.mxu0
    %473 = vmatpush.msra.mxu0 %v431
    %474 = vmatpush.msra.mxu0 %v427
    %475 = vmatpush.msra.mxu0 %v423
    %476 = vmatpush.msra.mxu0 %v419
    %477 = vmatpush.msra.mxu0 %v415
    %478 = vmatpush.msra.mxu0 %v411
    %479 = vmatpush.msra.mxu0 %v407
    %480 = vmatpush.msra.mxu0 %v403
    %481 = vmatpush.msra.mxu0 %v399
    %482 = vmatpush.msra.mxu0 %v395
    %483 = vmatpush.msra.mxu0 %v391
    %484 = vmatpush.msra.mxu0 %v387
    %485 = vmatpush.msra.mxu0 %v383
    %486 = vmatpush.msra.mxu0 %v379
    %487 = vmatpush.msra.mxu0 %v375
    %488 = vmatpush.msra.mxu0 %v371
    %489 = vmatmul.f32.gmra.mxu0 0.0
    %v490 = vpop.f32.mrf.mxu0
    %v491 = vadd.f32 0.0, %v490
    %492 = vdwg.mxu0
    %493 = vmatpush.msra.mxu0 %v432
    %494 = vmatpush.msra.mxu0 %v428
    %495 = vmatpush.msra.mxu0 %v424
    %496 = vmatpush.msra.mxu0 %v420
    %497 = vmatpush.msra.mxu0 %v416
    %498 = vmatpush.msra.mxu0 %v412
    %499 = vmatpush.msra.mxu0 %v408
    %500 = vmatpush.msra.mxu0 %v404
    %501 = vmatpush.msra.mxu0 %v400
    %502 = vmatpush.msra.mxu0 %v396
    %503 = vmatpush.msra.mxu0 %v392
    %504 = vmatpush.msra.mxu0 %v388
    %505 = vmatpush.msra.mxu0 %v384
    %506 = vmatpush.msra.mxu0 %v380
    %507 = vmatpush.msra.mxu0 %v376
    %508 = vmatpush.msra.mxu0 %v372
    %509 = vmatmul.f32.gmra.mxu0 0.0
    %v510 = vpop.f32.mrf.mxu0
    %v511 = vadd.f32 0.0, %v510
    %512 = vdwg.mxu0
    %v513 = vadd.f32 %v365, %v451
    %v514 = vadd.f32 %v366, %v471
    %v515 = vadd.f32 %v367, %v491
    %v516 = vadd.f32 %v368, %v511
    %v517 = vxor.u32 %v513, 2147483648
    %v518 = vmul.f32 %v517, 1.442695
    %v519 = vpow.pop %v518
    %v520 = vadd.f32 %v519, 1.0
    %v521 = vrcp.pop %v520
    %v522 = vmul.f32 %v520, %v521
    %v523 = vsub.f32 1.0, %v522
    %v524 = vmul.f32 %v521, %v523
    %v525 = vadd.f32 %v521, %v524
    %vm526 = vweird.f32 %v520
    %vm527 = vweird.f32 %v521
    %vm528 = vmor %vm526, %vm527
    %v529 = vsel %vm528, %v521, %v525
    %v530 = vand.u32 2147483647, %v520
    %vm531 = vcmp.eq.f32.partialorder %v530, 8.507059e+37
    %v532 = vand.u32 %v520, 2147483648
    %v533 = vor.u32 1.1754944e-38, %v532
    %v534 = vsel %vm531, %v533, %v529
    %v535 = vmul.f32 1.0, %v534
    %v536 = vxor.u32 %v514, 2147483648
    %v537 = vmul.f32 %v536, 1.442695
    %v538 = vpow.pop %v537
    %v539 = vadd.f32 %v538, 1.0
    %v540 = vrcp.pop %v539
    %v541 = vmul.f32 %v539, %v540
    %v542 = vsub.f32 1.0, %v541
    %v543 = vmul.f32 %v540, %v542
    %v544 = vadd.f32 %v540, %v543
    %vm545 = vweird.f32 %v539
    %vm546 = vweird.f32 %v540
    %vm547 = vmor %vm545, %vm546
    %v548 = vsel %vm547, %v540, %v544
    %v549 = vand.u32 2147483647, %v539
    %vm550 = vcmp.eq.f32.partialorder %v549, 8.507059e+37
    %v551 = vand.u32 %v539, 2147483648
    %v552 = vor.u32 1.1754944e-38, %v551
    %v553 = vsel %vm550, %v552, %v548
    %v554 = vmul.f32 1.0, %v553
    %v555 = vtanh.pop %v515
    %v556 = vxor.u32 %v516, 2147483648
    %v557 = vmul.f32 %v556, 1.442695
    %v558 = vpow.pop %v557
    %v559 = vadd.f32 %v558, 1.0
    %v560 = vrcp.pop %v559
    %v561 = vmul.f32 %v559, %v560
    %v562 = vsub.f32 1.0, %v561
    %v563 = vmul.f32 %v560, %v562
    %v564 = vadd.f32 %v560, %v563
    %vm565 = vweird.f32 %v559
    %vm566 = vweird.f32 %v560
    %vm567 = vmor %vm565, %vm566
    %v568 = vsel %vm567, %v560, %v564
    %v569 = vand.u32 2147483647, %v559
    %vm570 = vcmp.eq.f32.partialorder %v569, 8.507059e+37
    %v571 = vand.u32 %v559, 2147483648
    %v572 = vor.u32 1.1754944e-38, %v571
    %v573 = vsel %vm570, %v572, %v568
    %v574 = vmul.f32 1.0, %v573
    %v575 = vmul.f32 %v554, 0.0
    %v576 = vmul.f32 %v535, %v555
    %v577 = vadd.f32 %v575, %v576
    %v578 = vtanh.pop %v577
    %v579 = vmul.f32 %v574, %v578
    %580 = vst [vmem:[#allocation3] sm:$0xff] %v579
    %s581 = scalar_lea.vmem [#allocation2], 32
    %v582 = vld [vmem:[%s581] sm:$0xff]
    %v583 = vld [vmem:[%s581 + $0x8] sm:$0xff]
    %v584 = vld [vmem:[%s581 + $0x10] sm:$0xff]
    %v585 = vld [vmem:[%s581 + $0x18] sm:$0xff]
    %v586 = vld [vmem:[#allocation13] sm:$0xff]
    %v587 = vld [vmem:[#allocation13 + $0x8] sm:$0xff]
    %v588 = vld [vmem:[#allocation13 + $0x10] sm:$0xff]
    %v589 = vld [vmem:[#allocation13 + $0x18] sm:$0xff]
    %v590 = vld [vmem:[#allocation13 + $0x20] sm:$0xff]
    %v591 = vld [vmem:[#allocation13 + $0x28] sm:$0xff]
    %v592 = vld [vmem:[#allocation13 + $0x30] sm:$0xff]
    %v593 = vld [vmem:[#allocation13 + $0x38] sm:$0xff]
    %v594 = vld [vmem:[#allocation13 + $0x40] sm:$0xff]
    %v595 = vld [vmem:[#allocation13 + $0x48] sm:$0xff]
    %v596 = vld [vmem:[#allocation13 + $0x50] sm:$0xff]
    %v597 = vld [vmem:[#allocation13 + $0x58] sm:$0xff]
    %v598 = vld [vmem:[#allocation13 + $0x60] sm:$0xff]
    %v599 = vld [vmem:[#allocation13 + $0x68] sm:$0xff]
    %v600 = vld [vmem:[#allocation13 + $0x70] sm:$0xff]
    %v601 = vld [vmem:[#allocation13 + $0x78] sm:$0xff]
    %v602 = vld [vmem:[#allocation13 + $0x80] sm:$0xff]
    %v603 = vld [vmem:[#allocation13 + $0x88] sm:$0xff]
    %v604 = vld [vmem:[#allocation13 + $0x90] sm:$0xff]
    %v605 = vld [vmem:[#allocation13 + $0x98] sm:$0xff]
    %v606 = vld [vmem:[#allocation13 + $0xa0] sm:$0xff]
    %v607 = vld [vmem:[#allocation13 + $0xa8] sm:$0xff]
    %v608 = vld [vmem:[#allocation13 + $0xb0] sm:$0xff]
    %v609 = vld [vmem:[#allocation13 + $0xb8] sm:$0xff]
    %v610 = vld [vmem:[#allocation13 + $0xc0] sm:$0xff]
    %v611 = vld [vmem:[#allocation13 + $0xc8] sm:$0xff]
    %v612 = vld [vmem:[#allocation13 + $0xd0] sm:$0xff]
    %v613 = vld [vmem:[#allocation13 + $0xd8] sm:$0xff]
    %v614 = vld [vmem:[#allocation13 + $0xe0] sm:$0xff]
    %v615 = vld [vmem:[#allocation13 + $0xe8] sm:$0xff]
    %v616 = vld [vmem:[#allocation13 + $0xf0] sm:$0xff]
    %v617 = vld [vmem:[#allocation13 + $0xf8] sm:$0xff]
    %v618 = vld [vmem:[#allocation13 + $0x100] sm:$0xff]
    %v619 = vld [vmem:[#allocation13 + $0x108] sm:$0xff]
    %v620 = vld [vmem:[#allocation13 + $0x110] sm:$0xff]
    %v621 = vld [vmem:[#allocation13 + $0x118] sm:$0xff]
    %v622 = vld [vmem:[#allocation13 + $0x120] sm:$0xff]
    %v623 = vld [vmem:[#allocation13 + $0x128] sm:$0xff]
    %v624 = vld [vmem:[#allocation13 + $0x130] sm:$0xff]
    %v625 = vld [vmem:[#allocation13 + $0x138] sm:$0xff]
    %v626 = vld [vmem:[#allocation13 + $0x140] sm:$0xff]
    %v627 = vld [vmem:[#allocation13 + $0x148] sm:$0xff]
    %v628 = vld [vmem:[#allocation13 + $0x150] sm:$0xff]
    %v629 = vld [vmem:[#allocation13 + $0x158] sm:$0xff]
    %v630 = vld [vmem:[#allocation13 + $0x160] sm:$0xff]
    %v631 = vld [vmem:[#allocation13 + $0x168] sm:$0xff]
    %v632 = vld [vmem:[#allocation13 + $0x170] sm:$0xff]
    %v633 = vld [vmem:[#allocation13 + $0x178] sm:$0xff]
    %v634 = vld [vmem:[#allocation13 + $0x180] sm:$0xff]
    %v635 = vld [vmem:[#allocation13 + $0x188] sm:$0xff]
    %v636 = vld [vmem:[#allocation13 + $0x190] sm:$0xff]
    %v637 = vld [vmem:[#allocation13 + $0x198] sm:$0xff]
    %v638 = vld [vmem:[#allocation13 + $0x1a0] sm:$0xff]
    %v639 = vld [vmem:[#allocation13 + $0x1a8] sm:$0xff]
    %v640 = vld [vmem:[#allocation13 + $0x1b0] sm:$0xff]
    %v641 = vld [vmem:[#allocation13 + $0x1b8] sm:$0xff]
    %v642 = vld [vmem:[#allocation13 + $0x1c0] sm:$0xff]
    %v643 = vld [vmem:[#allocation13 + $0x1c8] sm:$0xff]
    %v644 = vld [vmem:[#allocation13 + $0x1d0] sm:$0xff]
    %v645 = vld [vmem:[#allocation13 + $0x1d8] sm:$0xff]
    %v646 = vld [vmem:[#allocation13 + $0x1e0] sm:$0xff]
    %v647 = vld [vmem:[#allocation13 + $0x1e8] sm:$0xff]
    %v648 = vld [vmem:[#allocation13 + $0x1f0] sm:$0xff]
    %v649 = vld [vmem:[#allocation13 + $0x1f8] sm:$0xff]
    %650 = vmatpush.msra.mxu0 %v646
    %651 = vmatpush.msra.mxu0 %v642
    %652 = vmatpush.msra.mxu0 %v638
    %653 = vmatpush.msra.mxu0 %v634
    %654 = vmatpush.msra.mxu0 %v630
    %655 = vmatpush.msra.mxu0 %v626
    %656 = vmatpush.msra.mxu0 %v622
    %657 = vmatpush.msra.mxu0 %v618
    %658 = vmatpush.msra.mxu0 %v614
    %659 = vmatpush.msra.mxu0 %v610
    %660 = vmatpush.msra.mxu0 %v606
    %661 = vmatpush.msra.mxu0 %v602
    %662 = vmatpush.msra.mxu0 %v598
    %663 = vmatpush.msra.mxu0 %v594
    %664 = vmatpush.msra.mxu0 %v590
    %665 = vmatpush.msra.mxu0 %v586
    %666 = vmatmul.f32.gmra.mxu0 %v579
    %v667 = vpop.f32.mrf.mxu0
    %v668 = vadd.f32 0.0, %v667
    %669 = vdwg.mxu0
    %670 = vmatpush.msra.mxu0 %v647
    %671 = vmatpush.msra.mxu0 %v643
    %672 = vmatpush.msra.mxu0 %v639
    %673 = vmatpush.msra.mxu0 %v635
    %674 = vmatpush.msra.mxu0 %v631
    %675 = vmatpush.msra.mxu0 %v627
    %676 = vmatpush.msra.mxu0 %v623
    %677 = vmatpush.msra.mxu0 %v619
    %678 = vmatpush.msra.mxu0 %v615
    %679 = vmatpush.msra.mxu0 %v611
    %680 = vmatpush.msra.mxu0 %v607
    %681 = vmatpush.msra.mxu0 %v603
    %682 = vmatpush.msra.mxu0 %v599
    %683 = vmatpush.msra.mxu0 %v595
    %684 = vmatpush.msra.mxu0 %v591
    %685 = vmatpush.msra.mxu0 %v587
    %686 = vmatmul.f32.gmra.mxu0 %v579
    %v687 = vpop.f32.mrf.mxu0
    %v688 = vadd.f32 0.0, %v687
    %689 = vdwg.mxu0
    %690 = vmatpush.msra.mxu0 %v648
    %691 = vmatpush.msra.mxu0 %v644
    %692 = vmatpush.msra.mxu0 %v640
    %693 = vmatpush.msra.mxu0 %v636
    %694 = vmatpush.msra.mxu0 %v632
    %695 = vmatpush.msra.mxu0 %v628
    %696 = vmatpush.msra.mxu0 %v624
    %697 = vmatpush.msra.mxu0 %v620
    %698 = vmatpush.msra.mxu0 %v616
    %699 = vmatpush.msra.mxu0 %v612
    %700 = vmatpush.msra.mxu0 %v608
    %701 = vmatpush.msra.mxu0 %v604
    %702 = vmatpush.msra.mxu0 %v600
    %703 = vmatpush.msra.mxu0 %v596
    %704 = vmatpush.msra.mxu0 %v592
    %705 = vmatpush.msra.mxu0 %v588
    %706 = vmatmul.f32.gmra.mxu0 %v579
    %v707 = vpop.f32.mrf.mxu0
    %v708 = vadd.f32 0.0, %v707
    %709 = vdwg.mxu0
    %710 = vmatpush.msra.mxu0 %v649
    %711 = vmatpush.msra.mxu0 %v645
    %712 = vmatpush.msra.mxu0 %v641
    %713 = vmatpush.msra.mxu0 %v637
    %714 = vmatpush.msra.mxu0 %v633
    %715 = vmatpush.msra.mxu0 %v629
    %716 = vmatpush.msra.mxu0 %v625
    %717 = vmatpush.msra.mxu0 %v621
    %718 = vmatpush.msra.mxu0 %v617
    %719 = vmatpush.msra.mxu0 %v613
    %720 = vmatpush.msra.mxu0 %v609
    %721 = vmatpush.msra.mxu0 %v605
    %722 = vmatpush.msra.mxu0 %v601
    %723 = vmatpush.msra.mxu0 %v597
    %724 = vmatpush.msra.mxu0 %v593
    %725 = vmatpush.msra.mxu0 %v589
    %726 = vmatmul.f32.gmra.mxu0 %v579
    %v727 = vpop.f32.mrf.mxu0
    %v728 = vadd.f32 0.0, %v727
    %729 = vdwg.mxu0
    %v730 = vadd.f32 %v582, %v668
    %v731 = vadd.f32 %v583, %v688
    %v732 = vadd.f32 %v584, %v708
    %v733 = vadd.f32 %v585, %v728
    %v734 = vxor.u32 %v730, 2147483648
    %v735 = vmul.f32 %v734, 1.442695
    %v736 = vpow.pop %v735
    %v737 = vadd.f32 %v736, 1.0
    %v738 = vrcp.pop %v737
    %v739 = vmul.f32 %v737, %v738
    %v740 = vsub.f32 1.0, %v739
    %v741 = vmul.f32 %v738, %v740
    %v742 = vadd.f32 %v738, %v741
    %vm743 = vweird.f32 %v737
    %vm744 = vweird.f32 %v738
    %vm745 = vmor %vm743, %vm744
    %v746 = vsel %vm745, %v738, %v742
    %v747 = vand.u32 2147483647, %v737
    %vm748 = vcmp.eq.f32.partialorder %v747, 8.507059e+37
    %v749 = vand.u32 %v737, 2147483648
    %v750 = vor.u32 1.1754944e-38, %v749
    %v751 = vsel %vm748, %v750, %v746
    %v752 = vmul.f32 1.0, %v751
    %v753 = vxor.u32 %v731, 2147483648
    %v754 = vmul.f32 %v753, 1.442695
    %v755 = vpow.pop %v754
    %v756 = vadd.f32 %v755, 1.0
    %v757 = vrcp.pop %v756
    %v758 = vmul.f32 %v756, %v757
    %v759 = vsub.f32 1.0, %v758
    %v760 = vmul.f32 %v757, %v759
    %v761 = vadd.f32 %v757, %v760
    %vm762 = vweird.f32 %v756
    %vm763 = vweird.f32 %v757
    %vm764 = vmor %vm762, %vm763
    %v765 = vsel %vm764, %v757, %v761
    %v766 = vand.u32 2147483647, %v756
    %vm767 = vcmp.eq.f32.partialorder %v766, 8.507059e+37
    %v768 = vand.u32 %v756, 2147483648
    %v769 = vor.u32 1.1754944e-38, %v768
    %v770 = vsel %vm767, %v769, %v765
    %v771 = vmul.f32 1.0, %v770
    %v772 = vtanh.pop %v732
    %v773 = vxor.u32 %v733, 2147483648
    %v774 = vmul.f32 %v773, 1.442695
    %v775 = vpow.pop %v774
    %v776 = vadd.f32 %v775, 1.0
    %v777 = vrcp.pop %v776
    %v778 = vmul.f32 %v776, %v777
    %v779 = vsub.f32 1.0, %v778
    %v780 = vmul.f32 %v777, %v779
    %v781 = vadd.f32 %v777, %v780
    %vm782 = vweird.f32 %v776
    %vm783 = vweird.f32 %v777
    %vm784 = vmor %vm782, %vm783
    %v785 = vsel %vm784, %v777, %v781
    %v786 = vand.u32 2147483647, %v776
    %vm787 = vcmp.eq.f32.partialorder %v786, 8.507059e+37
    %v788 = vand.u32 %v776, 2147483648
    %v789 = vor.u32 1.1754944e-38, %v788
    %v790 = vsel %vm787, %v789, %v785
    %v791 = vmul.f32 1.0, %v790
    %v792 = vmul.f32 %v771, %v577
    %v793 = vmul.f32 %v752, %v772
    %v794 = vadd.f32 %v792, %v793
    %v795 = vtanh.pop %v794
    %v796 = vmul.f32 %v791, %v795
    %s797 = scalar_lea.vmem [#allocation3], 8
    %798 = vst [vmem:[%s797] sm:$0xff] %v796
    %s799 = scalar_lea.vmem [#allocation2], 64
    %v800 = vld [vmem:[%s799] sm:$0xff]
    %v801 = vld [vmem:[%s799 + $0x8] sm:$0xff]
    %v802 = vld [vmem:[%s799 + $0x10] sm:$0xff]
    %v803 = vld [vmem:[%s799 + $0x18] sm:$0xff]
    %v804 = vld [vmem:[#allocation13] sm:$0xff]
    %v805 = vld [vmem:[#allocation13 + $0x8] sm:$0xff]
    %v806 = vld [vmem:[#allocation13 + $0x10] sm:$0xff]
    %v807 = vld [vmem:[#allocation13 + $0x18] sm:$0xff]
    %v808 = vld [vmem:[#allocation13 + $0x20] sm:$0xff]
    %v809 = vld [vmem:[#allocation13 + $0x28] sm:$0xff]
    %v810 = vld [vmem:[#allocation13 + $0x30] sm:$0xff]
    %v811 = vld [vmem:[#allocation13 + $0x38] sm:$0xff]
    %v812 = vld [vmem:[#allocation13 + $0x40] sm:$0xff]
    %v813 = vld [vmem:[#allocation13 + $0x48] sm:$0xff]
    %v814 = vld [vmem:[#allocation13 + $0x50] sm:$0xff]
    %v815 = vld [vmem:[#allocation13 + $0x58] sm:$0xff]
    %v816 = vld [vmem:[#allocation13 + $0x60] sm:$0xff]
    %v817 = vld [vmem:[#allocation13 + $0x68] sm:$0xff]
    %v818 = vld [vmem:[#allocation13 + $0x70] sm:$0xff]
    %v819 = vld [vmem:[#allocation13 + $0x78] sm:$0xff]
    %v820 = vld [vmem:[#allocation13 + $0x80] sm:$0xff]
    %v821 = vld [vmem:[#allocation13 + $0x88] sm:$0xff]
    %v822 = vld [vmem:[#allocation13 + $0x90] sm:$0xff]
    %v823 = vld [vmem:[#allocation13 + $0x98] sm:$0xff]
    %v824 = vld [vmem:[#allocation13 + $0xa0] sm:$0xff]
    %v825 = vld [vmem:[#allocation13 + $0xa8] sm:$0xff]
    %v826 = vld [vmem:[#allocation13 + $0xb0] sm:$0xff]
    %v827 = vld [vmem:[#allocation13 + $0xb8] sm:$0xff]
    %v828 = vld [vmem:[#allocation13 + $0xc0] sm:$0xff]
    %v829 = vld [vmem:[#allocation13 + $0xc8] sm:$0xff]
    %v830 = vld [vmem:[#allocation13 + $0xd0] sm:$0xff]
    %v831 = vld [vmem:[#allocation13 + $0xd8] sm:$0xff]
    %v832 = vld [vmem:[#allocation13 + $0xe0] sm:$0xff]
    %v833 = vld [vmem:[#allocation13 + $0xe8] sm:$0xff]
    %v834 = vld [vmem:[#allocation13 + $0xf0] sm:$0xff]
    %v835 = vld [vmem:[#allocation13 + $0xf8] sm:$0xff]
    %v836 = vld [vmem:[#allocation13 + $0x100] sm:$0xff]
    %v837 = vld [vmem:[#allocation13 + $0x108] sm:$0xff]
    %v838 = vld [vmem:[#allocation13 + $0x110] sm:$0xff]
    %v839 = vld [vmem:[#allocation13 + $0x118] sm:$0xff]
    %v840 = vld [vmem:[#allocation13 + $0x120] sm:$0xff]
    %v841 = vld [vmem:[#allocation13 + $0x128] sm:$0xff]
    %v842 = vld [vmem:[#allocation13 + $0x130] sm:$0xff]
    %v843 = vld [vmem:[#allocation13 + $0x138] sm:$0xff]
    %v844 = vld [vmem:[#allocation13 + $0x140] sm:$0xff]
    %v845 = vld [vmem:[#allocation13 + $0x148] sm:$0xff]
    %v846 = vld [vmem:[#allocation13 + $0x150] sm:$0xff]
    %v847 = vld [vmem:[#allocation13 + $0x158] sm:$0xff]
    %v848 = vld [vmem:[#allocation13 + $0x160] sm:$0xff]
    %v849 = vld [vmem:[#allocation13 + $0x168] sm:$0xff]
    %v850 = vld [vmem:[#allocation13 + $0x170] sm:$0xff]
    %v851 = vld [vmem:[#allocation13 + $0x178] sm:$0xff]
    %v852 = vld [vmem:[#allocation13 + $0x180] sm:$0xff]
    %v853 = vld [vmem:[#allocation13 + $0x188] sm:$0xff]
    %v854 = vld [vmem:[#allocation13 + $0x190] sm:$0xff]
    %v855 = vld [vmem:[#allocation13 + $0x198] sm:$0xff]
    %v856 = vld [vmem:[#allocation13 + $0x1a0] sm:$0xff]
    %v857 = vld [vmem:[#allocation13 + $0x1a8] sm:$0xff]
    %v858 = vld [vmem:[#allocation13 + $0x1b0] sm:$0xff]
    %v859 = vld [vmem:[#allocation13 + $0x1b8] sm:$0xff]
    %v860 = vld [vmem:[#allocation13 + $0x1c0] sm:$0xff]
    %v861 = vld [vmem:[#allocation13 + $0x1c8] sm:$0xff]
    %v862 = vld [vmem:[#allocation13 + $0x1d0] sm:$0xff]
    %v863 = vld [vmem:[#allocation13 + $0x1d8] sm:$0xff]
    %v864 = vld [vmem:[#allocation13 + $0x1e0] sm:$0xff]
    %v865 = vld [vmem:[#allocation13 + $0x1e8] sm:$0xff]
    %v866 = vld [vmem:[#allocation13 + $0x1f0] sm:$0xff]
    %v867 = vld [vmem:[#allocation13 + $0x1f8] sm:$0xff]
    %868 = vmatpush.msra.mxu0 %v864
    %869 = vmatpush.msra.mxu0 %v860
    %870 = vmatpush.msra.mxu0 %v856
    %871 = vmatpush.msra.mxu0 %v852
    %872 = vmatpush.msra.mxu0 %v848
    %873 = vmatpush.msra.mxu0 %v844
    %874 = vmatpush.msra.mxu0 %v840
    %875 = vmatpush.msra.mxu0 %v836
    %876 = vmatpush.msra.mxu0 %v832
    %877 = vmatpush.msra.mxu0 %v828
    %878 = vmatpush.msra.mxu0 %v824
    %879 = vmatpush.msra.mxu0 %v820
    %880 = vmatpush.msra.mxu0 %v816
    %881 = vmatpush.msra.mxu0 %v812
    %882 = vmatpush.msra.mxu0 %v808
    %883 = vmatpush.msra.mxu0 %v804
    %884 = vmatmul.f32.gmra.mxu0 %v796
    %v885 = vpop.f32.mrf.mxu0
    %v886 = vadd.f32 0.0, %v885
    %887 = vdwg.mxu0
    %888 = vmatpush.msra.mxu0 %v865
    %889 = vmatpush.msra.mxu0 %v861
    %890 = vmatpush.msra.mxu0 %v857
    %891 = vmatpush.msra.mxu0 %v853
    %892 = vmatpush.msra.mxu0 %v849
    %893 = vmatpush.msra.mxu0 %v845
    %894 = vmatpush.msra.mxu0 %v841
    %895 = vmatpush.msra.mxu0 %v837
    %896 = vmatpush.msra.mxu0 %v833
    %897 = vmatpush.msra.mxu0 %v829
    %898 = vmatpush.msra.mxu0 %v825
    %899 = vmatpush.msra.mxu0 %v821
    %900 = vmatpush.msra.mxu0 %v817
    %901 = vmatpush.msra.mxu0 %v813
    %902 = vmatpush.msra.mxu0 %v809
    %903 = vmatpush.msra.mxu0 %v805
    %904 = vmatmul.f32.gmra.mxu0 %v796
    %v905 = vpop.f32.mrf.mxu0
    %v906 = vadd.f32 0.0, %v905
    %907 = vdwg.mxu0
    %908 = vmatpush.msra.mxu0 %v866
    %909 = vmatpush.msra.mxu0 %v862
    %910 = vmatpush.msra.mxu0 %v858
    %911 = vmatpush.msra.mxu0 %v854
    %912 = vmatpush.msra.mxu0 %v850
    %913 = vmatpush.msra.mxu0 %v846
    %914 = vmatpush.msra.mxu0 %v842
    %915 = vmatpush.msra.mxu0 %v838
    %916 = vmatpush.msra.mxu0 %v834
    %917 = vmatpush.msra.mxu0 %v830
    %918 = vmatpush.msra.mxu0 %v826
    %919 = vmatpush.msra.mxu0 %v822
    %920 = vmatpush.msra.mxu0 %v818
    %921 = vmatpush.msra.mxu0 %v814
    %922 = vmatpush.msra.mxu0 %v810
    %923 = vmatpush.msra.mxu0 %v806
    %924 = vmatmul.f32.gmra.mxu0 %v796
    %v925 = vpop.f32.mrf.mxu0
    %v926 = vadd.f32 0.0, %v925
    %927 = vdwg.mxu0
    %928 = vmatpush.msra.mxu0 %v867
    %929 = vmatpush.msra.mxu0 %v863
    %930 = vmatpush.msra.mxu0 %v859
    %931 = vmatpush.msra.mxu0 %v855
    %932 = vmatpush.msra.mxu0 %v851
    %933 = vmatpush.msra.mxu0 %v847
    %934 = vmatpush.msra.mxu0 %v843
    %935 = vmatpush.msra.mxu0 %v839
    %936 = vmatpush.msra.mxu0 %v835
    %937 = vmatpush.msra.mxu0 %v831
    %938 = vmatpush.msra.mxu0 %v827
    %939 = vmatpush.msra.mxu0 %v823
    %940 = vmatpush.msra.mxu0 %v819
    %941 = vmatpush.msra.mxu0 %v815
    %942 = vmatpush.msra.mxu0 %v811
    %943 = vmatpush.msra.mxu0 %v807
    %944 = vmatmul.f32.gmra.mxu0 %v796
    %v945 = vpop.f32.mrf.mxu0
    %v946 = vadd.f32 0.0, %v945
    %947 = vdwg.mxu0
    %v948 = vadd.f32 %v800, %v886
    %v949 = vadd.f32 %v801, %v906
    %v950 = vadd.f32 %v802, %v926
    %v951 = vadd.f32 %v803, %v946
    %v952 = vxor.u32 %v948, 2147483648
    %v953 = vmul.f32 %v952, 1.442695
    %v954 = vpow.pop %v953
    %v955 = vadd.f32 %v954, 1.0
    %v956 = vrcp.pop %v955
    %v957 = vmul.f32 %v955, %v956
    %v958 = vsub.f32 1.0, %v957
    %v959 = vmul.f32 %v956, %v958
    %v960 = vadd.f32 %v956, %v959
    %vm961 = vweird.f32 %v955
    %vm962 = vweird.f32 %v956
    %vm963 = vmor %vm961, %vm962
    %v964 = vsel %vm963, %v956, %v960
    %v965 = vand.u32 2147483647, %v955
    %vm966 = vcmp.eq.f32.partialorder %v965, 8.507059e+37
    %v967 = vand.u32 %v955, 2147483648
    %v968 = vor.u32 1.1754944e-38, %v967
    %v969 = vsel %vm966, %v968, %v964
    %v970 = vmul.f32 1.0, %v969
    %v971 = vxor.u32 %v949, 2147483648
    %v972 = vmul.f32 %v971, 1.442695
    %v973 = vpow.pop %v972
    %v974 = vadd.f32 %v973, 1.0
    %v975 = vrcp.pop %v974
    %v976 = vmul.f32 %v974, %v975
    %v977 = vsub.f32 1.0, %v976
    %v978 = vmul.f32 %v975, %v977
    %v979 = vadd.f32 %v975, %v978
    %vm980 = vweird.f32 %v974
    %vm981 = vweird.f32 %v975
    %vm982 = vmor %vm980, %vm981
    %v983 = vsel %vm982, %v975, %v979
    %v984 = vand.u32 2147483647, %v974
    %vm985 = vcmp.eq.f32.partialorder %v984, 8.507059e+37
    %v986 = vand.u32 %v974, 2147483648
    %v987 = vor.u32 1.1754944e-38, %v986
    %v988 = vsel %vm985, %v987, %v983
    %v989 = vmul.f32 1.0, %v988
    %v990 = vtanh.pop %v950
    %v991 = vxor.u32 %v951, 2147483648
    %v992 = vmul.f32 %v991, 1.442695
    %v993 = vpow.pop %v992
    %v994 = vadd.f32 %v993, 1.0
    %v995 = vrcp.pop %v994
    %v996 = vmul.f32 %v994, %v995
    %v997 = vsub.f32 1.0, %v996
    %v998 = vmul.f32 %v995, %v997
    %v999 = vadd.f32 %v995, %v998
    %vm1000 = vweird.f32 %v994
    %vm1001 = vweird.f32 %v995
    %vm1002 = vmor %vm1000, %vm1001
    %v1003 = vsel %vm1002, %v995, %v999
    %v1004 = vand.u32 2147483647, %v994
    %vm1005 = vcmp.eq.f32.partialorder %v1004, 8.507059e+37
    %v1006 = vand.u32 %v994, 2147483648
    %v1007 = vor.u32 1.1754944e-38, %v1006
    %v1008 = vsel %vm1005, %v1007, %v1003
    %v1009 = vmul.f32 1.0, %v1008
    %v1010 = vmul.f32 %v989, %v794
    %v1011 = vmul.f32 %v970, %v990
    %v1012 = vadd.f32 %v1010, %v1011
    %v1013 = vtanh.pop %v1012
    %v1014 = vmul.f32 %v1009, %v1013
    %s1015 = scalar_lea.vmem [#allocation3], 16
    %1016 = vst [vmem:[%s1015] sm:$0xff] %v1014
    %s1017 = scalar_lea.vmem [#allocation2], 96
    %v1018 = vld [vmem:[%s1017] sm:$0xff]
    %v1019 = vld [vmem:[%s1017 + $0x8] sm:$0xff]
    %v1020 = vld [vmem:[%s1017 + $0x10] sm:$0xff]
    %v1021 = vld [vmem:[%s1017 + $0x18] sm:$0xff]
    %v1022 = vld [vmem:[#allocation13] sm:$0xff]
    %v1023 = vld [vmem:[#allocation13 + $0x8] sm:$0xff]
    %v1024 = vld [vmem:[#allocation13 + $0x10] sm:$0xff]
    %v1025 = vld [vmem:[#allocation13 + $0x18] sm:$0xff]
    %v1026 = vld [vmem:[#allocation13 + $0x20] sm:$0xff]
    %v1027 = vld [vmem:[#allocation13 + $0x28] sm:$0xff]
    %v1028 = vld [vmem:[#allocation13 + $0x30] sm:$0xff]
    %v1029 = vld [vmem:[#allocation13 + $0x38] sm:$0xff]
    %v1030 = vld [vmem:[#allocation13 + $0x40] sm:$0xff]
    %v1031 = vld [vmem:[#allocation13 + $0x48] sm:$0xff]
    %v1032 = vld [vmem:[#allocation13 + $0x50] sm:$0xff]
    %v1033 = vld [vmem:[#allocation13 + $0x58] sm:$0xff]
    %v1034 = vld [vmem:[#allocation13 + $0x60] sm:$0xff]
    %v1035 = vld [vmem:[#allocation13 + $0x68] sm:$0xff]
    %v1036 = vld [vmem:[#allocation13 + $0x70] sm:$0xff]
    %v1037 = vld [vmem:[#allocation13 + $0x78] sm:$0xff]
    %v1038 = vld [vmem:[#allocation13 + $0x80] sm:$0xff]
    %v1039 = vld [vmem:[#allocation13 + $0x88] sm:$0xff]
    %v1040 = vld [vmem:[#allocation13 + $0x90] sm:$0xff]
    %v1041 = vld [vmem:[#allocation13 + $0x98] sm:$0xff]
    %v1042 = vld [vmem:[#allocation13 + $0xa0] sm:$0xff]
    %v1043 = vld [vmem:[#allocation13 + $0xa8] sm:$0xff]
    %v1044 = vld [vmem:[#allocation13 + $0xb0] sm:$0xff]
    %v1045 = vld [vmem:[#allocation13 + $0xb8] sm:$0xff]
    %v1046 = vld [vmem:[#allocation13 + $0xc0] sm:$0xff]
    %v1047 = vld [vmem:[#allocation13 + $0xc8] sm:$0xff]
    %v1048 = vld [vmem:[#allocation13 + $0xd0] sm:$0xff]
    %v1049 = vld [vmem:[#allocation13 + $0xd8] sm:$0xff]
    %v1050 = vld [vmem:[#allocation13 + $0xe0] sm:$0xff]
    %v1051 = vld [vmem:[#allocation13 + $0xe8] sm:$0xff]
    %v1052 = vld [vmem:[#allocation13 + $0xf0] sm:$0xff]
    %v1053 = vld [vmem:[#allocation13 + $0xf8] sm:$0xff]
    %v1054 = vld [vmem:[#allocation13 + $0x100] sm:$0xff]
    %v1055 = vld [vmem:[#allocation13 + $0x108] sm:$0xff]
    %v1056 = vld [vmem:[#allocation13 + $0x110] sm:$0xff]
    %v1057 = vld [vmem:[#allocation13 + $0x118] sm:$0xff]
    %v1058 = vld [vmem:[#allocation13 + $0x120] sm:$0xff]
    %v1059 = vld [vmem:[#allocation13 + $0x128] sm:$0xff]
    %v1060 = vld [vmem:[#allocation13 + $0x130] sm:$0xff]
    %v1061 = vld [vmem:[#allocation13 + $0x138] sm:$0xff]
    %v1062 = vld [vmem:[#allocation13 + $0x140] sm:$0xff]
    %v1063 = vld [vmem:[#allocation13 + $0x148] sm:$0xff]
    %v1064 = vld [vmem:[#allocation13 + $0x150] sm:$0xff]
    %v1065 = vld [vmem:[#allocation13 + $0x158] sm:$0xff]
    %v1066 = vld [vmem:[#allocation13 + $0x160] sm:$0xff]
    %v1067 = vld [vmem:[#allocation13 + $0x168] sm:$0xff]
    %v1068 = vld [vmem:[#allocation13 + $0x170] sm:$0xff]
    %v1069 = vld [vmem:[#allocation13 + $0x178] sm:$0xff]
    %v1070 = vld [vmem:[#allocation13 + $0x180] sm:$0xff]
    %v1071 = vld [vmem:[#allocation13 + $0x188] sm:$0xff]
    %v1072 = vld [vmem:[#allocation13 + $0x190] sm:$0xff]
    %v1073 = vld [vmem:[#allocation13 + $0x198] sm:$0xff]
    %v1074 = vld [vmem:[#allocation13 + $0x1a0] sm:$0xff]
    %v1075 = vld [vmem:[#allocation13 + $0x1a8] sm:$0xff]
    %v1076 = vld [vmem:[#allocation13 + $0x1b0] sm:$0xff]
    %v1077 = vld [vmem:[#allocation13 + $0x1b8] sm:$0xff]
    %v1078 = vld [vmem:[#allocation13 + $0x1c0] sm:$0xff]
    %v1079 = vld [vmem:[#allocation13 + $0x1c8] sm:$0xff]
    %v1080 = vld [vmem:[#allocation13 + $0x1d0] sm:$0xff]
    %v1081 = vld [vmem:[#allocation13 + $0x1d8] sm:$0xff]
    %v1082 = vld [vmem:[#allocation13 + $0x1e0] sm:$0xff]
    %v1083 = vld [vmem:[#allocation13 + $0x1e8] sm:$0xff]
    %v1084 = vld [vmem:[#allocation13 + $0x1f0] sm:$0xff]
    %v1085 = vld [vmem:[#allocation13 + $0x1f8] sm:$0xff]
    %1086 = vmatpush.msra.mxu0 %v1082
    %1087 = vmatpush.msra.mxu0 %v1078
    %1088 = vmatpush.msra.mxu0 %v1074
    %1089 = vmatpush.msra.mxu0 %v1070
    %1090 = vmatpush.msra.mxu0 %v1066
    %1091 = vmatpush.msra.mxu0 %v1062
    %1092 = vmatpush.msra.mxu0 %v1058
    %1093 = vmatpush.msra.mxu0 %v1054
    %1094 = vmatpush.msra.mxu0 %v1050
    %1095 = vmatpush.msra.mxu0 %v1046
    %1096 = vmatpush.msra.mxu0 %v1042
    %1097 = vmatpush.msra.mxu0 %v1038
    %1098 = vmatpush.msra.mxu0 %v1034
    %1099 = vmatpush.msra.mxu0 %v1030
    %1100 = vmatpush.msra.mxu0 %v1026
    %1101 = vmatpush.msra.mxu0 %v1022
    %1102 = vmatmul.f32.gmra.mxu0 %v1014
    %v1103 = vpop.f32.mrf.mxu0
    %v1104 = vadd.f32 0.0, %v1103
    %1105 = vdwg.mxu0
    %1106 = vmatpush.msra.mxu0 %v1083
    %1107 = vmatpush.msra.mxu0 %v1079
    %1108 = vmatpush.msra.mxu0 %v1075
    %1109 = vmatpush.msra.mxu0 %v1071
    %1110 = vmatpush.msra.mxu0 %v1067
    %1111 = vmatpush.msra.mxu0 %v1063
    %1112 = vmatpush.msra.mxu0 %v1059
    %1113 = vmatpush.msra.mxu0 %v1055
    %1114 = vmatpush.msra.mxu0 %v1051
    %1115 = vmatpush.msra.mxu0 %v1047
    %1116 = vmatpush.msra.mxu0 %v1043
    %1117 = vmatpush.msra.mxu0 %v1039
    %1118 = vmatpush.msra.mxu0 %v1035
    %1119 = vmatpush.msra.mxu0 %v1031
    %1120 = vmatpush.msra.mxu0 %v1027
    %1121 = vmatpush.msra.mxu0 %v1023
    %1122 = vmatmul.f32.gmra.mxu0 %v1014
    %v1123 = vpop.f32.mrf.mxu0
    %v1124 = vadd.f32 0.0, %v1123
    %1125 = vdwg.mxu0
    %1126 = vmatpush.msra.mxu0 %v1084
    %1127 = vmatpush.msra.mxu0 %v1080
    %1128 = vmatpush.msra.mxu0 %v1076
    %1129 = vmatpush.msra.mxu0 %v1072
    %1130 = vmatpush.msra.mxu0 %v1068
    %1131 = vmatpush.msra.mxu0 %v1064
    %1132 = vmatpush.msra.mxu0 %v1060
    %1133 = vmatpush.msra.mxu0 %v1056
    %1134 = vmatpush.msra.mxu0 %v1052
    %1135 = vmatpush.msra.mxu0 %v1048
    %1136 = vmatpush.msra.mxu0 %v1044
    %1137 = vmatpush.msra.mxu0 %v1040
    %1138 = vmatpush.msra.mxu0 %v1036
    %1139 = vmatpush.msra.mxu0 %v1032
    %1140 = vmatpush.msra.mxu0 %v1028
    %1141 = vmatpush.msra.mxu0 %v1024
    %1142 = vmatmul.f32.gmra.mxu0 %v1014
    %v1143 = vpop.f32.mrf.mxu0
    %v1144 = vadd.f32 0.0, %v1143
    %1145 = vdwg.mxu0
    %1146 = vmatpush.msra.mxu0 %v1085
    %1147 = vmatpush.msra.mxu0 %v1081
    %1148 = vmatpush.msra.mxu0 %v1077
    %1149 = vmatpush.msra.mxu0 %v1073
    %1150 = vmatpush.msra.mxu0 %v1069
    %1151 = vmatpush.msra.mxu0 %v1065
    %1152 = vmatpush.msra.mxu0 %v1061
    %1153 = vmatpush.msra.mxu0 %v1057
    %1154 = vmatpush.msra.mxu0 %v1053
    %1155 = vmatpush.msra.mxu0 %v1049
    %1156 = vmatpush.msra.mxu0 %v1045
    %1157 = vmatpush.msra.mxu0 %v1041
    %1158 = vmatpush.msra.mxu0 %v1037
    %1159 = vmatpush.msra.mxu0 %v1033
    %1160 = vmatpush.msra.mxu0 %v1029
    %1161 = vmatpush.msra.mxu0 %v1025
    %1162 = vmatmul.f32.gmra.mxu0 %v1014
    %v1163 = vpop.f32.mrf.mxu0
    %v1164 = vadd.f32 0.0, %v1163
    %1165 = vdwg.mxu0
    %v1166 = vadd.f32 %v1018, %v1104
    %v1167 = vadd.f32 %v1019, %v1124
    %v1168 = vadd.f32 %v1020, %v1144
    %v1169 = vadd.f32 %v1021, %v1164
    %v1170 = vxor.u32 %v1166, 2147483648
    %v1171 = vmul.f32 %v1170, 1.442695
    %v1172 = vpow.pop %v1171
    %v1173 = vadd.f32 %v1172, 1.0
    %v1174 = vrcp.pop %v1173
    %v1175 = vmul.f32 %v1173, %v1174
    %v1176 = vsub.f32 1.0, %v1175
    %v1177 = vmul.f32 %v1174, %v1176
    %v1178 = vadd.f32 %v1174, %v1177
    %vm1179 = vweird.f32 %v1173
    %vm1180 = vweird.f32 %v1174
    %vm1181 = vmor %vm1179, %vm1180
    %v1182 = vsel %vm1181, %v1174, %v1178
    %v1183 = vand.u32 2147483647, %v1173
    %vm1184 = vcmp.eq.f32.partialorder %v1183, 8.507059e+37
    %v1185 = vand.u32 %v1173, 2147483648
    %v1186 = vor.u32 1.1754944e-38, %v1185
    %v1187 = vsel %vm1184, %v1186, %v1182
    %v1188 = vmul.f32 1.0, %v1187
    %v1189 = vxor.u32 %v1167, 2147483648
    %v1190 = vmul.f32 %v1189, 1.442695
    %v1191 = vpow.pop %v1190
    %v1192 = vadd.f32 %v1191, 1.0
    %v1193 = vrcp.pop %v1192
    %v1194 = vmul.f32 %v1192, %v1193
    %v1195 = vsub.f32 1.0, %v1194
    %v1196 = vmul.f32 %v1193, %v1195
    %v1197 = vadd.f32 %v1193, %v1196
    %vm1198 = vweird.f32 %v1192
    %vm1199 = vweird.f32 %v1193
    %vm1200 = vmor %vm1198, %vm1199
    %v1201 = vsel %vm1200, %v1193, %v1197
    %v1202 = vand.u32 2147483647, %v1192
    %vm1203 = vcmp.eq.f32.partialorder %v1202, 8.507059e+37
    %v1204 = vand.u32 %v1192, 2147483648
    %v1205 = vor.u32 1.1754944e-38, %v1204
    %v1206 = vsel %vm1203, %v1205, %v1201
    %v1207 = vmul.f32 1.0, %v1206
    %v1208 = vtanh.pop %v1168
    %v1209 = vxor.u32 %v1169, 2147483648
    %v1210 = vmul.f32 %v1209, 1.442695
    %v1211 = vpow.pop %v1210
    %v1212 = vadd.f32 %v1211, 1.0
    %v1213 = vrcp.pop %v1212
    %v1214 = vmul.f32 %v1212, %v1213
    %v1215 = vsub.f32 1.0, %v1214
    %v1216 = vmul.f32 %v1213, %v1215
    %v1217 = vadd.f32 %v1213, %v1216
    %vm1218 = vweird.f32 %v1212
    %vm1219 = vweird.f32 %v1213
    %vm1220 = vmor %vm1218, %vm1219
    %v1221 = vsel %vm1220, %v1213, %v1217
    %v1222 = vand.u32 2147483647, %v1212
    %vm1223 = vcmp.eq.f32.partialorder %v1222, 8.507059e+37
    %v1224 = vand.u32 %v1212, 2147483648
    %v1225 = vor.u32 1.1754944e-38, %v1224
    %v1226 = vsel %vm1223, %v1225, %v1221
    %v1227 = vmul.f32 1.0, %v1226
    %v1228 = vmul.f32 %v1207, %v1012
    %v1229 = vmul.f32 %v1188, %v1208
    %v1230 = vadd.f32 %v1228, %v1229
    %v1231 = vtanh.pop %v1230
    %v1232 = vmul.f32 %v1227, %v1231
    %s1233 = scalar_lea.vmem [#allocation3], 24
    %1234 = vst [vmem:[%s1233] sm:$0xff] %v1232
    %s1235 = scalar_lea.vmem [#allocation2], 128
    %v1236 = vld [vmem:[%s1235] sm:$0xff]
    %v1237 = vld [vmem:[%s1235 + $0x8] sm:$0xff]
    %v1238 = vld [vmem:[%s1235 + $0x10] sm:$0xff]
    %v1239 = vld [vmem:[%s1235 + $0x18] sm:$0xff]
    %v1240 = vld [vmem:[#allocation13] sm:$0xff]
    %v1241 = vld [vmem:[#allocation13 + $0x8] sm:$0xff]
    %v1242 = vld [vmem:[#allocation13 + $0x10] sm:$0xff]
    %v1243 = vld [vmem:[#allocation13 + $0x18] sm:$0xff]
    %v1244 = vld [vmem:[#allocation13 + $0x20] sm:$0xff]
    %v1245 = vld [vmem:[#allocation13 + $0x28] sm:$0xff]
    %v1246 = vld [vmem:[#allocation13 + $0x30] sm:$0xff]
    %v1247 = vld [vmem:[#allocation13 + $0x38] sm:$0xff]
    %v1248 = vld [vmem:[#allocation13 + $0x40] sm:$0xff]
    %v1249 = vld [vmem:[#allocation13 + $0x48] sm:$0xff]
    %v1250 = vld [vmem:[#allocation13 + $0x50] sm:$0xff]
    %v1251 = vld [vmem:[#allocation13 + $0x58] sm:$0xff]
    %v1252 = vld [vmem:[#allocation13 + $0x60] sm:$0xff]
    %v1253 = vld [vmem:[#allocation13 + $0x68] sm:$0xff]
    %v1254 = vld [vmem:[#allocation13 + $0x70] sm:$0xff]
    %v1255 = vld [vmem:[#allocation13 + $0x78] sm:$0xff]
    %v1256 = vld [vmem:[#allocation13 + $0x80] sm:$0xff]
    %v1257 = vld [vmem:[#allocation13 + $0x88] sm:$0xff]
    %v1258 = vld [vmem:[#allocation13 + $0x90] sm:$0xff]
    %v1259 = vld [vmem:[#allocation13 + $0x98] sm:$0xff]
    %v1260 = vld [vmem:[#allocation13 + $0xa0] sm:$0xff]
    %v1261 = vld [vmem:[#allocation13 + $0xa8] sm:$0xff]
    %v1262 = vld [vmem:[#allocation13 + $0xb0] sm:$0xff]
    %v1263 = vld [vmem:[#allocation13 + $0xb8] sm:$0xff]
    %v1264 = vld [vmem:[#allocation13 + $0xc0] sm:$0xff]
    %v1265 = vld [vmem:[#allocation13 + $0xc8] sm:$0xff]
    %v1266 = vld [vmem:[#allocation13 + $0xd0] sm:$0xff]
    %v1267 = vld [vmem:[#allocation13 + $0xd8] sm:$0xff]
    %v1268 = vld [vmem:[#allocation13 + $0xe0] sm:$0xff]
    %v1269 = vld [vmem:[#allocation13 + $0xe8] sm:$0xff]
    %v1270 = vld [vmem:[#allocation13 + $0xf0] sm:$0xff]
    %v1271 = vld [vmem:[#allocation13 + $0xf8] sm:$0xff]
    %v1272 = vld [vmem:[#allocation13 + $0x100] sm:$0xff]
    %v1273 = vld [vmem:[#allocation13 + $0x108] sm:$0xff]
    %v1274 = vld [vmem:[#allocation13 + $0x110] sm:$0xff]
    %v1275 = vld [vmem:[#allocation13 + $0x118] sm:$0xff]
    %v1276 = vld [vmem:[#allocation13 + $0x120] sm:$0xff]
    %v1277 = vld [vmem:[#allocation13 + $0x128] sm:$0xff]
    %v1278 = vld [vmem:[#allocation13 + $0x130] sm:$0xff]
    %v1279 = vld [vmem:[#allocation13 + $0x138] sm:$0xff]
    %v1280 = vld [vmem:[#allocation13 + $0x140] sm:$0xff]
    %v1281 = vld [vmem:[#allocation13 + $0x148] sm:$0xff]
    %v1282 = vld [vmem:[#allocation13 + $0x150] sm:$0xff]
    %v1283 = vld [vmem:[#allocation13 + $0x158] sm:$0xff]
    %v1284 = vld [vmem:[#allocation13 + $0x160] sm:$0xff]
    %v1285 = vld [vmem:[#allocation13 + $0x168] sm:$0xff]
    %v1286 = vld [vmem:[#allocation13 + $0x170] sm:$0xff]
    %v1287 = vld [vmem:[#allocation13 + $0x178] sm:$0xff]
    %v1288 = vld [vmem:[#allocation13 + $0x180] sm:$0xff]
    %v1289 = vld [vmem:[#allocation13 + $0x188] sm:$0xff]
    %v1290 = vld [vmem:[#allocation13 + $0x190] sm:$0xff]
    %v1291 = vld [vmem:[#allocation13 + $0x198] sm:$0xff]
    %v1292 = vld [vmem:[#allocation13 + $0x1a0] sm:$0xff]
    %v1293 = vld [vmem:[#allocation13 + $0x1a8] sm:$0xff]
    %v1294 = vld [vmem:[#allocation13 + $0x1b0] sm:$0xff]
    %v1295 = vld [vmem:[#allocation13 + $0x1b8] sm:$0xff]
    %v1296 = vld [vmem:[#allocation13 + $0x1c0] sm:$0xff]
    %v1297 = vld [vmem:[#allocation13 + $0x1c8] sm:$0xff]
    %v1298 = vld [vmem:[#allocation13 + $0x1d0] sm:$0xff]
    %v1299 = vld [vmem:[#allocation13 + $0x1d8] sm:$0xff]
    %v1300 = vld [vmem:[#allocation13 + $0x1e0] sm:$0xff]
    %v1301 = vld [vmem:[#allocation13 + $0x1e8] sm:$0xff]
    %v1302 = vld [vmem:[#allocation13 + $0x1f0] sm:$0xff]
    %v1303 = vld [vmem:[#allocation13 + $0x1f8] sm:$0xff]
    %1304 = vmatpush.msra.mxu0 %v1300
    %1305 = vmatpush.msra.mxu0 %v1296
    %1306 = vmatpush.msra.mxu0 %v1292
    %1307 = vmatpush.msra.mxu0 %v1288
    %1308 = vmatpush.msra.mxu0 %v1284
    %1309 = vmatpush.msra.mxu0 %v1280
    %1310 = vmatpush.msra.mxu0 %v1276
    %1311 = vmatpush.msra.mxu0 %v1272
    %1312 = vmatpush.msra.mxu0 %v1268
    %1313 = vmatpush.msra.mxu0 %v1264
    %1314 = vmatpush.msra.mxu0 %v1260
    %1315 = vmatpush.msra.mxu0 %v1256
    %1316 = vmatpush.msra.mxu0 %v1252
    %1317 = vmatpush.msra.mxu0 %v1248
    %1318 = vmatpush.msra.mxu0 %v1244
    %1319 = vmatpush.msra.mxu0 %v1240
    %1320 = vmatmul.f32.gmra.mxu0 %v1232
    %v1321 = vpop.f32.mrf.mxu0
    %v1322 = vadd.f32 0.0, %v1321
    %1323 = vdwg.mxu0
    %1324 = vmatpush.msra.mxu0 %v1301
    %1325 = vmatpush.msra.mxu0 %v1297
    %1326 = vmatpush.msra.mxu0 %v1293
    %1327 = vmatpush.msra.mxu0 %v1289
    %1328 = vmatpush.msra.mxu0 %v1285
    %1329 = vmatpush.msra.mxu0 %v1281
    %1330 = vmatpush.msra.mxu0 %v1277
    %1331 = vmatpush.msra.mxu0 %v1273
    %1332 = vmatpush.msra.mxu0 %v1269
    %1333 = vmatpush.msra.mxu0 %v1265
    %1334 = vmatpush.msra.mxu0 %v1261
    %1335 = vmatpush.msra.mxu0 %v1257
    %1336 = vmatpush.msra.mxu0 %v1253
    %1337 = vmatpush.msra.mxu0 %v1249
    %1338 = vmatpush.msra.mxu0 %v1245
    %1339 = vmatpush.msra.mxu0 %v1241
    %1340 = vmatmul.f32.gmra.mxu0 %v1232
    %v1341 = vpop.f32.mrf.mxu0
    %v1342 = vadd.f32 0.0, %v1341
    %1343 = vdwg.mxu0
    %1344 = vmatpush.msra.mxu0 %v1302
    %1345 = vmatpush.msra.mxu0 %v1298
    %1346 = vmatpush.msra.mxu0 %v1294
    %1347 = vmatpush.msra.mxu0 %v1290
    %1348 = vmatpush.msra.mxu0 %v1286
    %1349 = vmatpush.msra.mxu0 %v1282
    %1350 = vmatpush.msra.mxu0 %v1278
    %1351 = vmatpush.msra.mxu0 %v1274
    %1352 = vmatpush.msra.mxu0 %v1270
    %1353 = vmatpush.msra.mxu0 %v1266
    %1354 = vmatpush.msra.mxu0 %v1262
    %1355 = vmatpush.msra.mxu0 %v1258
    %1356 = vmatpush.msra.mxu0 %v1254
    %1357 = vmatpush.msra.mxu0 %v1250
    %1358 = vmatpush.msra.mxu0 %v1246
    %1359 = vmatpush.msra.mxu0 %v1242
    %1360 = vmatmul.f32.gmra.mxu0 %v1232
    %v1361 = vpop.f32.mrf.mxu0
    %v1362 = vadd.f32 0.0, %v1361
    %1363 = vdwg.mxu0
    %1364 = vmatpush.msra.mxu0 %v1303
    %1365 = vmatpush.msra.mxu0 %v1299
    %1366 = vmatpush.msra.mxu0 %v1295
    %1367 = vmatpush.msra.mxu0 %v1291
    %1368 = vmatpush.msra.mxu0 %v1287
    %1369 = vmatpush.msra.mxu0 %v1283
    %1370 = vmatpush.msra.mxu0 %v1279
    %1371 = vmatpush.msra.mxu0 %v1275
    %1372 = vmatpush.msra.mxu0 %v1271
    %1373 = vmatpush.msra.mxu0 %v1267
    %1374 = vmatpush.msra.mxu0 %v1263
    %1375 = vmatpush.msra.mxu0 %v1259
    %1376 = vmatpush.msra.mxu0 %v1255
    %1377 = vmatpush.msra.mxu0 %v1251
    %1378 = vmatpush.msra.mxu0 %v1247
    %1379 = vmatpush.msra.mxu0 %v1243
    %1380 = vmatmul.f32.gmra.mxu0 %v1232
    %v1381 = vpop.f32.mrf.mxu0
    %v1382 = vadd.f32 0.0, %v1381
    %1383 = vdwg.mxu0
    %v1384 = vadd.f32 %v1236, %v1322
    %v1385 = vadd.f32 %v1237, %v1342
    %v1386 = vadd.f32 %v1238, %v1362
    %v1387 = vadd.f32 %v1239, %v1382
    %v1388 = vxor.u32 %v1384, 2147483648
    %v1389 = vmul.f32 %v1388, 1.442695
    %v1390 = vpow.pop %v1389
    %v1391 = vadd.f32 %v1390, 1.0
    %v1392 = vrcp.pop %v1391
    %v1393 = vmul.f32 %v1391, %v1392
    %v1394 = vsub.f32 1.0, %v1393
    %v1395 = vmul.f32 %v1392, %v1394
    %v1396 = vadd.f32 %v1392, %v1395
    %vm1397 = vweird.f32 %v1391
    %vm1398 = vweird.f32 %v1392
    %vm1399 = vmor %vm1397, %vm1398
    %v1400 = vsel %vm1399, %v1392, %v1396
    %v1401 = vand.u32 2147483647, %v1391
    %vm1402 = vcmp.eq.f32.partialorder %v1401, 8.507059e+37
    %v1403 = vand.u32 %v1391, 2147483648
    %v1404 = vor.u32 1.1754944e-38, %v1403
    %v1405 = vsel %vm1402, %v1404, %v1400
    %v1406 = vmul.f32 1.0, %v1405
    %v1407 = vxor.u32 %v1385, 2147483648
    %v1408 = vmul.f32 %v1407, 1.442695
    %v1409 = vpow.pop %v1408
    %v1410 = vadd.f32 %v1409, 1.0
    %v1411 = vrcp.pop %v1410
    %v1412 = vmul.f32 %v1410, %v1411
    %v1413 = vsub.f32 1.0, %v1412
    %v1414 = vmul.f32 %v1411, %v1413
    %v1415 = vadd.f32 %v1411, %v1414
    %vm1416 = vweird.f32 %v1410
    %vm1417 = vweird.f32 %v1411
    %vm1418 = vmor %vm1416, %vm1417
    %v1419 = vsel %vm1418, %v1411, %v1415
    %v1420 = vand.u32 2147483647, %v1410
    %vm1421 = vcmp.eq.f32.partialorder %v1420, 8.507059e+37
    %v1422 = vand.u32 %v1410, 2147483648
    %v1423 = vor.u32 1.1754944e-38, %v1422
    %v1424 = vsel %vm1421, %v1423, %v1419
    %v1425 = vmul.f32 1.0, %v1424
    %v1426 = vtanh.pop %v1386
    %v1427 = vxor.u32 %v1387, 2147483648
    %v1428 = vmul.f32 %v1427, 1.442695
    %v1429 = vpow.pop %v1428
    %v1430 = vadd.f32 %v1429, 1.0
    %v1431 = vrcp.pop %v1430
    %v1432 = vmul.f32 %v1430, %v1431
    %v1433 = vsub.f32 1.0, %v1432
    %v1434 = vmul.f32 %v1431, %v1433
    %v1435 = vadd.f32 %v1431, %v1434
    %vm1436 = vweird.f32 %v1430
    %vm1437 = vweird.f32 %v1431
    %vm1438 = vmor %vm1436, %vm1437
    %v1439 = vsel %vm1438, %v1431, %v1435
    %v1440 = vand.u32 2147483647, %v1430
    %vm1441 = vcmp.eq.f32.partialorder %v1440, 8.507059e+37
    %v1442 = vand.u32 %v1430, 2147483648
    %v1443 = vor.u32 1.1754944e-38, %v1442
    %v1444 = vsel %vm1441, %v1443, %v1439
    %v1445 = vmul.f32 1.0, %v1444
    %v1446 = vmul.f32 %v1425, %v1230
    %v1447 = vmul.f32 %v1406, %v1426
    %v1448 = vadd.f32 %v1446, %v1447
    %v1449 = vtanh.pop %v1448
    %v1450 = vmul.f32 %v1445, %v1449
    %s1451 = scalar_lea.vmem [#allocation3], 32
    %1452 = vst [vmem:[%s1451] sm:$0xff] %v1450
    %s1453 = scalar_lea.vmem [#allocation2], 160
    %v1454 = vld [vmem:[%s1453] sm:$0xff]
    %v1455 = vld [vmem:[%s1453 + $0x8] sm:$0xff]
    %v1456 = vld [vmem:[%s1453 + $0x10] sm:$0xff]
    %v1457 = vld [vmem:[%s1453 + $0x18] sm:$0xff]
    %v1458 = vld [vmem:[#allocation13] sm:$0xff]
    %v1459 = vld [vmem:[#allocation13 + $0x8] sm:$0xff]
    %v1460 = vld [vmem:[#allocation13 + $0x10] sm:$0xff]
    %v1461 = vld [vmem:[#allocation13 + $0x18] sm:$0xff]
    %v1462 = vld [vmem:[#allocation13 + $0x20] sm:$0xff]
    %v1463 = vld [vmem:[#allocation13 + $0x28] sm:$0xff]
    %v1464 = vld [vmem:[#allocation13 + $0x30] sm:$0xff]
    %v1465 = vld [vmem:[#allocation13 + $0x38] sm:$0xff]
    %v1466 = vld [vmem:[#allocation13 + $0x40] sm:$0xff]
    %v1467 = vld [vmem:[#allocation13 + $0x48] sm:$0xff]
    %v1468 = vld [vmem:[#allocation13 + $0x50] sm:$0xff]
    %v1469 = vld [vmem:[#allocation13 + $0x58] sm:$0xff]
    %v1470 = vld [vmem:[#allocation13 + $0x60] sm:$0xff]
    %v1471 = vld [vmem:[#allocation13 + $0x68] sm:$0xff]
    %v1472 = vld [vmem:[#allocation13 + $0x70] sm:$0xff]
    %v1473 = vld [vmem:[#allocation13 + $0x78] sm:$0xff]
    %v1474 = vld [vmem:[#allocation13 + $0x80] sm:$0xff]
    %v1475 = vld [vmem:[#allocation13 + $0x88] sm:$0xff]
    %v1476 = vld [vmem:[#allocation13 + $0x90] sm:$0xff]
    %v1477 = vld [vmem:[#allocation13 + $0x98] sm:$0xff]
    %v1478 = vld [vmem:[#allocation13 + $0xa0] sm:$0xff]
    %v1479 = vld [vmem:[#allocation13 + $0xa8] sm:$0xff]
    %v1480 = vld [vmem:[#allocation13 + $0xb0] sm:$0xff]
    %v1481 = vld [vmem:[#allocation13 + $0xb8] sm:$0xff]
    %v1482 = vld [vmem:[#allocation13 + $0xc0] sm:$0xff]
    %v1483 = vld [vmem:[#allocation13 + $0xc8] sm:$0xff]
    %v1484 = vld [vmem:[#allocation13 + $0xd0] sm:$0xff]
    %v1485 = vld [vmem:[#allocation13 + $0xd8] sm:$0xff]
    %v1486 = vld [vmem:[#allocation13 + $0xe0] sm:$0xff]
    %v1487 = vld [vmem:[#allocation13 + $0xe8] sm:$0xff]
    %v1488 = vld [vmem:[#allocation13 + $0xf0] sm:$0xff]
    %v1489 = vld [vmem:[#allocation13 + $0xf8] sm:$0xff]
    %v1490 = vld [vmem:[#allocation13 + $0x100] sm:$0xff]
    %v1491 = vld [vmem:[#allocation13 + $0x108] sm:$0xff]
    %v1492 = vld [vmem:[#allocation13 + $0x110] sm:$0xff]
    %v1493 = vld [vmem:[#allocation13 + $0x118] sm:$0xff]
    %v1494 = vld [vmem:[#allocation13 + $0x120] sm:$0xff]
    %v1495 = vld [vmem:[#allocation13 + $0x128] sm:$0xff]
    %v1496 = vld [vmem:[#allocation13 + $0x130] sm:$0xff]
    %v1497 = vld [vmem:[#allocation13 + $0x138] sm:$0xff]
    %v1498 = vld [vmem:[#allocation13 + $0x140] sm:$0xff]
    %v1499 = vld [vmem:[#allocation13 + $0x148] sm:$0xff]
    %v1500 = vld [vmem:[#allocation13 + $0x150] sm:$0xff]
    %v1501 = vld [vmem:[#allocation13 + $0x158] sm:$0xff]
    %v1502 = vld [vmem:[#allocation13 + $0x160] sm:$0xff]
    %v1503 = vld [vmem:[#allocation13 + $0x168] sm:$0xff]
    %v1504 = vld [vmem:[#allocation13 + $0x170] sm:$0xff]
    %v1505 = vld [vmem:[#allocation13 + $0x178] sm:$0xff]
    %v1506 = vld [vmem:[#allocation13 + $0x180] sm:$0xff]
    %v1507 = vld [vmem:[#allocation13 + $0x188] sm:$0xff]
    %v1508 = vld [vmem:[#allocation13 + $0x190] sm:$0xff]
    %v1509 = vld [vmem:[#allocation13 + $0x198] sm:$0xff]
    %v1510 = vld [vmem:[#allocation13 + $0x1a0] sm:$0xff]
    %v1511 = vld [vmem:[#allocation13 + $0x1a8] sm:$0xff]
    %v1512 = vld [vmem:[#allocation13 + $0x1b0] sm:$0xff]
    %v1513 = vld [vmem:[#allocation13 + $0x1b8] sm:$0xff]
    %v1514 = vld [vmem:[#allocation13 + $0x1c0] sm:$0xff]
    %v1515 = vld [vmem:[#allocation13 + $0x1c8] sm:$0xff]
    %v1516 = vld [vmem:[#allocation13 + $0x1d0] sm:$0xff]
    %v1517 = vld [vmem:[#allocation13 + $0x1d8] sm:$0xff]
    %v1518 = vld [vmem:[#allocation13 + $0x1e0] sm:$0xff]
    %v1519 = vld [vmem:[#allocation13 + $0x1e8] sm:$0xff]
    %v1520 = vld [vmem:[#allocation13 + $0x1f0] sm:$0xff]
    %v1521 = vld [vmem:[#allocation13 + $0x1f8] sm:$0xff]
    %1522 = vmatpush.msra.mxu0 %v1518
    %1523 = vmatpush.msra.mxu0 %v1514
    %1524 = vmatpush.msra.mxu0 %v1510
    %1525 = vmatpush.msra.mxu0 %v1506
    %1526 = vmatpush.msra.mxu0 %v1502
    %1527 = vmatpush.msra.mxu0 %v1498
    %1528 = vmatpush.msra.mxu0 %v1494
    %1529 = vmatpush.msra.mxu0 %v1490
    %1530 = vmatpush.msra.mxu0 %v1486
    %1531 = vmatpush.msra.mxu0 %v1482
    %1532 = vmatpush.msra.mxu0 %v1478
    %1533 = vmatpush.msra.mxu0 %v1474
    %1534 = vmatpush.msra.mxu0 %v1470
    %1535 = vmatpush.msra.mxu0 %v1466
    %1536 = vmatpush.msra.mxu0 %v1462
    %1537 = vmatpush.msra.mxu0 %v1458
    %1538 = vmatmul.f32.gmra.mxu0 %v1450
    %v1539 = vpop.f32.mrf.mxu0
    %v1540 = vadd.f32 0.0, %v1539
    %1541 = vdwg.mxu0
    %1542 = vmatpush.msra.mxu0 %v1519
    %1543 = vmatpush.msra.mxu0 %v1515
    %1544 = vmatpush.msra.mxu0 %v1511
    %1545 = vmatpush.msra.mxu0 %v1507
    %1546 = vmatpush.msra.mxu0 %v1503
    %1547 = vmatpush.msra.mxu0 %v1499
    %1548 = vmatpush.msra.mxu0 %v1495
    %1549 = vmatpush.msra.mxu0 %v1491
    %1550 = vmatpush.msra.mxu0 %v1487
    %1551 = vmatpush.msra.mxu0 %v1483
    %1552 = vmatpush.msra.mxu0 %v1479
    %1553 = vmatpush.msra.mxu0 %v1475
    %1554 = vmatpush.msra.mxu0 %v1471
    %1555 = vmatpush.msra.mxu0 %v1467
    %1556 = vmatpush.msra.mxu0 %v1463
    %1557 = vmatpush.msra.mxu0 %v1459
    %1558 = vmatmul.f32.gmra.mxu0 %v1450
    %v1559 = vpop.f32.mrf.mxu0
    %v1560 = vadd.f32 0.0, %v1559
    %1561 = vdwg.mxu0
    %1562 = vmatpush.msra.mxu0 %v1520
    %1563 = vmatpush.msra.mxu0 %v1516
    %1564 = vmatpush.msra.mxu0 %v1512
    %1565 = vmatpush.msra.mxu0 %v1508
    %1566 = vmatpush.msra.mxu0 %v1504
    %1567 = vmatpush.msra.mxu0 %v1500
    %1568 = vmatpush.msra.mxu0 %v1496
    %1569 = vmatpush.msra.mxu0 %v1492
    %1570 = vmatpush.msra.mxu0 %v1488
    %1571 = vmatpush.msra.mxu0 %v1484
    %1572 = vmatpush.msra.mxu0 %v1480
    %1573 = vmatpush.msra.mxu0 %v1476
    %1574 = vmatpush.msra.mxu0 %v1472
    %1575 = vmatpush.msra.mxu0 %v1468
    %1576 = vmatpush.msra.mxu0 %v1464
    %1577 = vmatpush.msra.mxu0 %v1460
    %1578 = vmatmul.f32.gmra.mxu0 %v1450
    %v1579 = vpop.f32.mrf.mxu0
    %v1580 = vadd.f32 0.0, %v1579
    %1581 = vdwg.mxu0
    %1582 = vmatpush.msra.mxu0 %v1521
    %1583 = vmatpush.msra.mxu0 %v1517
    %1584 = vmatpush.msra.mxu0 %v1513
    %1585 = vmatpush.msra.mxu0 %v1509
    %1586 = vmatpush.msra.mxu0 %v1505
    %1587 = vmatpush.msra.mxu0 %v1501
    %1588 = vmatpush.msra.mxu0 %v1497
    %1589 = vmatpush.msra.mxu0 %v1493
    %1590 = vmatpush.msra.mxu0 %v1489
    %1591 = vmatpush.msra.mxu0 %v1485
    %1592 = vmatpush.msra.mxu0 %v1481
    %1593 = vmatpush.msra.mxu0 %v1477
    %1594 = vmatpush.msra.mxu0 %v1473
    %1595 = vmatpush.msra.mxu0 %v1469
    %1596 = vmatpush.msra.mxu0 %v1465
    %1597 = vmatpush.msra.mxu0 %v1461
    %1598 = vmatmul.f32.gmra.mxu0 %v1450
    %v1599 = vpop.f32.mrf.mxu0
    %v1600 = vadd.f32 0.0, %v1599
    %1601 = vdwg.mxu0
    %v1602 = vadd.f32 %v1454, %v1540
    %v1603 = vadd.f32 %v1455, %v1560
    %v1604 = vadd.f32 %v1456, %v1580
    %v1605 = vadd.f32 %v1457, %v1600
    %v1606 = vxor.u32 %v1602, 2147483648
    %v1607 = vmul.f32 %v1606, 1.442695
    %v1608 = vpow.pop %v1607
    %v1609 = vadd.f32 %v1608, 1.0
    %v1610 = vrcp.pop %v1609
    %v1611 = vmul.f32 %v1609, %v1610
    %v1612 = vsub.f32 1.0, %v1611
    %v1613 = vmul.f32 %v1610, %v1612
    %v1614 = vadd.f32 %v1610, %v1613
    %vm1615 = vweird.f32 %v1609
    %vm1616 = vweird.f32 %v1610
    %vm1617 = vmor %vm1615, %vm1616
    %v1618 = vsel %vm1617, %v1610, %v1614
    %v1619 = vand.u32 2147483647, %v1609
    %vm1620 = vcmp.eq.f32.partialorder %v1619, 8.507059e+37
    %v1621 = vand.u32 %v1609, 2147483648
    %v1622 = vor.u32 1.1754944e-38, %v1621
    %v1623 = vsel %vm1620, %v1622, %v1618
    %v1624 = vmul.f32 1.0, %v1623
    %v1625 = vxor.u32 %v1603, 2147483648
    %v1626 = vmul.f32 %v1625, 1.442695
    %v1627 = vpow.pop %v1626
    %v1628 = vadd.f32 %v1627, 1.0
    %v1629 = vrcp.pop %v1628
    %v1630 = vmul.f32 %v1628, %v1629
    %v1631 = vsub.f32 1.0, %v1630
    %v1632 = vmul.f32 %v1629, %v1631
    %v1633 = vadd.f32 %v1629, %v1632
    %vm1634 = vweird.f32 %v1628
    %vm1635 = vweird.f32 %v1629
    %vm1636 = vmor %vm1634, %vm1635
    %v1637 = vsel %vm1636, %v1629, %v1633
    %v1638 = vand.u32 2147483647, %v1628
    %vm1639 = vcmp.eq.f32.partialorder %v1638, 8.507059e+37
    %v1640 = vand.u32 %v1628, 2147483648
    %v1641 = vor.u32 1.1754944e-38, %v1640
    %v1642 = vsel %vm1639, %v1641, %v1637
    %v1643 = vmul.f32 1.0, %v1642
    %v1644 = vtanh.pop %v1604
    %v1645 = vxor.u32 %v1605, 2147483648
    %v1646 = vmul.f32 %v1645, 1.442695
    %v1647 = vpow.pop %v1646
    %v1648 = vadd.f32 %v1647, 1.0
    %v1649 = vrcp.pop %v1648
    %v1650 = vmul.f32 %v1648, %v1649
    %v1651 = vsub.f32 1.0, %v1650
    %v1652 = vmul.f32 %v1649, %v1651
    %v1653 = vadd.f32 %v1649, %v1652
    %vm1654 = vweird.f32 %v1648
    %vm1655 = vweird.f32 %v1649
    %vm1656 = vmor %vm1654, %vm1655
    %v1657 = vsel %vm1656, %v1649, %v1653
    %v1658 = vand.u32 2147483647, %v1648
    %vm1659 = vcmp.eq.f32.partialorder %v1658, 8.507059e+37
    %v1660 = vand.u32 %v1648, 2147483648
    %v1661 = vor.u32 1.1754944e-38, %v1660
    %v1662 = vsel %vm1659, %v1661, %v1657
    %v1663 = vmul.f32 1.0, %v1662
    %v1664 = vmul.f32 %v1643, %v1448
    %v1665 = vmul.f32 %v1624, %v1644
    %v1666 = vadd.f32 %v1664, %v1665
    %v1667 = vtanh.pop %v1666
    %v1668 = vmul.f32 %v1663, %v1667
    %s1669 = scalar_lea.vmem [#allocation3], 40
    %1670 = vst [vmem:[%s1669] sm:$0xff] %v1668
    %s1671 = scalar_lea.vmem [#allocation2], 192
    %v1672 = vld [vmem:[%s1671] sm:$0xff]
    %v1673 = vld [vmem:[%s1671 + $0x8] sm:$0xff]
    %v1674 = vld [vmem:[%s1671 + $0x10] sm:$0xff]
    %v1675 = vld [vmem:[%s1671 + $0x18] sm:$0xff]
    %v1676 = vld [vmem:[#allocation13] sm:$0xff]
    %v1677 = vld [vmem:[#allocation13 + $0x8] sm:$0xff]
    %v1678 = vld [vmem:[#allocation13 + $0x10] sm:$0xff]
    %v1679 = vld [vmem:[#allocation13 + $0x18] sm:$0xff]
    %v1680 = vld [vmem:[#allocation13 + $0x20] sm:$0xff]
    %v1681 = vld [vmem:[#allocation13 + $0x28] sm:$0xff]
    %v1682 = vld [vmem:[#allocation13 + $0x30] sm:$0xff]
    %v1683 = vld [vmem:[#allocation13 + $0x38] sm:$0xff]
    %v1684 = vld [vmem:[#allocation13 + $0x40] sm:$0xff]
    %v1685 = vld [vmem:[#allocation13 + $0x48] sm:$0xff]
    %v1686 = vld [vmem:[#allocation13 + $0x50] sm:$0xff]
    %v1687 = vld [vmem:[#allocation13 + $0x58] sm:$0xff]
    %v1688 = vld [vmem:[#allocation13 + $0x60] sm:$0xff]
    %v1689 = vld [vmem:[#allocation13 + $0x68] sm:$0xff]
    %v1690 = vld [vmem:[#allocation13 + $0x70] sm:$0xff]
    %v1691 = vld [vmem:[#allocation13 + $0x78] sm:$0xff]
    %v1692 = vld [vmem:[#allocation13 + $0x80] sm:$0xff]
    %v1693 = vld [vmem:[#allocation13 + $0x88] sm:$0xff]
    %v1694 = vld [vmem:[#allocation13 + $0x90] sm:$0xff]
    %v1695 = vld [vmem:[#allocation13 + $0x98] sm:$0xff]
    %v1696 = vld [vmem:[#allocation13 + $0xa0] sm:$0xff]
    %v1697 = vld [vmem:[#allocation13 + $0xa8] sm:$0xff]
    %v1698 = vld [vmem:[#allocation13 + $0xb0] sm:$0xff]
    %v1699 = vld [vmem:[#allocation13 + $0xb8] sm:$0xff]
    %v1700 = vld [vmem:[#allocation13 + $0xc0] sm:$0xff]
    %v1701 = vld [vmem:[#allocation13 + $0xc8] sm:$0xff]
    %v1702 = vld [vmem:[#allocation13 + $0xd0] sm:$0xff]
    %v1703 = vld [vmem:[#allocation13 + $0xd8] sm:$0xff]
    %v1704 = vld [vmem:[#allocation13 + $0xe0] sm:$0xff]
    %v1705 = vld [vmem:[#allocation13 + $0xe8] sm:$0xff]
    %v1706 = vld [vmem:[#allocation13 + $0xf0] sm:$0xff]
    %v1707 = vld [vmem:[#allocation13 + $0xf8] sm:$0xff]
    %v1708 = vld [vmem:[#allocation13 + $0x100] sm:$0xff]
    %v1709 = vld [vmem:[#allocation13 + $0x108] sm:$0xff]
    %v1710 = vld [vmem:[#allocation13 + $0x110] sm:$0xff]
    %v1711 = vld [vmem:[#allocation13 + $0x118] sm:$0xff]
    %v1712 = vld [vmem:[#allocation13 + $0x120] sm:$0xff]
    %v1713 = vld [vmem:[#allocation13 + $0x128] sm:$0xff]
    %v1714 = vld [vmem:[#allocation13 + $0x130] sm:$0xff]
    %v1715 = vld [vmem:[#allocation13 + $0x138] sm:$0xff]
    %v1716 = vld [vmem:[#allocation13 + $0x140] sm:$0xff]
    %v1717 = vld [vmem:[#allocation13 + $0x148] sm:$0xff]
    %v1718 = vld [vmem:[#allocation13 + $0x150] sm:$0xff]
    %v1719 = vld [vmem:[#allocation13 + $0x158] sm:$0xff]
    %v1720 = vld [vmem:[#allocation13 + $0x160] sm:$0xff]
    %v1721 = vld [vmem:[#allocation13 + $0x168] sm:$0xff]
    %v1722 = vld [vmem:[#allocation13 + $0x170] sm:$0xff]
    %v1723 = vld [vmem:[#allocation13 + $0x178] sm:$0xff]
    %v1724 = vld [vmem:[#allocation13 + $0x180] sm:$0xff]
    %v1725 = vld [vmem:[#allocation13 + $0x188] sm:$0xff]
    %v1726 = vld [vmem:[#allocation13 + $0x190] sm:$0xff]
    %v1727 = vld [vmem:[#allocation13 + $0x198] sm:$0xff]
    %v1728 = vld [vmem:[#allocation13 + $0x1a0] sm:$0xff]
    %v1729 = vld [vmem:[#allocation13 + $0x1a8] sm:$0xff]
    %v1730 = vld [vmem:[#allocation13 + $0x1b0] sm:$0xff]
    %v1731 = vld [vmem:[#allocation13 + $0x1b8] sm:$0xff]
    %v1732 = vld [vmem:[#allocation13 + $0x1c0] sm:$0xff]
    %v1733 = vld [vmem:[#allocation13 + $0x1c8] sm:$0xff]
    %v1734 = vld [vmem:[#allocation13 + $0x1d0] sm:$0xff]
    %v1735 = vld [vmem:[#allocation13 + $0x1d8] sm:$0xff]
    %v1736 = vld [vmem:[#allocation13 + $0x1e0] sm:$0xff]
    %v1737 = vld [vmem:[#allocation13 + $0x1e8] sm:$0xff]
    %v1738 = vld [vmem:[#allocation13 + $0x1f0] sm:$0xff]
    %v1739 = vld [vmem:[#allocation13 + $0x1f8] sm:$0xff]
    %1740 = vmatpush.msra.mxu0 %v1736
    %1741 = vmatpush.msra.mxu0 %v1732
    %1742 = vmatpush.msra.mxu0 %v1728
    %1743 = vmatpush.msra.mxu0 %v1724
    %1744 = vmatpush.msra.mxu0 %v1720
    %1745 = vmatpush.msra.mxu0 %v1716
    %1746 = vmatpush.msra.mxu0 %v1712
    %1747 = vmatpush.msra.mxu0 %v1708
    %1748 = vmatpush.msra.mxu0 %v1704
    %1749 = vmatpush.msra.mxu0 %v1700
    %1750 = vmatpush.msra.mxu0 %v1696
    %1751 = vmatpush.msra.mxu0 %v1692
    %1752 = vmatpush.msra.mxu0 %v1688
    %1753 = vmatpush.msra.mxu0 %v1684
    %1754 = vmatpush.msra.mxu0 %v1680
    %1755 = vmatpush.msra.mxu0 %v1676
    %1756 = vmatmul.f32.gmra.mxu0 %v1668
    %v1757 = vpop.f32.mrf.mxu0
    %v1758 = vadd.f32 0.0, %v1757
    %1759 = vdwg.mxu0
    %1760 = vmatpush.msra.mxu0 %v1737
    %1761 = vmatpush.msra.mxu0 %v1733
    %1762 = vmatpush.msra.mxu0 %v1729
    %1763 = vmatpush.msra.mxu0 %v1725
    %1764 = vmatpush.msra.mxu0 %v1721
    %1765 = vmatpush.msra.mxu0 %v1717
    %1766 = vmatpush.msra.mxu0 %v1713
    %1767 = vmatpush.msra.mxu0 %v1709
    %1768 = vmatpush.msra.mxu0 %v1705
    %1769 = vmatpush.msra.mxu0 %v1701
    %1770 = vmatpush.msra.mxu0 %v1697
    %1771 = vmatpush.msra.mxu0 %v1693
    %1772 = vmatpush.msra.mxu0 %v1689
    %1773 = vmatpush.msra.mxu0 %v1685
    %1774 = vmatpush.msra.mxu0 %v1681
    %1775 = vmatpush.msra.mxu0 %v1677
    %1776 = vmatmul.f32.gmra.mxu0 %v1668
    %v1777 = vpop.f32.mrf.mxu0
    %v1778 = vadd.f32 0.0, %v1777
    %1779 = vdwg.mxu0
    %1780 = vmatpush.msra.mxu0 %v1738
    %1781 = vmatpush.msra.mxu0 %v1734
    %1782 = vmatpush.msra.mxu0 %v1730
    %1783 = vmatpush.msra.mxu0 %v1726
    %1784 = vmatpush.msra.mxu0 %v1722
    %1785 = vmatpush.msra.mxu0 %v1718
    %1786 = vmatpush.msra.mxu0 %v1714
    %1787 = vmatpush.msra.mxu0 %v1710
    %1788 = vmatpush.msra.mxu0 %v1706
    %1789 = vmatpush.msra.mxu0 %v1702
    %1790 = vmatpush.msra.mxu0 %v1698
    %1791 = vmatpush.msra.mxu0 %v1694
    %1792 = vmatpush.msra.mxu0 %v1690
    %1793 = vmatpush.msra.mxu0 %v1686
    %1794 = vmatpush.msra.mxu0 %v1682
    %1795 = vmatpush.msra.mxu0 %v1678
    %1796 = vmatmul.f32.gmra.mxu0 %v1668
    %v1797 = vpop.f32.mrf.mxu0
    %v1798 = vadd.f32 0.0, %v1797
    %1799 = vdwg.mxu0
    %1800 = vmatpush.msra.mxu0 %v1739
    %1801 = vmatpush.msra.mxu0 %v1735
    %1802 = vmatpush.msra.mxu0 %v1731
    %1803 = vmatpush.msra.mxu0 %v1727
    %1804 = vmatpush.msra.mxu0 %v1723
    %1805 = vmatpush.msra.mxu0 %v1719
    %1806 = vmatpush.msra.mxu0 %v1715
    %1807 = vmatpush.msra.mxu0 %v1711
    %1808 = vmatpush.msra.mxu0 %v1707
    %1809 = vmatpush.msra.mxu0 %v1703
    %1810 = vmatpush.msra.mxu0 %v1699
    %1811 = vmatpush.msra.mxu0 %v1695
    %1812 = vmatpush.msra.mxu0 %v1691
    %1813 = vmatpush.msra.mxu0 %v1687
    %1814 = vmatpush.msra.mxu0 %v1683
    %1815 = vmatpush.msra.mxu0 %v1679
    %1816 = vmatmul.f32.gmra.mxu0 %v1668
    %v1817 = vpop.f32.mrf.mxu0
    %v1818 = vadd.f32 0.0, %v1817
    %1819 = vdwg.mxu0
    %v1820 = vadd.f32 %v1672, %v1758
    %v1821 = vadd.f32 %v1673, %v1778
    %v1822 = vadd.f32 %v1674, %v1798
    %v1823 = vadd.f32 %v1675, %v1818
    %v1824 = vxor.u32 %v1820, 2147483648
    %v1825 = vmul.f32 %v1824, 1.442695
    %v1826 = vpow.pop %v1825
    %v1827 = vadd.f32 %v1826, 1.0
    %v1828 = vrcp.pop %v1827
    %v1829 = vmul.f32 %v1827, %v1828
    %v1830 = vsub.f32 1.0, %v1829
    %v1831 = vmul.f32 %v1828, %v1830
    %v1832 = vadd.f32 %v1828, %v1831
    %vm1833 = vweird.f32 %v1827
    %vm1834 = vweird.f32 %v1828
    %vm1835 = vmor %vm1833, %vm1834
    %v1836 = vsel %vm1835, %v1828, %v1832
    %v1837 = vand.u32 2147483647, %v1827
    %vm1838 = vcmp.eq.f32.partialorder %v1837, 8.507059e+37
    %v1839 = vand.u32 %v1827, 2147483648
    %v1840 = vor.u32 1.1754944e-38, %v1839
    %v1841 = vsel %vm1838, %v1840, %v1836
    %v1842 = vmul.f32 1.0, %v1841
    %v1843 = vxor.u32 %v1821, 2147483648
    %v1844 = vmul.f32 %v1843, 1.442695
    %v1845 = vpow.pop %v1844
    %v1846 = vadd.f32 %v1845, 1.0
    %v1847 = vrcp.pop %v1846
    %v1848 = vmul.f32 %v1846, %v1847
    %v1849 = vsub.f32 1.0, %v1848
    %v1850 = vmul.f32 %v1847, %v1849
    %v1851 = vadd.f32 %v1847, %v1850
    %vm1852 = vweird.f32 %v1846
    %vm1853 = vweird.f32 %v1847
    %vm1854 = vmor %vm1852, %vm1853
    %v1855 = vsel %vm1854, %v1847, %v1851
    %v1856 = vand.u32 2147483647, %v1846
    %vm1857 = vcmp.eq.f32.partialorder %v1856, 8.507059e+37
    %v1858 = vand.u32 %v1846, 2147483648
    %v1859 = vor.u32 1.1754944e-38, %v1858
    %v1860 = vsel %vm1857, %v1859, %v1855
    %v1861 = vmul.f32 1.0, %v1860
    %v1862 = vtanh.pop %v1822
    %v1863 = vxor.u32 %v1823, 2147483648
    %v1864 = vmul.f32 %v1863, 1.442695
    %v1865 = vpow.pop %v1864
    %v1866 = vadd.f32 %v1865, 1.0
    %v1867 = vrcp.pop %v1866
    %v1868 = vmul.f32 %v1866, %v1867
    %v1869 = vsub.f32 1.0, %v1868
    %v1870 = vmul.f32 %v1867, %v1869
    %v1871 = vadd.f32 %v1867, %v1870
    %vm1872 = vweird.f32 %v1866
    %vm1873 = vweird.f32 %v1867
    %vm1874 = vmor %vm1872, %vm1873
    %v1875 = vsel %vm1874, %v1867, %v1871
    %v1876 = vand.u32 2147483647, %v1866
    %vm1877 = vcmp.eq.f32.partialorder %v1876, 8.507059e+37
    %v1878 = vand.u32 %v1866, 2147483648
    %v1879 = vor.u32 1.1754944e-38, %v1878
    %v1880 = vsel %vm1877, %v1879, %v1875
    %v1881 = vmul.f32 1.0, %v1880
    %v1882 = vmul.f32 %v1861, %v1666
    %v1883 = vmul.f32 %v1842, %v1862
    %v1884 = vadd.f32 %v1882, %v1883
    %v1885 = vtanh.pop %v1884
    %v1886 = vmul.f32 %v1881, %v1885
    %s1887 = scalar_lea.vmem [#allocation3], 48
    %1888 = vst [vmem:[%s1887] sm:$0xff] %v1886
    %s1889 = scalar_lea.vmem [#allocation2], 224
    %v1890 = vld [vmem:[%s1889] sm:$0xff]
    %v1891 = vld [vmem:[%s1889 + $0x8] sm:$0xff]
    %v1892 = vld [vmem:[%s1889 + $0x10] sm:$0xff]
    %v1893 = vld [vmem:[%s1889 + $0x18] sm:$0xff]
    %v1894 = vld [vmem:[#allocation13] sm:$0xff]
    %v1895 = vld [vmem:[#allocation13 + $0x8] sm:$0xff]
    %v1896 = vld [vmem:[#allocation13 + $0x10] sm:$0xff]
    %v1897 = vld [vmem:[#allocation13 + $0x18] sm:$0xff]
    %v1898 = vld [vmem:[#allocation13 + $0x20] sm:$0xff]
    %v1899 = vld [vmem:[#allocation13 + $0x28] sm:$0xff]
    %v1900 = vld [vmem:[#allocation13 + $0x30] sm:$0xff]
    %v1901 = vld [vmem:[#allocation13 + $0x38] sm:$0xff]
    %v1902 = vld [vmem:[#allocation13 + $0x40] sm:$0xff]
    %v1903 = vld [vmem:[#allocation13 + $0x48] sm:$0xff]
    %v1904 = vld [vmem:[#allocation13 + $0x50] sm:$0xff]
    %v1905 = vld [vmem:[#allocation13 + $0x58] sm:$0xff]
    %v1906 = vld [vmem:[#allocation13 + $0x60] sm:$0xff]
    %v1907 = vld [vmem:[#allocation13 + $0x68] sm:$0xff]
    %v1908 = vld [vmem:[#allocation13 + $0x70] sm:$0xff]
    %v1909 = vld [vmem:[#allocation13 + $0x78] sm:$0xff]
    %v1910 = vld [vmem:[#allocation13 + $0x80] sm:$0xff]
    %v1911 = vld [vmem:[#allocation13 + $0x88] sm:$0xff]
    %v1912 = vld [vmem:[#allocation13 + $0x90] sm:$0xff]
    %v1913 = vld [vmem:[#allocation13 + $0x98] sm:$0xff]
    %v1914 = vld [vmem:[#allocation13 + $0xa0] sm:$0xff]
    %v1915 = vld [vmem:[#allocation13 + $0xa8] sm:$0xff]
    %v1916 = vld [vmem:[#allocation13 + $0xb0] sm:$0xff]
    %v1917 = vld [vmem:[#allocation13 + $0xb8] sm:$0xff]
    %v1918 = vld [vmem:[#allocation13 + $0xc0] sm:$0xff]
    %v1919 = vld [vmem:[#allocation13 + $0xc8] sm:$0xff]
    %v1920 = vld [vmem:[#allocation13 + $0xd0] sm:$0xff]
    %v1921 = vld [vmem:[#allocation13 + $0xd8] sm:$0xff]
    %v1922 = vld [vmem:[#allocation13 + $0xe0] sm:$0xff]
    %v1923 = vld [vmem:[#allocation13 + $0xe8] sm:$0xff]
    %v1924 = vld [vmem:[#allocation13 + $0xf0] sm:$0xff]
    %v1925 = vld [vmem:[#allocation13 + $0xf8] sm:$0xff]
    %v1926 = vld [vmem:[#allocation13 + $0x100] sm:$0xff]
    %v1927 = vld [vmem:[#allocation13 + $0x108] sm:$0xff]
    %v1928 = vld [vmem:[#allocation13 + $0x110] sm:$0xff]
    %v1929 = vld [vmem:[#allocation13 + $0x118] sm:$0xff]
    %v1930 = vld [vmem:[#allocation13 + $0x120] sm:$0xff]
    %v1931 = vld [vmem:[#allocation13 + $0x128] sm:$0xff]
    %v1932 = vld [vmem:[#allocation13 + $0x130] sm:$0xff]
    %v1933 = vld [vmem:[#allocation13 + $0x138] sm:$0xff]
    %v1934 = vld [vmem:[#allocation13 + $0x140] sm:$0xff]
    %v1935 = vld [vmem:[#allocation13 + $0x148] sm:$0xff]
    %v1936 = vld [vmem:[#allocation13 + $0x150] sm:$0xff]
    %v1937 = vld [vmem:[#allocation13 + $0x158] sm:$0xff]
    %v1938 = vld [vmem:[#allocation13 + $0x160] sm:$0xff]
    %v1939 = vld [vmem:[#allocation13 + $0x168] sm:$0xff]
    %v1940 = vld [vmem:[#allocation13 + $0x170] sm:$0xff]
    %v1941 = vld [vmem:[#allocation13 + $0x178] sm:$0xff]
    %v1942 = vld [vmem:[#allocation13 + $0x180] sm:$0xff]
    %v1943 = vld [vmem:[#allocation13 + $0x188] sm:$0xff]
    %v1944 = vld [vmem:[#allocation13 + $0x190] sm:$0xff]
    %v1945 = vld [vmem:[#allocation13 + $0x198] sm:$0xff]
    %v1946 = vld [vmem:[#allocation13 + $0x1a0] sm:$0xff]
    %v1947 = vld [vmem:[#allocation13 + $0x1a8] sm:$0xff]
    %v1948 = vld [vmem:[#allocation13 + $0x1b0] sm:$0xff]
    %v1949 = vld [vmem:[#allocation13 + $0x1b8] sm:$0xff]
    %v1950 = vld [vmem:[#allocation13 + $0x1c0] sm:$0xff]
    %v1951 = vld [vmem:[#allocation13 + $0x1c8] sm:$0xff]
    %v1952 = vld [vmem:[#allocation13 + $0x1d0] sm:$0xff]
    %v1953 = vld [vmem:[#allocation13 + $0x1d8] sm:$0xff]
    %v1954 = vld [vmem:[#allocation13 + $0x1e0] sm:$0xff]
    %v1955 = vld [vmem:[#allocation13 + $0x1e8] sm:$0xff]
    %v1956 = vld [vmem:[#allocation13 + $0x1f0] sm:$0xff]
    %v1957 = vld [vmem:[#allocation13 + $0x1f8] sm:$0xff]
    %1958 = vmatpush.msra.mxu0 %v1954
    %1959 = vmatpush.msra.mxu0 %v1950
    %1960 = vmatpush.msra.mxu0 %v1946
    %1961 = vmatpush.msra.mxu0 %v1942
    %1962 = vmatpush.msra.mxu0 %v1938
    %1963 = vmatpush.msra.mxu0 %v1934
    %1964 = vmatpush.msra.mxu0 %v1930
    %1965 = vmatpush.msra.mxu0 %v1926
    %1966 = vmatpush.msra.mxu0 %v1922
    %1967 = vmatpush.msra.mxu0 %v1918
    %1968 = vmatpush.msra.mxu0 %v1914
    %1969 = vmatpush.msra.mxu0 %v1910
    %1970 = vmatpush.msra.mxu0 %v1906
    %1971 = vmatpush.msra.mxu0 %v1902
    %1972 = vmatpush.msra.mxu0 %v1898
    %1973 = vmatpush.msra.mxu0 %v1894
    %1974 = vmatmul.f32.gmra.mxu0 %v1886
    %v1975 = vpop.f32.mrf.mxu0
    %v1976 = vadd.f32 0.0, %v1975
    %1977 = vdwg.mxu0
    %1978 = vmatpush.msra.mxu0 %v1955
    %1979 = vmatpush.msra.mxu0 %v1951
    %1980 = vmatpush.msra.mxu0 %v1947
    %1981 = vmatpush.msra.mxu0 %v1943
    %1982 = vmatpush.msra.mxu0 %v1939
    %1983 = vmatpush.msra.mxu0 %v1935
    %1984 = vmatpush.msra.mxu0 %v1931
    %1985 = vmatpush.msra.mxu0 %v1927
    %1986 = vmatpush.msra.mxu0 %v1923
    %1987 = vmatpush.msra.mxu0 %v1919
    %1988 = vmatpush.msra.mxu0 %v1915
    %1989 = vmatpush.msra.mxu0 %v1911
    %1990 = vmatpush.msra.mxu0 %v1907
    %1991 = vmatpush.msra.mxu0 %v1903
    %1992 = vmatpush.msra.mxu0 %v1899
    %1993 = vmatpush.msra.mxu0 %v1895
    %1994 = vmatmul.f32.gmra.mxu0 %v1886
    %v1995 = vpop.f32.mrf.mxu0
    %v1996 = vadd.f32 0.0, %v1995
    %1997 = vdwg.mxu0
    %1998 = vmatpush.msra.mxu0 %v1956
    %1999 = vmatpush.msra.mxu0 %v1952
    %2000 = vmatpush.msra.mxu0 %v1948
    %2001 = vmatpush.msra.mxu0 %v1944
    %2002 = vmatpush.msra.mxu0 %v1940
    %2003 = vmatpush.msra.mxu0 %v1936
    %2004 = vmatpush.msra.mxu0 %v1932
    %2005 = vmatpush.msra.mxu0 %v1928
    %2006 = vmatpush.msra.mxu0 %v1924
    %2007 = vmatpush.msra.mxu0 %v1920
    %2008 = vmatpush.msra.mxu0 %v1916
    %2009 = vmatpush.msra.mxu0 %v1912
    %2010 = vmatpush.msra.mxu0 %v1908
    %2011 = vmatpush.msra.mxu0 %v1904
    %2012 = vmatpush.msra.mxu0 %v1900
    %2013 = vmatpush.msra.mxu0 %v1896
    %2014 = vmatmul.f32.gmra.mxu0 %v1886
    %v2015 = vpop.f32.mrf.mxu0
    %v2016 = vadd.f32 0.0, %v2015
    %2017 = vdwg.mxu0
    %2018 = vmatpush.msra.mxu0 %v1957
    %2019 = vmatpush.msra.mxu0 %v1953
    %2020 = vmatpush.msra.mxu0 %v1949
    %2021 = vmatpush.msra.mxu0 %v1945
    %2022 = vmatpush.msra.mxu0 %v1941
    %2023 = vmatpush.msra.mxu0 %v1937
    %2024 = vmatpush.msra.mxu0 %v1933
    %2025 = vmatpush.msra.mxu0 %v1929
    %2026 = vmatpush.msra.mxu0 %v1925
    %2027 = vmatpush.msra.mxu0 %v1921
    %2028 = vmatpush.msra.mxu0 %v1917
    %2029 = vmatpush.msra.mxu0 %v1913
    %2030 = vmatpush.msra.mxu0 %v1909
    %2031 = vmatpush.msra.mxu0 %v1905
    %2032 = vmatpush.msra.mxu0 %v1901
    %2033 = vmatpush.msra.mxu0 %v1897
    %2034 = vmatmul.f32.gmra.mxu0 %v1886
    %v2035 = vpop.f32.mrf.mxu0
    %v2036 = vadd.f32 0.0, %v2035
    %2037 = vdwg.mxu0
    %v2038 = vadd.f32 %v1890, %v1976
    %v2039 = vadd.f32 %v1891, %v1996
    %v2040 = vadd.f32 %v1892, %v2016
    %v2041 = vadd.f32 %v1893, %v2036
    %v2042 = vxor.u32 %v2038, 2147483648
    %v2043 = vmul.f32 %v2042, 1.442695
    %v2044 = vpow.pop %v2043
    %v2045 = vadd.f32 %v2044, 1.0
    %v2046 = vrcp.pop %v2045
    %v2047 = vmul.f32 %v2045, %v2046
    %v2048 = vsub.f32 1.0, %v2047
    %v2049 = vmul.f32 %v2046, %v2048
    %v2050 = vadd.f32 %v2046, %v2049
    %vm2051 = vweird.f32 %v2045
    %vm2052 = vweird.f32 %v2046
    %vm2053 = vmor %vm2051, %vm2052
    %v2054 = vsel %vm2053, %v2046, %v2050
    %v2055 = vand.u32 2147483647, %v2045
    %vm2056 = vcmp.eq.f32.partialorder %v2055, 8.507059e+37
    %v2057 = vand.u32 %v2045, 2147483648
    %v2058 = vor.u32 1.1754944e-38, %v2057
    %v2059 = vsel %vm2056, %v2058, %v2054
    %v2060 = vmul.f32 1.0, %v2059
    %v2061 = vxor.u32 %v2039, 2147483648
    %v2062 = vmul.f32 %v2061, 1.442695
    %v2063 = vpow.pop %v2062
    %v2064 = vadd.f32 %v2063, 1.0
    %v2065 = vrcp.pop %v2064
    %v2066 = vmul.f32 %v2064, %v2065
    %v2067 = vsub.f32 1.0, %v2066
    %v2068 = vmul.f32 %v2065, %v2067
    %v2069 = vadd.f32 %v2065, %v2068
    %vm2070 = vweird.f32 %v2064
    %vm2071 = vweird.f32 %v2065
    %vm2072 = vmor %vm2070, %vm2071
    %v2073 = vsel %vm2072, %v2065, %v2069
    %v2074 = vand.u32 2147483647, %v2064
    %vm2075 = vcmp.eq.f32.partialorder %v2074, 8.507059e+37
    %v2076 = vand.u32 %v2064, 2147483648
    %v2077 = vor.u32 1.1754944e-38, %v2076
    %v2078 = vsel %vm2075, %v2077, %v2073
    %v2079 = vmul.f32 1.0, %v2078
    %v2080 = vtanh.pop %v2040
    %v2081 = vxor.u32 %v2041, 2147483648
    %v2082 = vmul.f32 %v2081, 1.442695
    %v2083 = vpow.pop %v2082
    %v2084 = vadd.f32 %v2083, 1.0
    %v2085 = vrcp.pop %v2084
    %v2086 = vmul.f32 %v2084, %v2085
    %v2087 = vsub.f32 1.0, %v2086
    %v2088 = vmul.f32 %v2085, %v2087
    %v2089 = vadd.f32 %v2085, %v2088
    %vm2090 = vweird.f32 %v2084
    %vm2091 = vweird.f32 %v2085
    %vm2092 = vmor %vm2090, %vm2091
    %v2093 = vsel %vm2092, %v2085, %v2089
    %v2094 = vand.u32 2147483647, %v2084
    %vm2095 = vcmp.eq.f32.partialorder %v2094, 8.507059e+37
    %v2096 = vand.u32 %v2084, 2147483648
    %v2097 = vor.u32 1.1754944e-38, %v2096
    %v2098 = vsel %vm2095, %v2097, %v2093
    %v2099 = vmul.f32 1.0, %v2098
    %v2100 = vmul.f32 %v2079, %v1884
    %v2101 = vmul.f32 %v2060, %v2080
    %v2102 = vadd.f32 %v2100, %v2101
    %v2103 = vtanh.pop %v2102
    %v2104 = vmul.f32 %v2099, %v2103
    %s2105 = scalar_lea.vmem [#allocation3], 56
    %2106 = vst [vmem:[%s2105] sm:$0xff] %v2104
    %2107 = vst [vmem:[#allocation16] sm:$0xff] %v2104
    %2108 = vst [vmem:[#allocation18] sm:$0xff] %v2102
    %v2109 = vld [vmem:[#allocation3] sm:$0xff]
    %v2110 = vld [vmem:[#allocation3 + $0x8] sm:$0xff]
    %v2111 = vld [vmem:[#allocation3 + $0x10] sm:$0xff]
    %v2112 = vld [vmem:[#allocation3 + $0x18] sm:$0xff]
    %v2113 = vld [vmem:[#allocation3 + $0x20] sm:$0xff]
    %v2114 = vld [vmem:[#allocation3 + $0x28] sm:$0xff]
    %v2115 = vld [vmem:[#allocation3 + $0x30] sm:$0xff]
    %v2116 = vld [vmem:[#allocation3 + $0x38] sm:$0xff]
    %v2117 = vld [vmem:[#allocation10] sm:$0xff]
    %v2118 = vld [vmem:[#allocation10 + $0x8] sm:$0xff]
    %v2119 = vld [vmem:[#allocation10 + $0x10] sm:$0xff]
    %v2120 = vld [vmem:[#allocation10 + $0x18] sm:$0xff]
    %v2121 = vld [vmem:[#allocation10 + $0x20] sm:$0xff]
    %v2122 = vld [vmem:[#allocation10 + $0x28] sm:$0xff]
    %v2123 = vld [vmem:[#allocation10 + $0x30] sm:$0xff]
    %v2124 = vld [vmem:[#allocation10 + $0x38] sm:$0xff]
    %v2125 = vld [vmem:[#allocation10 + $0x40] sm:$0xff]
    %v2126 = vld [vmem:[#allocation10 + $0x48] sm:$0xff]
    %v2127 = vld [vmem:[#allocation10 + $0x50] sm:$0xff]
    %v2128 = vld [vmem:[#allocation10 + $0x58] sm:$0xff]
    %v2129 = vld [vmem:[#allocation10 + $0x60] sm:$0xff]
    %v2130 = vld [vmem:[#allocation10 + $0x68] sm:$0xff]
    %v2131 = vld [vmem:[#allocation10 + $0x70] sm:$0xff]
    %v2132 = vld [vmem:[#allocation10 + $0x78] sm:$0xff]
    %v2133 = vld [vmem:[#allocation10 + $0x80] sm:$0xff]
    %v2134 = vld [vmem:[#allocation10 + $0x88] sm:$0xff]
    %v2135 = vld [vmem:[#allocation10 + $0x90] sm:$0xff]
    %v2136 = vld [vmem:[#allocation10 + $0x98] sm:$0xff]
    %v2137 = vld [vmem:[#allocation10 + $0xa0] sm:$0xff]
    %v2138 = vld [vmem:[#allocation10 + $0xa8] sm:$0xff]
    %v2139 = vld [vmem:[#allocation10 + $0xb0] sm:$0xff]
    %v2140 = vld [vmem:[#allocation10 + $0xb8] sm:$0xff]
    %v2141 = vld [vmem:[#allocation10 + $0xc0] sm:$0xff]
    %v2142 = vld [vmem:[#allocation10 + $0xc8] sm:$0xff]
    %v2143 = vld [vmem:[#allocation10 + $0xd0] sm:$0xff]
    %v2144 = vld [vmem:[#allocation10 + $0xd8] sm:$0xff]
    %v2145 = vld [vmem:[#allocation10 + $0xe0] sm:$0xff]
    %v2146 = vld [vmem:[#allocation10 + $0xe8] sm:$0xff]
    %v2147 = vld [vmem:[#allocation10 + $0xf0] sm:$0xff]
    %v2148 = vld [vmem:[#allocation10 + $0xf8] sm:$0xff]
    %v2149 = vld [vmem:[#allocation10 + $0x100] sm:$0xff]
    %v2150 = vld [vmem:[#allocation10 + $0x108] sm:$0xff]
    %v2151 = vld [vmem:[#allocation10 + $0x110] sm:$0xff]
    %v2152 = vld [vmem:[#allocation10 + $0x118] sm:$0xff]
    %v2153 = vld [vmem:[#allocation10 + $0x120] sm:$0xff]
    %v2154 = vld [vmem:[#allocation10 + $0x128] sm:$0xff]
    %v2155 = vld [vmem:[#allocation10 + $0x130] sm:$0xff]
    %v2156 = vld [vmem:[#allocation10 + $0x138] sm:$0xff]
    %v2157 = vld [vmem:[#allocation10 + $0x140] sm:$0xff]
    %v2158 = vld [vmem:[#allocation10 + $0x148] sm:$0xff]
    %v2159 = vld [vmem:[#allocation10 + $0x150] sm:$0xff]
    %v2160 = vld [vmem:[#allocation10 + $0x158] sm:$0xff]
    %v2161 = vld [vmem:[#allocation10 + $0x160] sm:$0xff]
    %v2162 = vld [vmem:[#allocation10 + $0x168] sm:$0xff]
    %v2163 = vld [vmem:[#allocation10 + $0x170] sm:$0xff]
    %v2164 = vld [vmem:[#allocation10 + $0x178] sm:$0xff]
    %v2165 = vld [vmem:[#allocation10 + $0x180] sm:$0xff]
    %v2166 = vld [vmem:[#allocation10 + $0x188] sm:$0xff]
    %v2167 = vld [vmem:[#allocation10 + $0x190] sm:$0xff]
    %v2168 = vld [vmem:[#allocation10 + $0x198] sm:$0xff]
    %v2169 = vld [vmem:[#allocation10 + $0x1a0] sm:$0xff]
    %v2170 = vld [vmem:[#allocation10 + $0x1a8] sm:$0xff]
    %v2171 = vld [vmem:[#allocation10 + $0x1b0] sm:$0xff]
    %v2172 = vld [vmem:[#allocation10 + $0x1b8] sm:$0xff]
    %v2173 = vld [vmem:[#allocation10 + $0x1c0] sm:$0xff]
    %v2174 = vld [vmem:[#allocation10 + $0x1c8] sm:$0xff]
    %v2175 = vld [vmem:[#allocation10 + $0x1d0] sm:$0xff]
    %v2176 = vld [vmem:[#allocation10 + $0x1d8] sm:$0xff]
    %v2177 = vld [vmem:[#allocation10 + $0x1e0] sm:$0xff]
    %v2178 = vld [vmem:[#allocation10 + $0x1e8] sm:$0xff]
    %v2179 = vld [vmem:[#allocation10 + $0x1f0] sm:$0xff]
    %v2180 = vld [vmem:[#allocation10 + $0x1f8] sm:$0xff]
    %v2181 = vld [vmem:[#allocation12] sm:$0xf]
    %v2183 = vperm.slane %v2181, 0
    %v2184 = vperm.slane %v2181, 1
    %v2185 = vperm.slane %v2181, 2
    %v2186 = vperm.slane %v2181, 3
    %2191 = vmatpush.msra.mxu0 %v2177
    %2192 = vmatpush.msra.mxu0 %v2173
    %2193 = vmatpush.msra.mxu0 %v2169
    %2194 = vmatpush.msra.mxu0 %v2165
    %2195 = vmatpush.msra.mxu0 %v2161
    %2196 = vmatpush.msra.mxu0 %v2157
    %2197 = vmatpush.msra.mxu0 %v2153
    %2198 = vmatpush.msra.mxu0 %v2149
    %2199 = vmatpush.msra.mxu0 %v2145
    %2200 = vmatpush.msra.mxu0 %v2141
    %2201 = vmatpush.msra.mxu0 %v2137
    %2202 = vmatpush.msra.mxu0 %v2133
    %2203 = vmatpush.msra.mxu0 %v2129
    %2204 = vmatpush.msra.mxu0 %v2125
    %2205 = vmatpush.msra.mxu0 %v2121
    %2206 = vmatpush.msra.mxu0 %v2117
    %2207 = vmatmul.f32.gmra.mxu0 %v2109
    %v2208 = vpop.f32.mrf.mxu0
    %v2209 = vadd.f32 %v2183, %v2208
    %2210 = vmatmul.f32.gmra.mxu0 %v2110
    %v2211 = vpop.f32.mrf.mxu0
    %v2212 = vadd.f32 %v2183, %v2211
    %2213 = vmatmul.f32.gmra.mxu0 %v2111
    %v2214 = vpop.f32.mrf.mxu0
    %v2215 = vadd.f32 %v2183, %v2214
    %2216 = vmatmul.f32.gmra.mxu0 %v2112
    %v2217 = vpop.f32.mrf.mxu0
    %v2218 = vadd.f32 %v2183, %v2217
    %2219 = vmatmul.f32.gmra.mxu0 %v2113
    %v2220 = vpop.f32.mrf.mxu0
    %v2221 = vadd.f32 %v2183, %v2220
    %2222 = vmatmul.f32.gmra.mxu0 %v2114
    %v2223 = vpop.f32.mrf.mxu0
    %v2224 = vadd.f32 %v2183, %v2223
    %2225 = vmatmul.f32.gmra.mxu0 %v2115
    %v2226 = vpop.f32.mrf.mxu0
    %v2227 = vadd.f32 %v2183, %v2226
    %2228 = vmatmul.f32.gmra.mxu0 %v2116
    %v2229 = vpop.f32.mrf.mxu0
    %v2230 = vadd.f32 %v2183, %v2229
    %2231 = vdwg.mxu0
    %2232 = vmatpush.msra.mxu0 %v2178
    %2233 = vmatpush.msra.mxu0 %v2174
    %2234 = vmatpush.msra.mxu0 %v2170
    %2235 = vmatpush.msra.mxu0 %v2166
    %2236 = vmatpush.msra.mxu0 %v2162
    %2237 = vmatpush.msra.mxu0 %v2158
    %2238 = vmatpush.msra.mxu0 %v2154
    %2239 = vmatpush.msra.mxu0 %v2150
    %2240 = vmatpush.msra.mxu0 %v2146
    %2241 = vmatpush.msra.mxu0 %v2142
    %2242 = vmatpush.msra.mxu0 %v2138
    %2243 = vmatpush.msra.mxu0 %v2134
    %2244 = vmatpush.msra.mxu0 %v2130
    %2245 = vmatpush.msra.mxu0 %v2126
    %2246 = vmatpush.msra.mxu0 %v2122
    %2247 = vmatpush.msra.mxu0 %v2118
    %2248 = vmatmul.f32.gmra.mxu0 %v2109
    %v2249 = vpop.f32.mrf.mxu0
    %v2250 = vadd.f32 %v2184, %v2249
    %2251 = vmatmul.f32.gmra.mxu0 %v2110
    %v2252 = vpop.f32.mrf.mxu0
    %v2253 = vadd.f32 %v2184, %v2252
    %2254 = vmatmul.f32.gmra.mxu0 %v2111
    %v2255 = vpop.f32.mrf.mxu0
    %v2256 = vadd.f32 %v2184, %v2255
    %2257 = vmatmul.f32.gmra.mxu0 %v2112
    %v2258 = vpop.f32.mrf.mxu0
    %v2259 = vadd.f32 %v2184, %v2258
    %2260 = vmatmul.f32.gmra.mxu0 %v2113
    %v2261 = vpop.f32.mrf.mxu0
    %v2262 = vadd.f32 %v2184, %v2261
    %2263 = vmatmul.f32.gmra.mxu0 %v2114
    %v2264 = vpop.f32.mrf.mxu0
    %v2265 = vadd.f32 %v2184, %v2264
    %2266 = vmatmul.f32.gmra.mxu0 %v2115
    %v2267 = vpop.f32.mrf.mxu0
    %v2268 = vadd.f32 %v2184, %v2267
    %2269 = vmatmul.f32.gmra.mxu0 %v2116
    %v2270 = vpop.f32.mrf.mxu0
    %v2271 = vadd.f32 %v2184, %v2270
    %2272 = vdwg.mxu0
    %2273 = vmatpush.msra.mxu0 %v2179
    %2274 = vmatpush.msra.mxu0 %v2175
    %2275 = vmatpush.msra.mxu0 %v2171
    %2276 = vmatpush.msra.mxu0 %v2167
    %2277 = vmatpush.msra.mxu0 %v2163
    %2278 = vmatpush.msra.mxu0 %v2159
    %2279 = vmatpush.msra.mxu0 %v2155
    %2280 = vmatpush.msra.mxu0 %v2151
    %2281 = vmatpush.msra.mxu0 %v2147
    %2282 = vmatpush.msra.mxu0 %v2143
    %2283 = vmatpush.msra.mxu0 %v2139
    %2284 = vmatpush.msra.mxu0 %v2135
    %2285 = vmatpush.msra.mxu0 %v2131
    %2286 = vmatpush.msra.mxu0 %v2127
    %2287 = vmatpush.msra.mxu0 %v2123
    %2288 = vmatpush.msra.mxu0 %v2119
    %2289 = vmatmul.f32.gmra.mxu0 %v2109
    %v2290 = vpop.f32.mrf.mxu0
    %v2291 = vadd.f32 %v2185, %v2290
    %2292 = vmatmul.f32.gmra.mxu0 %v2110
    %v2293 = vpop.f32.mrf.mxu0
    %v2294 = vadd.f32 %v2185, %v2293
    %2295 = vmatmul.f32.gmra.mxu0 %v2111
    %v2296 = vpop.f32.mrf.mxu0
    %v2297 = vadd.f32 %v2185, %v2296
    %2298 = vmatmul.f32.gmra.mxu0 %v2112
    %v2299 = vpop.f32.mrf.mxu0
    %v2300 = vadd.f32 %v2185, %v2299
    %2301 = vmatmul.f32.gmra.mxu0 %v2113
    %v2302 = vpop.f32.mrf.mxu0
    %v2303 = vadd.f32 %v2185, %v2302
    %2304 = vmatmul.f32.gmra.mxu0 %v2114
    %v2305 = vpop.f32.mrf.mxu0
    %v2306 = vadd.f32 %v2185, %v2305
    %2307 = vmatmul.f32.gmra.mxu0 %v2115
    %v2308 = vpop.f32.mrf.mxu0
    %v2309 = vadd.f32 %v2185, %v2308
    %2310 = vmatmul.f32.gmra.mxu0 %v2116
    %v2311 = vpop.f32.mrf.mxu0
    %v2312 = vadd.f32 %v2185, %v2311
    %2313 = vdwg.mxu0
    %2314 = vmatpush.msra.mxu0 %v2180
    %2315 = vmatpush.msra.mxu0 %v2176
    %2316 = vmatpush.msra.mxu0 %v2172
    %2317 = vmatpush.msra.mxu0 %v2168
    %2318 = vmatpush.msra.mxu0 %v2164
    %2319 = vmatpush.msra.mxu0 %v2160
    %2320 = vmatpush.msra.mxu0 %v2156
    %2321 = vmatpush.msra.mxu0 %v2152
    %2322 = vmatpush.msra.mxu0 %v2148
    %2323 = vmatpush.msra.mxu0 %v2144
    %2324 = vmatpush.msra.mxu0 %v2140
    %2325 = vmatpush.msra.mxu0 %v2136
    %2326 = vmatpush.msra.mxu0 %v2132
    %2327 = vmatpush.msra.mxu0 %v2128
    %2328 = vmatpush.msra.mxu0 %v2124
    %2329 = vmatpush.msra.mxu0 %v2120
    %2330 = vmatmul.f32.gmra.mxu0 %v2109
    %v2331 = vpop.f32.mrf.mxu0
    %v2332 = vadd.f32 %v2186, %v2331
    %2333 = vmatmul.f32.gmra.mxu0 %v2110
    %v2334 = vpop.f32.mrf.mxu0
    %v2335 = vadd.f32 %v2186, %v2334
    %2336 = vmatmul.f32.gmra.mxu0 %v2111
    %v2337 = vpop.f32.mrf.mxu0
    %v2338 = vadd.f32 %v2186, %v2337
    %2339 = vmatmul.f32.gmra.mxu0 %v2112
    %v2340 = vpop.f32.mrf.mxu0
    %v2341 = vadd.f32 %v2186, %v2340
    %2342 = vmatmul.f32.gmra.mxu0 %v2113
    %v2343 = vpop.f32.mrf.mxu0
    %v2344 = vadd.f32 %v2186, %v2343
    %2345 = vmatmul.f32.gmra.mxu0 %v2114
    %v2346 = vpop.f32.mrf.mxu0
    %v2347 = vadd.f32 %v2186, %v2346
    %2348 = vmatmul.f32.gmra.mxu0 %v2115
    %v2349 = vpop.f32.mrf.mxu0
    %v2350 = vadd.f32 %v2186, %v2349
    %2351 = vmatmul.f32.gmra.mxu0 %v2116
    %v2352 = vpop.f32.mrf.mxu0
    %v2353 = vadd.f32 %v2186, %v2352
    %2354 = vdwg.mxu0
    %2355 = vst [vmem:[#allocation2] sm:$0xff] %v2209
    %2356 = vst [vmem:[#allocation2 + $0x8] sm:$0xff] %v2250
    %2357 = vst [vmem:[#allocation2 + $0x10] sm:$0xff] %v2291
    %2358 = vst [vmem:[#allocation2 + $0x18] sm:$0xff] %v2332
    %2359 = vst [vmem:[#allocation2 + $0x20] sm:$0xff] %v2212
    %2360 = vst [vmem:[#allocation2 + $0x28] sm:$0xff] %v2253
    %2361 = vst [vmem:[#allocation2 + $0x30] sm:$0xff] %v2294
    %2362 = vst [vmem:[#allocation2 + $0x38] sm:$0xff] %v2335
    %2363 = vst [vmem:[#allocation2 + $0x40] sm:$0xff] %v2215
    %2364 = vst [vmem:[#allocation2 + $0x48] sm:$0xff] %v2256
    %2365 = vst [vmem:[#allocation2 + $0x50] sm:$0xff] %v2297
    %2366 = vst [vmem:[#allocation2 + $0x58] sm:$0xff] %v2338
    %2367 = vst [vmem:[#allocation2 + $0x60] sm:$0xff] %v2218
    %2368 = vst [vmem:[#allocation2 + $0x68] sm:$0xff] %v2259
    %2369 = vst [vmem:[#allocation2 + $0x70] sm:$0xff] %v2300
    %2370 = vst [vmem:[#allocation2 + $0x78] sm:$0xff] %v2341
    %2371 = vst [vmem:[#allocation2 + $0x80] sm:$0xff] %v2221
    %2372 = vst [vmem:[#allocation2 + $0x88] sm:$0xff] %v2262
    %2373 = vst [vmem:[#allocation2 + $0x90] sm:$0xff] %v2303
    %2374 = vst [vmem:[#allocation2 + $0x98] sm:$0xff] %v2344
    %2375 = vst [vmem:[#allocation2 + $0xa0] sm:$0xff] %v2224
    %2376 = vst [vmem:[#allocation2 + $0xa8] sm:$0xff] %v2265
    %2377 = vst [vmem:[#allocation2 + $0xb0] sm:$0xff] %v2306
    %2378 = vst [vmem:[#allocation2 + $0xb8] sm:$0xff] %v2347
    %2379 = vst [vmem:[#allocation2 + $0xc0] sm:$0xff] %v2227
    %2380 = vst [vmem:[#allocation2 + $0xc8] sm:$0xff] %v2268
    %2381 = vst [vmem:[#allocation2 + $0xd0] sm:$0xff] %v2309
    %2382 = vst [vmem:[#allocation2 + $0xd8] sm:$0xff] %v2350
    %2383 = vst [vmem:[#allocation2 + $0xe0] sm:$0xff] %v2230
    %2384 = vst [vmem:[#allocation2 + $0xe8] sm:$0xff] %v2271
    %2385 = vst [vmem:[#allocation2 + $0xf0] sm:$0xff] %v2312
    %2386 = vst [vmem:[#allocation2 + $0xf8] sm:$0xff] %v2353
    %v2387 = vld [vmem:[#allocation2] sm:$0xff]
    %v2388 = vld [vmem:[#allocation2 + $0x8] sm:$0xff]
    %v2389 = vld [vmem:[#allocation2 + $0x10] sm:$0xff]
    %v2390 = vld [vmem:[#allocation2 + $0x18] sm:$0xff]
    %s2391 = scalar_lea.vmem [#allocation13], 512
    %v2392 = vld [vmem:[%s2391] sm:$0xff]
    %v2393 = vld [vmem:[%s2391 + $0x8] sm:$0xff]
    %v2394 = vld [vmem:[%s2391 + $0x10] sm:$0xff]
    %v2395 = vld [vmem:[%s2391 + $0x18] sm:$0xff]
    %v2396 = vld [vmem:[%s2391 + $0x20] sm:$0xff]
    %v2397 = vld [vmem:[%s2391 + $0x28] sm:$0xff]
    %v2398 = vld [vmem:[%s2391 + $0x30] sm:$0xff]
    %v2399 = vld [vmem:[%s2391 + $0x38] sm:$0xff]
    %v2400 = vld [vmem:[%s2391 + $0x40] sm:$0xff]
    %v2401 = vld [vmem:[%s2391 + $0x48] sm:$0xff]
    %v2402 = vld [vmem:[%s2391 + $0x50] sm:$0xff]
    %v2403 = vld [vmem:[%s2391 + $0x58] sm:$0xff]
    %v2404 = vld [vmem:[%s2391 + $0x60] sm:$0xff]
    %v2405 = vld [vmem:[%s2391 + $0x68] sm:$0xff]
    %v2406 = vld [vmem:[%s2391 + $0x70] sm:$0xff]
    %v2407 = vld [vmem:[%s2391 + $0x78] sm:$0xff]
    %v2408 = vld [vmem:[%s2391 + $0x80] sm:$0xff]
    %v2409 = vld [vmem:[%s2391 + $0x88] sm:$0xff]
    %v2410 = vld [vmem:[%s2391 + $0x90] sm:$0xff]
    %v2411 = vld [vmem:[%s2391 + $0x98] sm:$0xff]
    %v2412 = vld [vmem:[%s2391 + $0xa0] sm:$0xff]
    %v2413 = vld [vmem:[%s2391 + $0xa8] sm:$0xff]
    %v2414 = vld [vmem:[%s2391 + $0xb0] sm:$0xff]
    %v2415 = vld [vmem:[%s2391 + $0xb8] sm:$0xff]
    %v2416 = vld [vmem:[%s2391 + $0xc0] sm:$0xff]
    %v2417 = vld [vmem:[%s2391 + $0xc8] sm:$0xff]
    %v2418 = vld [vmem:[%s2391 + $0xd0] sm:$0xff]
    %v2419 = vld [vmem:[%s2391 + $0xd8] sm:$0xff]
    %v2420 = vld [vmem:[%s2391 + $0xe0] sm:$0xff]
    %v2421 = vld [vmem:[%s2391 + $0xe8] sm:$0xff]
    %v2422 = vld [vmem:[%s2391 + $0xf0] sm:$0xff]
    %v2423 = vld [vmem:[%s2391 + $0xf8] sm:$0xff]
    %v2424 = vld [vmem:[%s2391 + $0x100] sm:$0xff]
    %v2425 = vld [vmem:[%s2391 + $0x108] sm:$0xff]
    %v2426 = vld [vmem:[%s2391 + $0x110] sm:$0xff]
    %v2427 = vld [vmem:[%s2391 + $0x118] sm:$0xff]
    %v2428 = vld [vmem:[%s2391 + $0x120] sm:$0xff]
    %v2429 = vld [vmem:[%s2391 + $0x128] sm:$0xff]
    %v2430 = vld [vmem:[%s2391 + $0x130] sm:$0xff]
    %v2431 = vld [vmem:[%s2391 + $0x138] sm:$0xff]
    %v2432 = vld [vmem:[%s2391 + $0x140] sm:$0xff]
    %v2433 = vld [vmem:[%s2391 + $0x148] sm:$0xff]
    %v2434 = vld [vmem:[%s2391 + $0x150] sm:$0xff]
    %v2435 = vld [vmem:[%s2391 + $0x158] sm:$0xff]
    %v2436 = vld [vmem:[%s2391 + $0x160] sm:$0xff]
    %v2437 = vld [vmem:[%s2391 + $0x168] sm:$0xff]
    %v2438 = vld [vmem:[%s2391 + $0x170] sm:$0xff]
    %v2439 = vld [vmem:[%s2391 + $0x178] sm:$0xff]
    %v2440 = vld [vmem:[%s2391 + $0x180] sm:$0xff]
    %v2441 = vld [vmem:[%s2391 + $0x188] sm:$0xff]
    %v2442 = vld [vmem:[%s2391 + $0x190] sm:$0xff]
    %v2443 = vld [vmem:[%s2391 + $0x198] sm:$0xff]
    %v2444 = vld [vmem:[%s2391 + $0x1a0] sm:$0xff]
    %v2445 = vld [vmem:[%s2391 + $0x1a8] sm:$0xff]
    %v2446 = vld [vmem:[%s2391 + $0x1b0] sm:$0xff]
    %v2447 = vld [vmem:[%s2391 + $0x1b8] sm:$0xff]
    %v2448 = vld [vmem:[%s2391 + $0x1c0] sm:$0xff]
    %v2449 = vld [vmem:[%s2391 + $0x1c8] sm:$0xff]
    %v2450 = vld [vmem:[%s2391 + $0x1d0] sm:$0xff]
    %v2451 = vld [vmem:[%s2391 + $0x1d8] sm:$0xff]
    %v2452 = vld [vmem:[%s2391 + $0x1e0] sm:$0xff]
    %v2453 = vld [vmem:[%s2391 + $0x1e8] sm:$0xff]
    %v2454 = vld [vmem:[%s2391 + $0x1f0] sm:$0xff]
    %v2455 = vld [vmem:[%s2391 + $0x1f8] sm:$0xff]
    %2456 = vmatpush.msra.mxu0 %v2452
    %2457 = vmatpush.msra.mxu0 %v2448
    %2458 = vmatpush.msra.mxu0 %v2444
    %2459 = vmatpush.msra.mxu0 %v2440
    %2460 = vmatpush.msra.mxu0 %v2436
    %2461 = vmatpush.msra.mxu0 %v2432
    %2462 = vmatpush.msra.mxu0 %v2428
    %2463 = vmatpush.msra.mxu0 %v2424
    %2464 = vmatpush.msra.mxu0 %v2420
    %2465 = vmatpush.msra.mxu0 %v2416
    %2466 = vmatpush.msra.mxu0 %v2412
    %2467 = vmatpush.msra.mxu0 %v2408
    %2468 = vmatpush.msra.mxu0 %v2404
    %2469 = vmatpush.msra.mxu0 %v2400
    %2470 = vmatpush.msra.mxu0 %v2396
    %2471 = vmatpush.msra.mxu0 %v2392
    %2472 = vmatmul.f32.gmra.mxu0 0.0
    %v2473 = vpop.f32.mrf.mxu0
    %v2474 = vadd.f32 0.0, %v2473
    %2475 = vdwg.mxu0
    %2476 = vmatpush.msra.mxu0 %v2453
    %2477 = vmatpush.msra.mxu0 %v2449
    %2478 = vmatpush.msra.mxu0 %v2445
    %2479 = vmatpush.msra.mxu0 %v2441
    %2480 = vmatpush.msra.mxu0 %v2437
    %2481 = vmatpush.msra.mxu0 %v2433
    %2482 = vmatpush.msra.mxu0 %v2429
    %2483 = vmatpush.msra.mxu0 %v2425
    %2484 = vmatpush.msra.mxu0 %v2421
    %2485 = vmatpush.msra.mxu0 %v2417
    %2486 = vmatpush.msra.mxu0 %v2413
    %2487 = vmatpush.msra.mxu0 %v2409
    %2488 = vmatpush.msra.mxu0 %v2405
    %2489 = vmatpush.msra.mxu0 %v2401
    %2490 = vmatpush.msra.mxu0 %v2397
    %2491 = vmatpush.msra.mxu0 %v2393
    %2492 = vmatmul.f32.gmra.mxu0 0.0
    %v2493 = vpop.f32.mrf.mxu0
    %v2494 = vadd.f32 0.0, %v2493
    %2495 = vdwg.mxu0
    %2496 = vmatpush.msra.mxu0 %v2454
    %2497 = vmatpush.msra.mxu0 %v2450
    %2498 = vmatpush.msra.mxu0 %v2446
    %2499 = vmatpush.msra.mxu0 %v2442
    %2500 = vmatpush.msra.mxu0 %v2438
    %2501 = vmatpush.msra.mxu0 %v2434
    %2502 = vmatpush.msra.mxu0 %v2430
    %2503 = vmatpush.msra.mxu0 %v2426
    %2504 = vmatpush.msra.mxu0 %v2422
    %2505 = vmatpush.msra.mxu0 %v2418
    %2506 = vmatpush.msra.mxu0 %v2414
    %2507 = vmatpush.msra.mxu0 %v2410
    %2508 = vmatpush.msra.mxu0 %v2406
    %2509 = vmatpush.msra.mxu0 %v2402
    %2510 = vmatpush.msra.mxu0 %v2398
    %2511 = vmatpush.msra.mxu0 %v2394
    %2512 = vmatmul.f32.gmra.mxu0 0.0
    %v2513 = vpop.f32.mrf.mxu0
    %v2514 = vadd.f32 0.0, %v2513
    %2515 = vdwg.mxu0
    %2516 = vmatpush.msra.mxu0 %v2455
    %2517 = vmatpush.msra.mxu0 %v2451
    %2518 = vmatpush.msra.mxu0 %v2447
    %2519 = vmatpush.msra.mxu0 %v2443
    %2520 = vmatpush.msra.mxu0 %v2439
    %2521 = vmatpush.msra.mxu0 %v2435
    %2522 = vmatpush.msra.mxu0 %v2431
    %2523 = vmatpush.msra.mxu0 %v2427
    %2524 = vmatpush.msra.mxu0 %v2423
    %2525 = vmatpush.msra.mxu0 %v2419
    %2526 = vmatpush.msra.mxu0 %v2415
    %2527 = vmatpush.msra.mxu0 %v2411
    %2528 = vmatpush.msra.mxu0 %v2407
    %2529 = vmatpush.msra.mxu0 %v2403
    %2530 = vmatpush.msra.mxu0 %v2399
    %2531 = vmatpush.msra.mxu0 %v2395
    %2532 = vmatmul.f32.gmra.mxu0 0.0
    %v2533 = vpop.f32.mrf.mxu0
    %v2534 = vadd.f32 0.0, %v2533
    %2535 = vdwg.mxu0
    %v2536 = vadd.f32 %v2387, %v2474
    %v2537 = vadd.f32 %v2388, %v2494
    %v2538 = vadd.f32 %v2389, %v2514
    %v2539 = vadd.f32 %v2390, %v2534
    %v2540 = vxor.u32 %v2536, 2147483648
    %v2541 = vmul.f32 %v2540, 1.442695
    %v2542 = vpow.pop %v2541
    %v2543 = vadd.f32 %v2542, 1.0
    %v2544 = vrcp.pop %v2543
    %v2545 = vmul.f32 %v2543, %v2544
    %v2546 = vsub.f32 1.0, %v2545
    %v2547 = vmul.f32 %v2544, %v2546
    %v2548 = vadd.f32 %v2544, %v2547
    %vm2549 = vweird.f32 %v2543
    %vm2550 = vweird.f32 %v2544
    %vm2551 = vmor %vm2549, %vm2550
    %v2552 = vsel %vm2551, %v2544, %v2548
    %v2553 = vand.u32 2147483647, %v2543
    %vm2554 = vcmp.eq.f32.partialorder %v2553, 8.507059e+37
    %v2555 = vand.u32 %v2543, 2147483648
    %v2556 = vor.u32 1.1754944e-38, %v2555
    %v2557 = vsel %vm2554, %v2556, %v2552
    %v2558 = vmul.f32 1.0, %v2557
    %v2559 = vxor.u32 %v2537, 2147483648
    %v2560 = vmul.f32 %v2559, 1.442695
    %v2561 = vpow.pop %v2560
    %v2562 = vadd.f32 %v2561, 1.0
    %v2563 = vrcp.pop %v2562
    %v2564 = vmul.f32 %v2562, %v2563
    %v2565 = vsub.f32 1.0, %v2564
    %v2566 = vmul.f32 %v2563, %v2565
    %v2567 = vadd.f32 %v2563, %v2566
    %vm2568 = vweird.f32 %v2562
    %vm2569 = vweird.f32 %v2563
    %vm2570 = vmor %vm2568, %vm2569
    %v2571 = vsel %vm2570, %v2563, %v2567
    %v2572 = vand.u32 2147483647, %v2562
    %vm2573 = vcmp.eq.f32.partialorder %v2572, 8.507059e+37
    %v2574 = vand.u32 %v2562, 2147483648
    %v2575 = vor.u32 1.1754944e-38, %v2574
    %v2576 = vsel %vm2573, %v2575, %v2571
    %v2577 = vmul.f32 1.0, %v2576
    %v2578 = vtanh.pop %v2538
    %v2579 = vxor.u32 %v2539, 2147483648
    %v2580 = vmul.f32 %v2579, 1.442695
    %v2581 = vpow.pop %v2580
    %v2582 = vadd.f32 %v2581, 1.0
    %v2583 = vrcp.pop %v2582
    %v2584 = vmul.f32 %v2582, %v2583
    %v2585 = vsub.f32 1.0, %v2584
    %v2586 = vmul.f32 %v2583, %v2585
    %v2587 = vadd.f32 %v2583, %v2586
    %vm2588 = vweird.f32 %v2582
    %vm2589 = vweird.f32 %v2583
    %vm2590 = vmor %vm2588, %vm2589
    %v2591 = vsel %vm2590, %v2583, %v2587
    %v2592 = vand.u32 2147483647, %v2582
    %vm2593 = vcmp.eq.f32.partialorder %v2592, 8.507059e+37
    %v2594 = vand.u32 %v2582, 2147483648
    %v2595 = vor.u32 1.1754944e-38, %v2594
    %v2596 = vsel %vm2593, %v2595, %v2591
    %v2597 = vmul.f32 1.0, %v2596
    %v2598 = vmul.f32 %v2577, 0.0
    %v2599 = vmul.f32 %v2558, %v2578
    %v2600 = vadd.f32 %v2598, %v2599
    %v2601 = vtanh.pop %v2600
    %v2602 = vmul.f32 %v2597, %v2601
    %2603 = vst [vmem:[#allocation3] sm:$0xff] %v2602
    %v2604 = vld [vmem:[%s581] sm:$0xff]
    %v2605 = vld [vmem:[%s581 + $0x8] sm:$0xff]
    %v2606 = vld [vmem:[%s581 + $0x10] sm:$0xff]
    %v2607 = vld [vmem:[%s581 + $0x18] sm:$0xff]
    %v2608 = vld [vmem:[%s2391] sm:$0xff]
    %v2609 = vld [vmem:[%s2391 + $0x8] sm:$0xff]
    %v2610 = vld [vmem:[%s2391 + $0x10] sm:$0xff]
    %v2611 = vld [vmem:[%s2391 + $0x18] sm:$0xff]
    %v2612 = vld [vmem:[%s2391 + $0x20] sm:$0xff]
    %v2613 = vld [vmem:[%s2391 + $0x28] sm:$0xff]
    %v2614 = vld [vmem:[%s2391 + $0x30] sm:$0xff]
    %v2615 = vld [vmem:[%s2391 + $0x38] sm:$0xff]
    %v2616 = vld [vmem:[%s2391 + $0x40] sm:$0xff]
    %v2617 = vld [vmem:[%s2391 + $0x48] sm:$0xff]
    %v2618 = vld [vmem:[%s2391 + $0x50] sm:$0xff]
    %v2619 = vld [vmem:[%s2391 + $0x58] sm:$0xff]
    %v2620 = vld [vmem:[%s2391 + $0x60] sm:$0xff]
    %v2621 = vld [vmem:[%s2391 + $0x68] sm:$0xff]
    %v2622 = vld [vmem:[%s2391 + $0x70] sm:$0xff]
    %v2623 = vld [vmem:[%s2391 + $0x78] sm:$0xff]
    %v2624 = vld [vmem:[%s2391 + $0x80] sm:$0xff]
    %v2625 = vld [vmem:[%s2391 + $0x88] sm:$0xff]
    %v2626 = vld [vmem:[%s2391 + $0x90] sm:$0xff]
    %v2627 = vld [vmem:[%s2391 + $0x98] sm:$0xff]
    %v2628 = vld [vmem:[%s2391 + $0xa0] sm:$0xff]
    %v2629 = vld [vmem:[%s2391 + $0xa8] sm:$0xff]
    %v2630 = vld [vmem:[%s2391 + $0xb0] sm:$0xff]
    %v2631 = vld [vmem:[%s2391 + $0xb8] sm:$0xff]
    %v2632 = vld [vmem:[%s2391 + $0xc0] sm:$0xff]
    %v2633 = vld [vmem:[%s2391 + $0xc8] sm:$0xff]
    %v2634 = vld [vmem:[%s2391 + $0xd0] sm:$0xff]
    %v2635 = vld [vmem:[%s2391 + $0xd8] sm:$0xff]
    %v2636 = vld [vmem:[%s2391 + $0xe0] sm:$0xff]
    %v2637 = vld [vmem:[%s2391 + $0xe8] sm:$0xff]
    %v2638 = vld [vmem:[%s2391 + $0xf0] sm:$0xff]
    %v2639 = vld [vmem:[%s2391 + $0xf8] sm:$0xff]
    %v2640 = vld [vmem:[%s2391 + $0x100] sm:$0xff]
    %v2641 = vld [vmem:[%s2391 + $0x108] sm:$0xff]
    %v2642 = vld [vmem:[%s2391 + $0x110] sm:$0xff]
    %v2643 = vld [vmem:[%s2391 + $0x118] sm:$0xff]
    %v2644 = vld [vmem:[%s2391 + $0x120] sm:$0xff]
    %v2645 = vld [vmem:[%s2391 + $0x128] sm:$0xff]
    %v2646 = vld [vmem:[%s2391 + $0x130] sm:$0xff]
    %v2647 = vld [vmem:[%s2391 + $0x138] sm:$0xff]
    %v2648 = vld [vmem:[%s2391 + $0x140] sm:$0xff]
    %v2649 = vld [vmem:[%s2391 + $0x148] sm:$0xff]
    %v2650 = vld [vmem:[%s2391 + $0x150] sm:$0xff]
    %v2651 = vld [vmem:[%s2391 + $0x158] sm:$0xff]
    %v2652 = vld [vmem:[%s2391 + $0x160] sm:$0xff]
    %v2653 = vld [vmem:[%s2391 + $0x168] sm:$0xff]
    %v2654 = vld [vmem:[%s2391 + $0x170] sm:$0xff]
    %v2655 = vld [vmem:[%s2391 + $0x178] sm:$0xff]
    %v2656 = vld [vmem:[%s2391 + $0x180] sm:$0xff]
    %v2657 = vld [vmem:[%s2391 + $0x188] sm:$0xff]
    %v2658 = vld [vmem:[%s2391 + $0x190] sm:$0xff]
    %v2659 = vld [vmem:[%s2391 + $0x198] sm:$0xff]
    %v2660 = vld [vmem:[%s2391 + $0x1a0] sm:$0xff]
    %v2661 = vld [vmem:[%s2391 + $0x1a8] sm:$0xff]
    %v2662 = vld [vmem:[%s2391 + $0x1b0] sm:$0xff]
    %v2663 = vld [vmem:[%s2391 + $0x1b8] sm:$0xff]
    %v2664 = vld [vmem:[%s2391 + $0x1c0] sm:$0xff]
    %v2665 = vld [vmem:[%s2391 + $0x1c8] sm:$0xff]
    %v2666 = vld [vmem:[%s2391 + $0x1d0] sm:$0xff]
    %v2667 = vld [vmem:[%s2391 + $0x1d8] sm:$0xff]
    %v2668 = vld [vmem:[%s2391 + $0x1e0] sm:$0xff]
    %v2669 = vld [vmem:[%s2391 + $0x1e8] sm:$0xff]
    %v2670 = vld [vmem:[%s2391 + $0x1f0] sm:$0xff]
    %v2671 = vld [vmem:[%s2391 + $0x1f8] sm:$0xff]
    %2672 = vmatpush.msra.mxu0 %v2668
    %2673 = vmatpush.msra.mxu0 %v2664
    %2674 = vmatpush.msra.mxu0 %v2660
    %2675 = vmatpush.msra.mxu0 %v2656
    %2676 = vmatpush.msra.mxu0 %v2652
    %2677 = vmatpush.msra.mxu0 %v2648
    %2678 = vmatpush.msra.mxu0 %v2644
    %2679 = vmatpush.msra.mxu0 %v2640
    %2680 = vmatpush.msra.mxu0 %v2636
    %2681 = vmatpush.msra.mxu0 %v2632
    %2682 = vmatpush.msra.mxu0 %v2628
    %2683 = vmatpush.msra.mxu0 %v2624
    %2684 = vmatpush.msra.mxu0 %v2620
    %2685 = vmatpush.msra.mxu0 %v2616
    %2686 = vmatpush.msra.mxu0 %v2612
    %2687 = vmatpush.msra.mxu0 %v2608
    %2688 = vmatmul.f32.gmra.mxu0 %v2602
    %v2689 = vpop.f32.mrf.mxu0
    %v2690 = vadd.f32 0.0, %v2689
    %2691 = vdwg.mxu0
    %2692 = vmatpush.msra.mxu0 %v2669
    %2693 = vmatpush.msra.mxu0 %v2665
    %2694 = vmatpush.msra.mxu0 %v2661
    %2695 = vmatpush.msra.mxu0 %v2657
    %2696 = vmatpush.msra.mxu0 %v2653
    %2697 = vmatpush.msra.mxu0 %v2649
    %2698 = vmatpush.msra.mxu0 %v2645
    %2699 = vmatpush.msra.mxu0 %v2641
    %2700 = vmatpush.msra.mxu0 %v2637
    %2701 = vmatpush.msra.mxu0 %v2633
    %2702 = vmatpush.msra.mxu0 %v2629
    %2703 = vmatpush.msra.mxu0 %v2625
    %2704 = vmatpush.msra.mxu0 %v2621
    %2705 = vmatpush.msra.mxu0 %v2617
    %2706 = vmatpush.msra.mxu0 %v2613
    %2707 = vmatpush.msra.mxu0 %v2609
    %2708 = vmatmul.f32.gmra.mxu0 %v2602
    %v2709 = vpop.f32.mrf.mxu0
    %v2710 = vadd.f32 0.0, %v2709
    %2711 = vdwg.mxu0
    %2712 = vmatpush.msra.mxu0 %v2670
    %2713 = vmatpush.msra.mxu0 %v2666
    %2714 = vmatpush.msra.mxu0 %v2662
    %2715 = vmatpush.msra.mxu0 %v2658
    %2716 = vmatpush.msra.mxu0 %v2654
    %2717 = vmatpush.msra.mxu0 %v2650
    %2718 = vmatpush.msra.mxu0 %v2646
    %2719 = vmatpush.msra.mxu0 %v2642
    %2720 = vmatpush.msra.mxu0 %v2638
    %2721 = vmatpush.msra.mxu0 %v2634
    %2722 = vmatpush.msra.mxu0 %v2630
    %2723 = vmatpush.msra.mxu0 %v2626
    %2724 = vmatpush.msra.mxu0 %v2622
    %2725 = vmatpush.msra.mxu0 %v2618
    %2726 = vmatpush.msra.mxu0 %v2614
    %2727 = vmatpush.msra.mxu0 %v2610
    %2728 = vmatmul.f32.gmra.mxu0 %v2602
    %v2729 = vpop.f32.mrf.mxu0
    %v2730 = vadd.f32 0.0, %v2729
    %2731 = vdwg.mxu0
    %2732 = vmatpush.msra.mxu0 %v2671
    %2733 = vmatpush.msra.mxu0 %v2667
    %2734 = vmatpush.msra.mxu0 %v2663
    %2735 = vmatpush.msra.mxu0 %v2659
    %2736 = vmatpush.msra.mxu0 %v2655
    %2737 = vmatpush.msra.mxu0 %v2651
    %2738 = vmatpush.msra.mxu0 %v2647
    %2739 = vmatpush.msra.mxu0 %v2643
    %2740 = vmatpush.msra.mxu0 %v2639
    %2741 = vmatpush.msra.mxu0 %v2635
    %2742 = vmatpush.msra.mxu0 %v2631
    %2743 = vmatpush.msra.mxu0 %v2627
    %2744 = vmatpush.msra.mxu0 %v2623
    %2745 = vmatpush.msra.mxu0 %v2619
    %2746 = vmatpush.msra.mxu0 %v2615
    %2747 = vmatpush.msra.mxu0 %v2611
    %2748 = vmatmul.f32.gmra.mxu0 %v2602
    %v2749 = vpop.f32.mrf.mxu0
    %v2750 = vadd.f32 0.0, %v2749
    %2751 = vdwg.mxu0
    %v2752 = vadd.f32 %v2604, %v2690
    %v2753 = vadd.f32 %v2605, %v2710
    %v2754 = vadd.f32 %v2606, %v2730
    %v2755 = vadd.f32 %v2607, %v2750
    %v2756 = vxor.u32 %v2752, 2147483648
    %v2757 = vmul.f32 %v2756, 1.442695
    %v2758 = vpow.pop %v2757
    %v2759 = vadd.f32 %v2758, 1.0
    %v2760 = vrcp.pop %v2759
    %v2761 = vmul.f32 %v2759, %v2760
    %v2762 = vsub.f32 1.0, %v2761
    %v2763 = vmul.f32 %v2760, %v2762
    %v2764 = vadd.f32 %v2760, %v2763
    %vm2765 = vweird.f32 %v2759
    %vm2766 = vweird.f32 %v2760
    %vm2767 = vmor %vm2765, %vm2766
    %v2768 = vsel %vm2767, %v2760, %v2764
    %v2769 = vand.u32 2147483647, %v2759
    %vm2770 = vcmp.eq.f32.partialorder %v2769, 8.507059e+37
    %v2771 = vand.u32 %v2759, 2147483648
    %v2772 = vor.u32 1.1754944e-38, %v2771
    %v2773 = vsel %vm2770, %v2772, %v2768
    %v2774 = vmul.f32 1.0, %v2773
    %v2775 = vxor.u32 %v2753, 2147483648
    %v2776 = vmul.f32 %v2775, 1.442695
    %v2777 = vpow.pop %v2776
    %v2778 = vadd.f32 %v2777, 1.0
    %v2779 = vrcp.pop %v2778
    %v2780 = vmul.f32 %v2778, %v2779
    %v2781 = vsub.f32 1.0, %v2780
    %v2782 = vmul.f32 %v2779, %v2781
    %v2783 = vadd.f32 %v2779, %v2782
    %vm2784 = vweird.f32 %v2778
    %vm2785 = vweird.f32 %v2779
    %vm2786 = vmor %vm2784, %vm2785
    %v2787 = vsel %vm2786, %v2779, %v2783
    %v2788 = vand.u32 2147483647, %v2778
    %vm2789 = vcmp.eq.f32.partialorder %v2788, 8.507059e+37
    %v2790 = vand.u32 %v2778, 2147483648
    %v2791 = vor.u32 1.1754944e-38, %v2790
    %v2792 = vsel %vm2789, %v2791, %v2787
    %v2793 = vmul.f32 1.0, %v2792
    %v2794 = vtanh.pop %v2754
    %v2795 = vxor.u32 %v2755, 2147483648
    %v2796 = vmul.f32 %v2795, 1.442695
    %v2797 = vpow.pop %v2796
    %v2798 = vadd.f32 %v2797, 1.0
    %v2799 = vrcp.pop %v2798
    %v2800 = vmul.f32 %v2798, %v2799
    %v2801 = vsub.f32 1.0, %v2800
    %v2802 = vmul.f32 %v2799, %v2801
    %v2803 = vadd.f32 %v2799, %v2802
    %vm2804 = vweird.f32 %v2798
    %vm2805 = vweird.f32 %v2799
    %vm2806 = vmor %vm2804, %vm2805
    %v2807 = vsel %vm2806, %v2799, %v2803
    %v2808 = vand.u32 2147483647, %v2798
    %vm2809 = vcmp.eq.f32.partialorder %v2808, 8.507059e+37
    %v2810 = vand.u32 %v2798, 2147483648
    %v2811 = vor.u32 1.1754944e-38, %v2810
    %v2812 = vsel %vm2809, %v2811, %v2807
    %v2813 = vmul.f32 1.0, %v2812
    %v2814 = vmul.f32 %v2793, %v2600
    %v2815 = vmul.f32 %v2774, %v2794
    %v2816 = vadd.f32 %v2814, %v2815
    %v2817 = vtanh.pop %v2816
    %v2818 = vmul.f32 %v2813, %v2817
    %2819 = vst [vmem:[%s797] sm:$0xff] %v2818
    %v2820 = vld [vmem:[%s799] sm:$0xff]
    %v2821 = vld [vmem:[%s799 + $0x8] sm:$0xff]
    %v2822 = vld [vmem:[%s799 + $0x10] sm:$0xff]
    %v2823 = vld [vmem:[%s799 + $0x18] sm:$0xff]
    %v2824 = vld [vmem:[%s2391] sm:$0xff]
    %v2825 = vld [vmem:[%s2391 + $0x8] sm:$0xff]
    %v2826 = vld [vmem:[%s2391 + $0x10] sm:$0xff]
    %v2827 = vld [vmem:[%s2391 + $0x18] sm:$0xff]
    %v2828 = vld [vmem:[%s2391 + $0x20] sm:$0xff]
    %v2829 = vld [vmem:[%s2391 + $0x28] sm:$0xff]
    %v2830 = vld [vmem:[%s2391 + $0x30] sm:$0xff]
    %v2831 = vld [vmem:[%s2391 + $0x38] sm:$0xff]
    %v2832 = vld [vmem:[%s2391 + $0x40] sm:$0xff]
    %v2833 = vld [vmem:[%s2391 + $0x48] sm:$0xff]
    %v2834 = vld [vmem:[%s2391 + $0x50] sm:$0xff]
    %v2835 = vld [vmem:[%s2391 + $0x58] sm:$0xff]
    %v2836 = vld [vmem:[%s2391 + $0x60] sm:$0xff]
    %v2837 = vld [vmem:[%s2391 + $0x68] sm:$0xff]
    %v2838 = vld [vmem:[%s2391 + $0x70] sm:$0xff]
    %v2839 = vld [vmem:[%s2391 + $0x78] sm:$0xff]
    %v2840 = vld [vmem:[%s2391 + $0x80] sm:$0xff]
    %v2841 = vld [vmem:[%s2391 + $0x88] sm:$0xff]
    %v2842 = vld [vmem:[%s2391 + $0x90] sm:$0xff]
    %v2843 = vld [vmem:[%s2391 + $0x98] sm:$0xff]
    %v2844 = vld [vmem:[%s2391 + $0xa0] sm:$0xff]
    %v2845 = vld [vmem:[%s2391 + $0xa8] sm:$0xff]
    %v2846 = vld [vmem:[%s2391 + $0xb0] sm:$0xff]
    %v2847 = vld [vmem:[%s2391 + $0xb8] sm:$0xff]
    %v2848 = vld [vmem:[%s2391 + $0xc0] sm:$0xff]
    %v2849 = vld [vmem:[%s2391 + $0xc8] sm:$0xff]
    %v2850 = vld [vmem:[%s2391 + $0xd0] sm:$0xff]
    %v2851 = vld [vmem:[%s2391 + $0xd8] sm:$0xff]
    %v2852 = vld [vmem:[%s2391 + $0xe0] sm:$0xff]
    %v2853 = vld [vmem:[%s2391 + $0xe8] sm:$0xff]
    %v2854 = vld [vmem:[%s2391 + $0xf0] sm:$0xff]
    %v2855 = vld [vmem:[%s2391 + $0xf8] sm:$0xff]
    %v2856 = vld [vmem:[%s2391 + $0x100] sm:$0xff]
    %v2857 = vld [vmem:[%s2391 + $0x108] sm:$0xff]
    %v2858 = vld [vmem:[%s2391 + $0x110] sm:$0xff]
    %v2859 = vld [vmem:[%s2391 + $0x118] sm:$0xff]
    %v2860 = vld [vmem:[%s2391 + $0x120] sm:$0xff]
    %v2861 = vld [vmem:[%s2391 + $0x128] sm:$0xff]
    %v2862 = vld [vmem:[%s2391 + $0x130] sm:$0xff]
    %v2863 = vld [vmem:[%s2391 + $0x138] sm:$0xff]
    %v2864 = vld [vmem:[%s2391 + $0x140] sm:$0xff]
    %v2865 = vld [vmem:[%s2391 + $0x148] sm:$0xff]
    %v2866 = vld [vmem:[%s2391 + $0x150] sm:$0xff]
    %v2867 = vld [vmem:[%s2391 + $0x158] sm:$0xff]
    %v2868 = vld [vmem:[%s2391 + $0x160] sm:$0xff]
    %v2869 = vld [vmem:[%s2391 + $0x168] sm:$0xff]
    %v2870 = vld [vmem:[%s2391 + $0x170] sm:$0xff]
    %v2871 = vld [vmem:[%s2391 + $0x178] sm:$0xff]
    %v2872 = vld [vmem:[%s2391 + $0x180] sm:$0xff]
    %v2873 = vld [vmem:[%s2391 + $0x188] sm:$0xff]
    %v2874 = vld [vmem:[%s2391 + $0x190] sm:$0xff]
    %v2875 = vld [vmem:[%s2391 + $0x198] sm:$0xff]
    %v2876 = vld [vmem:[%s2391 + $0x1a0] sm:$0xff]
    %v2877 = vld [vmem:[%s2391 + $0x1a8] sm:$0xff]
    %v2878 = vld [vmem:[%s2391 + $0x1b0] sm:$0xff]
    %v2879 = vld [vmem:[%s2391 + $0x1b8] sm:$0xff]
    %v2880 = vld [vmem:[%s2391 + $0x1c0] sm:$0xff]
    %v2881 = vld [vmem:[%s2391 + $0x1c8] sm:$0xff]
    %v2882 = vld [vmem:[%s2391 + $0x1d0] sm:$0xff]
    %v2883 = vld [vmem:[%s2391 + $0x1d8] sm:$0xff]
    %v2884 = vld [vmem:[%s2391 + $0x1e0] sm:$0xff]
    %v2885 = vld [vmem:[%s2391 + $0x1e8] sm:$0xff]
    %v2886 = vld [vmem:[%s2391 + $0x1f0] sm:$0xff]
    %v2887 = vld [vmem:[%s2391 + $0x1f8] sm:$0xff]
    %2888 = vmatpush.msra.mxu0 %v2884
    %2889 = vmatpush.msra.mxu0 %v2880
    %2890 = vmatpush.msra.mxu0 %v2876
    %2891 = vmatpush.msra.mxu0 %v2872
    %2892 = vmatpush.msra.mxu0 %v2868
    %2893 = vmatpush.msra.mxu0 %v2864
    %2894 = vmatpush.msra.mxu0 %v2860
    %2895 = vmatpush.msra.mxu0 %v2856
    %2896 = vmatpush.msra.mxu0 %v2852
    %2897 = vmatpush.msra.mxu0 %v2848
    %2898 = vmatpush.msra.mxu0 %v2844
    %2899 = vmatpush.msra.mxu0 %v2840
    %2900 = vmatpush.msra.mxu0 %v2836
    %2901 = vmatpush.msra.mxu0 %v2832
    %2902 = vmatpush.msra.mxu0 %v2828
    %2903 = vmatpush.msra.mxu0 %v2824
    %2904 = vmatmul.f32.gmra.mxu0 %v2818
    %v2905 = vpop.f32.mrf.mxu0
    %v2906 = vadd.f32 0.0, %v2905
    %2907 = vdwg.mxu0
    %2908 = vmatpush.msra.mxu0 %v2885
    %2909 = vmatpush.msra.mxu0 %v2881
    %2910 = vmatpush.msra.mxu0 %v2877
    %2911 = vmatpush.msra.mxu0 %v2873
    %2912 = vmatpush.msra.mxu0 %v2869
    %2913 = vmatpush.msra.mxu0 %v2865
    %2914 = vmatpush.msra.mxu0 %v2861
    %2915 = vmatpush.msra.mxu0 %v2857
    %2916 = vmatpush.msra.mxu0 %v2853
    %2917 = vmatpush.msra.mxu0 %v2849
    %2918 = vmatpush.msra.mxu0 %v2845
    %2919 = vmatpush.msra.mxu0 %v2841
    %2920 = vmatpush.msra.mxu0 %v2837
    %2921 = vmatpush.msra.mxu0 %v2833
    %2922 = vmatpush.msra.mxu0 %v2829
    %2923 = vmatpush.msra.mxu0 %v2825
    %2924 = vmatmul.f32.gmra.mxu0 %v2818
    %v2925 = vpop.f32.mrf.mxu0
    %v2926 = vadd.f32 0.0, %v2925
    %2927 = vdwg.mxu0
    %2928 = vmatpush.msra.mxu0 %v2886
    %2929 = vmatpush.msra.mxu0 %v2882
    %2930 = vmatpush.msra.mxu0 %v2878
    %2931 = vmatpush.msra.mxu0 %v2874
    %2932 = vmatpush.msra.mxu0 %v2870
    %2933 = vmatpush.msra.mxu0 %v2866
    %2934 = vmatpush.msra.mxu0 %v2862
    %2935 = vmatpush.msra.mxu0 %v2858
    %2936 = vmatpush.msra.mxu0 %v2854
    %2937 = vmatpush.msra.mxu0 %v2850
    %2938 = vmatpush.msra.mxu0 %v2846
    %2939 = vmatpush.msra.mxu0 %v2842
    %2940 = vmatpush.msra.mxu0 %v2838
    %2941 = vmatpush.msra.mxu0 %v2834
    %2942 = vmatpush.msra.mxu0 %v2830
    %2943 = vmatpush.msra.mxu0 %v2826
    %2944 = vmatmul.f32.gmra.mxu0 %v2818
    %v2945 = vpop.f32.mrf.mxu0
    %v2946 = vadd.f32 0.0, %v2945
    %2947 = vdwg.mxu0
    %2948 = vmatpush.msra.mxu0 %v2887
    %2949 = vmatpush.msra.mxu0 %v2883
    %2950 = vmatpush.msra.mxu0 %v2879
    %2951 = vmatpush.msra.mxu0 %v2875
    %2952 = vmatpush.msra.mxu0 %v2871
    %2953 = vmatpush.msra.mxu0 %v2867
    %2954 = vmatpush.msra.mxu0 %v2863
    %2955 = vmatpush.msra.mxu0 %v2859
    %2956 = vmatpush.msra.mxu0 %v2855
    %2957 = vmatpush.msra.mxu0 %v2851
    %2958 = vmatpush.msra.mxu0 %v2847
    %2959 = vmatpush.msra.mxu0 %v2843
    %2960 = vmatpush.msra.mxu0 %v2839
    %2961 = vmatpush.msra.mxu0 %v2835
    %2962 = vmatpush.msra.mxu0 %v2831
    %2963 = vmatpush.msra.mxu0 %v2827
    %2964 = vmatmul.f32.gmra.mxu0 %v2818
    %v2965 = vpop.f32.mrf.mxu0
    %v2966 = vadd.f32 0.0, %v2965
    %2967 = vdwg.mxu0
    %v2968 = vadd.f32 %v2820, %v2906
    %v2969 = vadd.f32 %v2821, %v2926
    %v2970 = vadd.f32 %v2822, %v2946
    %v2971 = vadd.f32 %v2823, %v2966
    %v2972 = vxor.u32 %v2968, 2147483648
    %v2973 = vmul.f32 %v2972, 1.442695
    %v2974 = vpow.pop %v2973
    %v2975 = vadd.f32 %v2974, 1.0
    %v2976 = vrcp.pop %v2975
    %v2977 = vmul.f32 %v2975, %v2976
    %v2978 = vsub.f32 1.0, %v2977
    %v2979 = vmul.f32 %v2976, %v2978
    %v2980 = vadd.f32 %v2976, %v2979
    %vm2981 = vweird.f32 %v2975
    %vm2982 = vweird.f32 %v2976
    %vm2983 = vmor %vm2981, %vm2982
    %v2984 = vsel %vm2983, %v2976, %v2980
    %v2985 = vand.u32 2147483647, %v2975
    %vm2986 = vcmp.eq.f32.partialorder %v2985, 8.507059e+37
    %v2987 = vand.u32 %v2975, 2147483648
    %v2988 = vor.u32 1.1754944e-38, %v2987
    %v2989 = vsel %vm2986, %v2988, %v2984
    %v2990 = vmul.f32 1.0, %v2989
    %v2991 = vxor.u32 %v2969, 2147483648
    %v2992 = vmul.f32 %v2991, 1.442695
    %v2993 = vpow.pop %v2992
    %v2994 = vadd.f32 %v2993, 1.0
    %v2995 = vrcp.pop %v2994
    %v2996 = vmul.f32 %v2994, %v2995
    %v2997 = vsub.f32 1.0, %v2996
    %v2998 = vmul.f32 %v2995, %v2997
    %v2999 = vadd.f32 %v2995, %v2998
    %vm3000 = vweird.f32 %v2994
    %vm3001 = vweird.f32 %v2995
    %vm3002 = vmor %vm3000, %vm3001
    %v3003 = vsel %vm3002, %v2995, %v2999
    %v3004 = vand.u32 2147483647, %v2994
    %vm3005 = vcmp.eq.f32.partialorder %v3004, 8.507059e+37
    %v3006 = vand.u32 %v2994, 2147483648
    %v3007 = vor.u32 1.1754944e-38, %v3006
    %v3008 = vsel %vm3005, %v3007, %v3003
    %v3009 = vmul.f32 1.0, %v3008
    %v3010 = vtanh.pop %v2970
    %v3011 = vxor.u32 %v2971, 2147483648
    %v3012 = vmul.f32 %v3011, 1.442695
    %v3013 = vpow.pop %v3012
    %v3014 = vadd.f32 %v3013, 1.0
    %v3015 = vrcp.pop %v3014
    %v3016 = vmul.f32 %v3014, %v3015
    %v3017 = vsub.f32 1.0, %v3016
    %v3018 = vmul.f32 %v3015, %v3017
    %v3019 = vadd.f32 %v3015, %v3018
    %vm3020 = vweird.f32 %v3014
    %vm3021 = vweird.f32 %v3015
    %vm3022 = vmor %vm3020, %vm3021
    %v3023 = vsel %vm3022, %v3015, %v3019
    %v3024 = vand.u32 2147483647, %v3014
    %vm3025 = vcmp.eq.f32.partialorder %v3024, 8.507059e+37
    %v3026 = vand.u32 %v3014, 2147483648
    %v3027 = vor.u32 1.1754944e-38, %v3026
    %v3028 = vsel %vm3025, %v3027, %v3023
    %v3029 = vmul.f32 1.0, %v3028
    %v3030 = vmul.f32 %v3009, %v2816
    %v3031 = vmul.f32 %v2990, %v3010
    %v3032 = vadd.f32 %v3030, %v3031
    %v3033 = vtanh.pop %v3032
    %v3034 = vmul.f32 %v3029, %v3033
    %3035 = vst [vmem:[%s1015] sm:$0xff] %v3034
    %v3036 = vld [vmem:[%s1017] sm:$0xff]
    %v3037 = vld [vmem:[%s1017 + $0x8] sm:$0xff]
    %v3038 = vld [vmem:[%s1017 + $0x10] sm:$0xff]
    %v3039 = vld [vmem:[%s1017 + $0x18] sm:$0xff]
    %v3040 = vld [vmem:[%s2391] sm:$0xff]
    %v3041 = vld [vmem:[%s2391 + $0x8] sm:$0xff]
    %v3042 = vld [vmem:[%s2391 + $0x10] sm:$0xff]
    %v3043 = vld [vmem:[%s2391 + $0x18] sm:$0xff]
    %v3044 = vld [vmem:[%s2391 + $0x20] sm:$0xff]
    %v3045 = vld [vmem:[%s2391 + $0x28] sm:$0xff]
    %v3046 = vld [vmem:[%s2391 + $0x30] sm:$0xff]
    %v3047 = vld [vmem:[%s2391 + $0x38] sm:$0xff]
    %v3048 = vld [vmem:[%s2391 + $0x40] sm:$0xff]
    %v3049 = vld [vmem:[%s2391 + $0x48] sm:$0xff]
    %v3050 = vld [vmem:[%s2391 + $0x50] sm:$0xff]
    %v3051 = vld [vmem:[%s2391 + $0x58] sm:$0xff]
    %v3052 = vld [vmem:[%s2391 + $0x60] sm:$0xff]
    %v3053 = vld [vmem:[%s2391 + $0x68] sm:$0xff]
    %v3054 = vld [vmem:[%s2391 + $0x70] sm:$0xff]
    %v3055 = vld [vmem:[%s2391 + $0x78] sm:$0xff]
    %v3056 = vld [vmem:[%s2391 + $0x80] sm:$0xff]
    %v3057 = vld [vmem:[%s2391 + $0x88] sm:$0xff]
    %v3058 = vld [vmem:[%s2391 + $0x90] sm:$0xff]
    %v3059 = vld [vmem:[%s2391 + $0x98] sm:$0xff]
    %v3060 = vld [vmem:[%s2391 + $0xa0] sm:$0xff]
    %v3061 = vld [vmem:[%s2391 + $0xa8] sm:$0xff]
    %v3062 = vld [vmem:[%s2391 + $0xb0] sm:$0xff]
    %v3063 = vld [vmem:[%s2391 + $0xb8] sm:$0xff]
    %v3064 = vld [vmem:[%s2391 + $0xc0] sm:$0xff]
    %v3065 = vld [vmem:[%s2391 + $0xc8] sm:$0xff]
    %v3066 = vld [vmem:[%s2391 + $0xd0] sm:$0xff]
    %v3067 = vld [vmem:[%s2391 + $0xd8] sm:$0xff]
    %v3068 = vld [vmem:[%s2391 + $0xe0] sm:$0xff]
    %v3069 = vld [vmem:[%s2391 + $0xe8] sm:$0xff]
    %v3070 = vld [vmem:[%s2391 + $0xf0] sm:$0xff]
    %v3071 = vld [vmem:[%s2391 + $0xf8] sm:$0xff]
    %v3072 = vld [vmem:[%s2391 + $0x100] sm:$0xff]
    %v3073 = vld [vmem:[%s2391 + $0x108] sm:$0xff]
    %v3074 = vld [vmem:[%s2391 + $0x110] sm:$0xff]
    %v3075 = vld [vmem:[%s2391 + $0x118] sm:$0xff]
    %v3076 = vld [vmem:[%s2391 + $0x120] sm:$0xff]
    %v3077 = vld [vmem:[%s2391 + $0x128] sm:$0xff]
    %v3078 = vld [vmem:[%s2391 + $0x130] sm:$0xff]
    %v3079 = vld [vmem:[%s2391 + $0x138] sm:$0xff]
    %v3080 = vld [vmem:[%s2391 + $0x140] sm:$0xff]
    %v3081 = vld [vmem:[%s2391 + $0x148] sm:$0xff]
    %v3082 = vld [vmem:[%s2391 + $0x150] sm:$0xff]
    %v3083 = vld [vmem:[%s2391 + $0x158] sm:$0xff]
    %v3084 = vld [vmem:[%s2391 + $0x160] sm:$0xff]
    %v3085 = vld [vmem:[%s2391 + $0x168] sm:$0xff]
    %v3086 = vld [vmem:[%s2391 + $0x170] sm:$0xff]
    %v3087 = vld [vmem:[%s2391 + $0x178] sm:$0xff]
    %v3088 = vld [vmem:[%s2391 + $0x180] sm:$0xff]
    %v3089 = vld [vmem:[%s2391 + $0x188] sm:$0xff]
    %v3090 = vld [vmem:[%s2391 + $0x190] sm:$0xff]
    %v3091 = vld [vmem:[%s2391 + $0x198] sm:$0xff]
    %v3092 = vld [vmem:[%s2391 + $0x1a0] sm:$0xff]
    %v3093 = vld [vmem:[%s2391 + $0x1a8] sm:$0xff]
    %v3094 = vld [vmem:[%s2391 + $0x1b0] sm:$0xff]
    %v3095 = vld [vmem:[%s2391 + $0x1b8] sm:$0xff]
    %v3096 = vld [vmem:[%s2391 + $0x1c0] sm:$0xff]
    %v3097 = vld [vmem:[%s2391 + $0x1c8] sm:$0xff]
    %v3098 = vld [vmem:[%s2391 + $0x1d0] sm:$0xff]
    %v3099 = vld [vmem:[%s2391 + $0x1d8] sm:$0xff]
    %v3100 = vld [vmem:[%s2391 + $0x1e0] sm:$0xff]
    %v3101 = vld [vmem:[%s2391 + $0x1e8] sm:$0xff]
    %v3102 = vld [vmem:[%s2391 + $0x1f0] sm:$0xff]
    %v3103 = vld [vmem:[%s2391 + $0x1f8] sm:$0xff]
    %3104 = vmatpush.msra.mxu0 %v3100
    %3105 = vmatpush.msra.mxu0 %v3096
    %3106 = vmatpush.msra.mxu0 %v3092
    %3107 = vmatpush.msra.mxu0 %v3088
    %3108 = vmatpush.msra.mxu0 %v3084
    %3109 = vmatpush.msra.mxu0 %v3080
    %3110 = vmatpush.msra.mxu0 %v3076
    %3111 = vmatpush.msra.mxu0 %v3072
    %3112 = vmatpush.msra.mxu0 %v3068
    %3113 = vmatpush.msra.mxu0 %v3064
    %3114 = vmatpush.msra.mxu0 %v3060
    %3115 = vmatpush.msra.mxu0 %v3056
    %3116 = vmatpush.msra.mxu0 %v3052
    %3117 = vmatpush.msra.mxu0 %v3048
    %3118 = vmatpush.msra.mxu0 %v3044
    %3119 = vmatpush.msra.mxu0 %v3040
    %3120 = vmatmul.f32.gmra.mxu0 %v3034
    %v3121 = vpop.f32.mrf.mxu0
    %v3122 = vadd.f32 0.0, %v3121
    %3123 = vdwg.mxu0
    %3124 = vmatpush.msra.mxu0 %v3101
    %3125 = vmatpush.msra.mxu0 %v3097
    %3126 = vmatpush.msra.mxu0 %v3093
    %3127 = vmatpush.msra.mxu0 %v3089
    %3128 = vmatpush.msra.mxu0 %v3085
    %3129 = vmatpush.msra.mxu0 %v3081
    %3130 = vmatpush.msra.mxu0 %v3077
    %3131 = vmatpush.msra.mxu0 %v3073
    %3132 = vmatpush.msra.mxu0 %v3069
    %3133 = vmatpush.msra.mxu0 %v3065
    %3134 = vmatpush.msra.mxu0 %v3061
    %3135 = vmatpush.msra.mxu0 %v3057
    %3136 = vmatpush.msra.mxu0 %v3053
    %3137 = vmatpush.msra.mxu0 %v3049
    %3138 = vmatpush.msra.mxu0 %v3045
    %3139 = vmatpush.msra.mxu0 %v3041
    %3140 = vmatmul.f32.gmra.mxu0 %v3034
    %v3141 = vpop.f32.mrf.mxu0
    %v3142 = vadd.f32 0.0, %v3141
    %3143 = vdwg.mxu0
    %3144 = vmatpush.msra.mxu0 %v3102
    %3145 = vmatpush.msra.mxu0 %v3098
    %3146 = vmatpush.msra.mxu0 %v3094
    %3147 = vmatpush.msra.mxu0 %v3090
    %3148 = vmatpush.msra.mxu0 %v3086
    %3149 = vmatpush.msra.mxu0 %v3082
    %3150 = vmatpush.msra.mxu0 %v3078
    %3151 = vmatpush.msra.mxu0 %v3074
    %3152 = vmatpush.msra.mxu0 %v3070
    %3153 = vmatpush.msra.mxu0 %v3066
    %3154 = vmatpush.msra.mxu0 %v3062
    %3155 = vmatpush.msra.mxu0 %v3058
    %3156 = vmatpush.msra.mxu0 %v3054
    %3157 = vmatpush.msra.mxu0 %v3050
    %3158 = vmatpush.msra.mxu0 %v3046
    %3159 = vmatpush.msra.mxu0 %v3042
    %3160 = vmatmul.f32.gmra.mxu0 %v3034
    %v3161 = vpop.f32.mrf.mxu0
    %v3162 = vadd.f32 0.0, %v3161
    %3163 = vdwg.mxu0
    %3164 = vmatpush.msra.mxu0 %v3103
    %3165 = vmatpush.msra.mxu0 %v3099
    %3166 = vmatpush.msra.mxu0 %v3095
    %3167 = vmatpush.msra.mxu0 %v3091
    %3168 = vmatpush.msra.mxu0 %v3087
    %3169 = vmatpush.msra.mxu0 %v3083
    %3170 = vmatpush.msra.mxu0 %v3079
    %3171 = vmatpush.msra.mxu0 %v3075
    %3172 = vmatpush.msra.mxu0 %v3071
    %3173 = vmatpush.msra.mxu0 %v3067
    %3174 = vmatpush.msra.mxu0 %v3063
    %3175 = vmatpush.msra.mxu0 %v3059
    %3176 = vmatpush.msra.mxu0 %v3055
    %3177 = vmatpush.msra.mxu0 %v3051
    %3178 = vmatpush.msra.mxu0 %v3047
    %3179 = vmatpush.msra.mxu0 %v3043
    %3180 = vmatmul.f32.gmra.mxu0 %v3034
    %v3181 = vpop.f32.mrf.mxu0
    %v3182 = vadd.f32 0.0, %v3181
    %3183 = vdwg.mxu0
    %v3184 = vadd.f32 %v3036, %v3122
    %v3185 = vadd.f32 %v3037, %v3142
    %v3186 = vadd.f32 %v3038, %v3162
    %v3187 = vadd.f32 %v3039, %v3182
    %v3188 = vxor.u32 %v3184, 2147483648
    %v3189 = vmul.f32 %v3188, 1.442695
    %v3190 = vpow.pop %v3189
    %v3191 = vadd.f32 %v3190, 1.0
    %v3192 = vrcp.pop %v3191
    %v3193 = vmul.f32 %v3191, %v3192
    %v3194 = vsub.f32 1.0, %v3193
    %v3195 = vmul.f32 %v3192, %v3194
    %v3196 = vadd.f32 %v3192, %v3195
    %vm3197 = vweird.f32 %v3191
    %vm3198 = vweird.f32 %v3192
    %vm3199 = vmor %vm3197, %vm3198
    %v3200 = vsel %vm3199, %v3192, %v3196
    %v3201 = vand.u32 2147483647, %v3191
    %vm3202 = vcmp.eq.f32.partialorder %v3201, 8.507059e+37
    %v3203 = vand.u32 %v3191, 2147483648
    %v3204 = vor.u32 1.1754944e-38, %v3203
    %v3205 = vsel %vm3202, %v3204, %v3200
    %v3206 = vmul.f32 1.0, %v3205
    %v3207 = vxor.u32 %v3185, 2147483648
    %v3208 = vmul.f32 %v3207, 1.442695
    %v3209 = vpow.pop %v3208
    %v3210 = vadd.f32 %v3209, 1.0
    %v3211 = vrcp.pop %v3210
    %v3212 = vmul.f32 %v3210, %v3211
    %v3213 = vsub.f32 1.0, %v3212
    %v3214 = vmul.f32 %v3211, %v3213
    %v3215 = vadd.f32 %v3211, %v3214
    %vm3216 = vweird.f32 %v3210
    %vm3217 = vweird.f32 %v3211
    %vm3218 = vmor %vm3216, %vm3217
    %v3219 = vsel %vm3218, %v3211, %v3215
    %v3220 = vand.u32 2147483647, %v3210
    %vm3221 = vcmp.eq.f32.partialorder %v3220, 8.507059e+37
    %v3222 = vand.u32 %v3210, 2147483648
    %v3223 = vor.u32 1.1754944e-38, %v3222
    %v3224 = vsel %vm3221, %v3223, %v3219
    %v3225 = vmul.f32 1.0, %v3224
    %v3226 = vtanh.pop %v3186
    %v3227 = vxor.u32 %v3187, 2147483648
    %v3228 = vmul.f32 %v3227, 1.442695
    %v3229 = vpow.pop %v3228
    %v3230 = vadd.f32 %v3229, 1.0
    %v3231 = vrcp.pop %v3230
    %v3232 = vmul.f32 %v3230, %v3231
    %v3233 = vsub.f32 1.0, %v3232
    %v3234 = vmul.f32 %v3231, %v3233
    %v3235 = vadd.f32 %v3231, %v3234
    %vm3236 = vweird.f32 %v3230
    %vm3237 = vweird.f32 %v3231
    %vm3238 = vmor %vm3236, %vm3237
    %v3239 = vsel %vm3238, %v3231, %v3235
    %v3240 = vand.u32 2147483647, %v3230
    %vm3241 = vcmp.eq.f32.partialorder %v3240, 8.507059e+37
    %v3242 = vand.u32 %v3230, 2147483648
    %v3243 = vor.u32 1.1754944e-38, %v3242
    %v3244 = vsel %vm3241, %v3243, %v3239
    %v3245 = vmul.f32 1.0, %v3244
    %v3246 = vmul.f32 %v3225, %v3032
    %v3247 = vmul.f32 %v3206, %v3226
    %v3248 = vadd.f32 %v3246, %v3247
    %v3249 = vtanh.pop %v3248
    %v3250 = vmul.f32 %v3245, %v3249
    %3251 = vst [vmem:[%s1233] sm:$0xff] %v3250
    %v3252 = vld [vmem:[%s1235] sm:$0xff]
    %v3253 = vld [vmem:[%s1235 + $0x8] sm:$0xff]
    %v3254 = vld [vmem:[%s1235 + $0x10] sm:$0xff]
    %v3255 = vld [vmem:[%s1235 + $0x18] sm:$0xff]
    %v3256 = vld [vmem:[%s2391] sm:$0xff]
    %v3257 = vld [vmem:[%s2391 + $0x8] sm:$0xff]
    %v3258 = vld [vmem:[%s2391 + $0x10] sm:$0xff]
    %v3259 = vld [vmem:[%s2391 + $0x18] sm:$0xff]
    %v3260 = vld [vmem:[%s2391 + $0x20] sm:$0xff]
    %v3261 = vld [vmem:[%s2391 + $0x28] sm:$0xff]
    %v3262 = vld [vmem:[%s2391 + $0x30] sm:$0xff]
    %v3263 = vld [vmem:[%s2391 + $0x38] sm:$0xff]
    %v3264 = vld [vmem:[%s2391 + $0x40] sm:$0xff]
    %v3265 = vld [vmem:[%s2391 + $0x48] sm:$0xff]
    %v3266 = vld [vmem:[%s2391 + $0x50] sm:$0xff]
    %v3267 = vld [vmem:[%s2391 + $0x58] sm:$0xff]
    %v3268 = vld [vmem:[%s2391 + $0x60] sm:$0xff]
    %v3269 = vld [vmem:[%s2391 + $0x68] sm:$0xff]
    %v3270 = vld [vmem:[%s2391 + $0x70] sm:$0xff]
    %v3271 = vld [vmem:[%s2391 + $0x78] sm:$0xff]
    %v3272 = vld [vmem:[%s2391 + $0x80] sm:$0xff]
    %v3273 = vld [vmem:[%s2391 + $0x88] sm:$0xff]
    %v3274 = vld [vmem:[%s2391 + $0x90] sm:$0xff]
    %v3275 = vld [vmem:[%s2391 + $0x98] sm:$0xff]
    %v3276 = vld [vmem:[%s2391 + $0xa0] sm:$0xff]
    %v3277 = vld [vmem:[%s2391 + $0xa8] sm:$0xff]
    %v3278 = vld [vmem:[%s2391 + $0xb0] sm:$0xff]
    %v3279 = vld [vmem:[%s2391 + $0xb8] sm:$0xff]
    %v3280 = vld [vmem:[%s2391 + $0xc0] sm:$0xff]
    %v3281 = vld [vmem:[%s2391 + $0xc8] sm:$0xff]
    %v3282 = vld [vmem:[%s2391 + $0xd0] sm:$0xff]
    %v3283 = vld [vmem:[%s2391 + $0xd8] sm:$0xff]
    %v3284 = vld [vmem:[%s2391 + $0xe0] sm:$0xff]
    %v3285 = vld [vmem:[%s2391 + $0xe8] sm:$0xff]
    %v3286 = vld [vmem:[%s2391 + $0xf0] sm:$0xff]
    %v3287 = vld [vmem:[%s2391 + $0xf8] sm:$0xff]
    %v3288 = vld [vmem:[%s2391 + $0x100] sm:$0xff]
    %v3289 = vld [vmem:[%s2391 + $0x108] sm:$0xff]
    %v3290 = vld [vmem:[%s2391 + $0x110] sm:$0xff]
    %v3291 = vld [vmem:[%s2391 + $0x118] sm:$0xff]
    %v3292 = vld [vmem:[%s2391 + $0x120] sm:$0xff]
    %v3293 = vld [vmem:[%s2391 + $0x128] sm:$0xff]
    %v3294 = vld [vmem:[%s2391 + $0x130] sm:$0xff]
    %v3295 = vld [vmem:[%s2391 + $0x138] sm:$0xff]
    %v3296 = vld [vmem:[%s2391 + $0x140] sm:$0xff]
    %v3297 = vld [vmem:[%s2391 + $0x148] sm:$0xff]
    %v3298 = vld [vmem:[%s2391 + $0x150] sm:$0xff]
    %v3299 = vld [vmem:[%s2391 + $0x158] sm:$0xff]
    %v3300 = vld [vmem:[%s2391 + $0x160] sm:$0xff]
    %v3301 = vld [vmem:[%s2391 + $0x168] sm:$0xff]
    %v3302 = vld [vmem:[%s2391 + $0x170] sm:$0xff]
    %v3303 = vld [vmem:[%s2391 + $0x178] sm:$0xff]
    %v3304 = vld [vmem:[%s2391 + $0x180] sm:$0xff]
    %v3305 = vld [vmem:[%s2391 + $0x188] sm:$0xff]
    %v3306 = vld [vmem:[%s2391 + $0x190] sm:$0xff]
    %v3307 = vld [vmem:[%s2391 + $0x198] sm:$0xff]
    %v3308 = vld [vmem:[%s2391 + $0x1a0] sm:$0xff]
    %v3309 = vld [vmem:[%s2391 + $0x1a8] sm:$0xff]
    %v3310 = vld [vmem:[%s2391 + $0x1b0] sm:$0xff]
    %v3311 = vld [vmem:[%s2391 + $0x1b8] sm:$0xff]
    %v3312 = vld [vmem:[%s2391 + $0x1c0] sm:$0xff]
    %v3313 = vld [vmem:[%s2391 + $0x1c8] sm:$0xff]
    %v3314 = vld [vmem:[%s2391 + $0x1d0] sm:$0xff]
    %v3315 = vld [vmem:[%s2391 + $0x1d8] sm:$0xff]
    %v3316 = vld [vmem:[%s2391 + $0x1e0] sm:$0xff]
    %v3317 = vld [vmem:[%s2391 + $0x1e8] sm:$0xff]
    %v3318 = vld [vmem:[%s2391 + $0x1f0] sm:$0xff]
    %v3319 = vld [vmem:[%s2391 + $0x1f8] sm:$0xff]
    %3320 = vmatpush.msra.mxu0 %v3316
    %3321 = vmatpush.msra.mxu0 %v3312
    %3322 = vmatpush.msra.mxu0 %v3308
    %3323 = vmatpush.msra.mxu0 %v3304
    %3324 = vmatpush.msra.mxu0 %v3300
    %3325 = vmatpush.msra.mxu0 %v3296
    %3326 = vmatpush.msra.mxu0 %v3292
    %3327 = vmatpush.msra.mxu0 %v3288
    %3328 = vmatpush.msra.mxu0 %v3284
    %3329 = vmatpush.msra.mxu0 %v3280
    %3330 = vmatpush.msra.mxu0 %v3276
    %3331 = vmatpush.msra.mxu0 %v3272
    %3332 = vmatpush.msra.mxu0 %v3268
    %3333 = vmatpush.msra.mxu0 %v3264
    %3334 = vmatpush.msra.mxu0 %v3260
    %3335 = vmatpush.msra.mxu0 %v3256
    %3336 = vmatmul.f32.gmra.mxu0 %v3250
    %v3337 = vpop.f32.mrf.mxu0
    %v3338 = vadd.f32 0.0, %v3337
    %3339 = vdwg.mxu0
    %3340 = vmatpush.msra.mxu0 %v3317
    %3341 = vmatpush.msra.mxu0 %v3313
    %3342 = vmatpush.msra.mxu0 %v3309
    %3343 = vmatpush.msra.mxu0 %v3305
    %3344 = vmatpush.msra.mxu0 %v3301
    %3345 = vmatpush.msra.mxu0 %v3297
    %3346 = vmatpush.msra.mxu0 %v3293
    %3347 = vmatpush.msra.mxu0 %v3289
    %3348 = vmatpush.msra.mxu0 %v3285
    %3349 = vmatpush.msra.mxu0 %v3281
    %3350 = vmatpush.msra.mxu0 %v3277
    %3351 = vmatpush.msra.mxu0 %v3273
    %3352 = vmatpush.msra.mxu0 %v3269
    %3353 = vmatpush.msra.mxu0 %v3265
    %3354 = vmatpush.msra.mxu0 %v3261
    %3355 = vmatpush.msra.mxu0 %v3257
    %3356 = vmatmul.f32.gmra.mxu0 %v3250
    %v3357 = vpop.f32.mrf.mxu0
    %v3358 = vadd.f32 0.0, %v3357
    %3359 = vdwg.mxu0
    %3360 = vmatpush.msra.mxu0 %v3318
    %3361 = vmatpush.msra.mxu0 %v3314
    %3362 = vmatpush.msra.mxu0 %v3310
    %3363 = vmatpush.msra.mxu0 %v3306
    %3364 = vmatpush.msra.mxu0 %v3302
    %3365 = vmatpush.msra.mxu0 %v3298
    %3366 = vmatpush.msra.mxu0 %v3294
    %3367 = vmatpush.msra.mxu0 %v3290
    %3368 = vmatpush.msra.mxu0 %v3286
    %3369 = vmatpush.msra.mxu0 %v3282
    %3370 = vmatpush.msra.mxu0 %v3278
    %3371 = vmatpush.msra.mxu0 %v3274
    %3372 = vmatpush.msra.mxu0 %v3270
    %3373 = vmatpush.msra.mxu0 %v3266
    %3374 = vmatpush.msra.mxu0 %v3262
    %3375 = vmatpush.msra.mxu0 %v3258
    %3376 = vmatmul.f32.gmra.mxu0 %v3250
    %v3377 = vpop.f32.mrf.mxu0
    %v3378 = vadd.f32 0.0, %v3377
    %3379 = vdwg.mxu0
    %3380 = vmatpush.msra.mxu0 %v3319
    %3381 = vmatpush.msra.mxu0 %v3315
    %3382 = vmatpush.msra.mxu0 %v3311
    %3383 = vmatpush.msra.mxu0 %v3307
    %3384 = vmatpush.msra.mxu0 %v3303
    %3385 = vmatpush.msra.mxu0 %v3299
    %3386 = vmatpush.msra.mxu0 %v3295
    %3387 = vmatpush.msra.mxu0 %v3291
    %3388 = vmatpush.msra.mxu0 %v3287
    %3389 = vmatpush.msra.mxu0 %v3283
    %3390 = vmatpush.msra.mxu0 %v3279
    %3391 = vmatpush.msra.mxu0 %v3275
    %3392 = vmatpush.msra.mxu0 %v3271
    %3393 = vmatpush.msra.mxu0 %v3267
    %3394 = vmatpush.msra.mxu0 %v3263
    %3395 = vmatpush.msra.mxu0 %v3259
    %3396 = vmatmul.f32.gmra.mxu0 %v3250
    %v3397 = vpop.f32.mrf.mxu0
    %v3398 = vadd.f32 0.0, %v3397
    %3399 = vdwg.mxu0
    %v3400 = vadd.f32 %v3252, %v3338
    %v3401 = vadd.f32 %v3253, %v3358
    %v3402 = vadd.f32 %v3254, %v3378
    %v3403 = vadd.f32 %v3255, %v3398
    %v3404 = vxor.u32 %v3400, 2147483648
    %v3405 = vmul.f32 %v3404, 1.442695
    %v3406 = vpow.pop %v3405
    %v3407 = vadd.f32 %v3406, 1.0
    %v3408 = vrcp.pop %v3407
    %v3409 = vmul.f32 %v3407, %v3408
    %v3410 = vsub.f32 1.0, %v3409
    %v3411 = vmul.f32 %v3408, %v3410
    %v3412 = vadd.f32 %v3408, %v3411
    %vm3413 = vweird.f32 %v3407
    %vm3414 = vweird.f32 %v3408
    %vm3415 = vmor %vm3413, %vm3414
    %v3416 = vsel %vm3415, %v3408, %v3412
    %v3417 = vand.u32 2147483647, %v3407
    %vm3418 = vcmp.eq.f32.partialorder %v3417, 8.507059e+37
    %v3419 = vand.u32 %v3407, 2147483648
    %v3420 = vor.u32 1.1754944e-38, %v3419
    %v3421 = vsel %vm3418, %v3420, %v3416
    %v3422 = vmul.f32 1.0, %v3421
    %v3423 = vxor.u32 %v3401, 2147483648
    %v3424 = vmul.f32 %v3423, 1.442695
    %v3425 = vpow.pop %v3424
    %v3426 = vadd.f32 %v3425, 1.0
    %v3427 = vrcp.pop %v3426
    %v3428 = vmul.f32 %v3426, %v3427
    %v3429 = vsub.f32 1.0, %v3428
    %v3430 = vmul.f32 %v3427, %v3429
    %v3431 = vadd.f32 %v3427, %v3430
    %vm3432 = vweird.f32 %v3426
    %vm3433 = vweird.f32 %v3427
    %vm3434 = vmor %vm3432, %vm3433
    %v3435 = vsel %vm3434, %v3427, %v3431
    %v3436 = vand.u32 2147483647, %v3426
    %vm3437 = vcmp.eq.f32.partialorder %v3436, 8.507059e+37
    %v3438 = vand.u32 %v3426, 2147483648
    %v3439 = vor.u32 1.1754944e-38, %v3438
    %v3440 = vsel %vm3437, %v3439, %v3435
    %v3441 = vmul.f32 1.0, %v3440
    %v3442 = vtanh.pop %v3402
    %v3443 = vxor.u32 %v3403, 2147483648
    %v3444 = vmul.f32 %v3443, 1.442695
    %v3445 = vpow.pop %v3444
    %v3446 = vadd.f32 %v3445, 1.0
    %v3447 = vrcp.pop %v3446
    %v3448 = vmul.f32 %v3446, %v3447
    %v3449 = vsub.f32 1.0, %v3448
    %v3450 = vmul.f32 %v3447, %v3449
    %v3451 = vadd.f32 %v3447, %v3450
    %vm3452 = vweird.f32 %v3446
    %vm3453 = vweird.f32 %v3447
    %vm3454 = vmor %vm3452, %vm3453
    %v3455 = vsel %vm3454, %v3447, %v3451
    %v3456 = vand.u32 2147483647, %v3446
    %vm3457 = vcmp.eq.f32.partialorder %v3456, 8.507059e+37
    %v3458 = vand.u32 %v3446, 2147483648
    %v3459 = vor.u32 1.1754944e-38, %v3458
    %v3460 = vsel %vm3457, %v3459, %v3455
    %v3461 = vmul.f32 1.0, %v3460
    %v3462 = vmul.f32 %v3441, %v3248
    %v3463 = vmul.f32 %v3422, %v3442
    %v3464 = vadd.f32 %v3462, %v3463
    %v3465 = vtanh.pop %v3464
    %v3466 = vmul.f32 %v3461, %v3465
    %3467 = vst [vmem:[%s1451] sm:$0xff] %v3466
    %v3468 = vld [vmem:[%s1453] sm:$0xff]
    %v3469 = vld [vmem:[%s1453 + $0x8] sm:$0xff]
    %v3470 = vld [vmem:[%s1453 + $0x10] sm:$0xff]
    %v3471 = vld [vmem:[%s1453 + $0x18] sm:$0xff]
    %v3472 = vld [vmem:[%s2391] sm:$0xff]
    %v3473 = vld [vmem:[%s2391 + $0x8] sm:$0xff]
    %v3474 = vld [vmem:[%s2391 + $0x10] sm:$0xff]
    %v3475 = vld [vmem:[%s2391 + $0x18] sm:$0xff]
    %v3476 = vld [vmem:[%s2391 + $0x20] sm:$0xff]
    %v3477 = vld [vmem:[%s2391 + $0x28] sm:$0xff]
    %v3478 = vld [vmem:[%s2391 + $0x30] sm:$0xff]
    %v3479 = vld [vmem:[%s2391 + $0x38] sm:$0xff]
    %v3480 = vld [vmem:[%s2391 + $0x40] sm:$0xff]
    %v3481 = vld [vmem:[%s2391 + $0x48] sm:$0xff]
    %v3482 = vld [vmem:[%s2391 + $0x50] sm:$0xff]
    %v3483 = vld [vmem:[%s2391 + $0x58] sm:$0xff]
    %v3484 = vld [vmem:[%s2391 + $0x60] sm:$0xff]
    %v3485 = vld [vmem:[%s2391 + $0x68] sm:$0xff]
    %v3486 = vld [vmem:[%s2391 + $0x70] sm:$0xff]
    %v3487 = vld [vmem:[%s2391 + $0x78] sm:$0xff]
    %v3488 = vld [vmem:[%s2391 + $0x80] sm:$0xff]
    %v3489 = vld [vmem:[%s2391 + $0x88] sm:$0xff]
    %v3490 = vld [vmem:[%s2391 + $0x90] sm:$0xff]
    %v3491 = vld [vmem:[%s2391 + $0x98] sm:$0xff]
    %v3492 = vld [vmem:[%s2391 + $0xa0] sm:$0xff]
    %v3493 = vld [vmem:[%s2391 + $0xa8] sm:$0xff]
    %v3494 = vld [vmem:[%s2391 + $0xb0] sm:$0xff]
    %v3495 = vld [vmem:[%s2391 + $0xb8] sm:$0xff]
    %v3496 = vld [vmem:[%s2391 + $0xc0] sm:$0xff]
    %v3497 = vld [vmem:[%s2391 + $0xc8] sm:$0xff]
    %v3498 = vld [vmem:[%s2391 + $0xd0] sm:$0xff]
    %v3499 = vld [vmem:[%s2391 + $0xd8] sm:$0xff]
    %v3500 = vld [vmem:[%s2391 + $0xe0] sm:$0xff]
    %v3501 = vld [vmem:[%s2391 + $0xe8] sm:$0xff]
    %v3502 = vld [vmem:[%s2391 + $0xf0] sm:$0xff]
    %v3503 = vld [vmem:[%s2391 + $0xf8] sm:$0xff]
    %v3504 = vld [vmem:[%s2391 + $0x100] sm:$0xff]
    %v3505 = vld [vmem:[%s2391 + $0x108] sm:$0xff]
    %v3506 = vld [vmem:[%s2391 + $0x110] sm:$0xff]
    %v3507 = vld [vmem:[%s2391 + $0x118] sm:$0xff]
    %v3508 = vld [vmem:[%s2391 + $0x120] sm:$0xff]
    %v3509 = vld [vmem:[%s2391 + $0x128] sm:$0xff]
    %v3510 = vld [vmem:[%s2391 + $0x130] sm:$0xff]
    %v3511 = vld [vmem:[%s2391 + $0x138] sm:$0xff]
    %v3512 = vld [vmem:[%s2391 + $0x140] sm:$0xff]
    %v3513 = vld [vmem:[%s2391 + $0x148] sm:$0xff]
    %v3514 = vld [vmem:[%s2391 + $0x150] sm:$0xff]
    %v3515 = vld [vmem:[%s2391 + $0x158] sm:$0xff]
    %v3516 = vld [vmem:[%s2391 + $0x160] sm:$0xff]
    %v3517 = vld [vmem:[%s2391 + $0x168] sm:$0xff]
    %v3518 = vld [vmem:[%s2391 + $0x170] sm:$0xff]
    %v3519 = vld [vmem:[%s2391 + $0x178] sm:$0xff]
    %v3520 = vld [vmem:[%s2391 + $0x180] sm:$0xff]
    %v3521 = vld [vmem:[%s2391 + $0x188] sm:$0xff]
    %v3522 = vld [vmem:[%s2391 + $0x190] sm:$0xff]
    %v3523 = vld [vmem:[%s2391 + $0x198] sm:$0xff]
    %v3524 = vld [vmem:[%s2391 + $0x1a0] sm:$0xff]
    %v3525 = vld [vmem:[%s2391 + $0x1a8] sm:$0xff]
    %v3526 = vld [vmem:[%s2391 + $0x1b0] sm:$0xff]
    %v3527 = vld [vmem:[%s2391 + $0x1b8] sm:$0xff]
    %v3528 = vld [vmem:[%s2391 + $0x1c0] sm:$0xff]
    %v3529 = vld [vmem:[%s2391 + $0x1c8] sm:$0xff]
    %v3530 = vld [vmem:[%s2391 + $0x1d0] sm:$0xff]
    %v3531 = vld [vmem:[%s2391 + $0x1d8] sm:$0xff]
    %v3532 = vld [vmem:[%s2391 + $0x1e0] sm:$0xff]
    %v3533 = vld [vmem:[%s2391 + $0x1e8] sm:$0xff]
    %v3534 = vld [vmem:[%s2391 + $0x1f0] sm:$0xff]
    %v3535 = vld [vmem:[%s2391 + $0x1f8] sm:$0xff]
    %3536 = vmatpush.msra.mxu0 %v3532
    %3537 = vmatpush.msra.mxu0 %v3528
    %3538 = vmatpush.msra.mxu0 %v3524
    %3539 = vmatpush.msra.mxu0 %v3520
    %3540 = vmatpush.msra.mxu0 %v3516
    %3541 = vmatpush.msra.mxu0 %v3512
    %3542 = vmatpush.msra.mxu0 %v3508
    %3543 = vmatpush.msra.mxu0 %v3504
    %3544 = vmatpush.msra.mxu0 %v3500
    %3545 = vmatpush.msra.mxu0 %v3496
    %3546 = vmatpush.msra.mxu0 %v3492
    %3547 = vmatpush.msra.mxu0 %v3488
    %3548 = vmatpush.msra.mxu0 %v3484
    %3549 = vmatpush.msra.mxu0 %v3480
    %3550 = vmatpush.msra.mxu0 %v3476
    %3551 = vmatpush.msra.mxu0 %v3472
    %3552 = vmatmul.f32.gmra.mxu0 %v3466
    %v3553 = vpop.f32.mrf.mxu0
    %v3554 = vadd.f32 0.0, %v3553
    %3555 = vdwg.mxu0
    %3556 = vmatpush.msra.mxu0 %v3533
    %3557 = vmatpush.msra.mxu0 %v3529
    %3558 = vmatpush.msra.mxu0 %v3525
    %3559 = vmatpush.msra.mxu0 %v3521
    %3560 = vmatpush.msra.mxu0 %v3517
    %3561 = vmatpush.msra.mxu0 %v3513
    %3562 = vmatpush.msra.mxu0 %v3509
    %3563 = vmatpush.msra.mxu0 %v3505
    %3564 = vmatpush.msra.mxu0 %v3501
    %3565 = vmatpush.msra.mxu0 %v3497
    %3566 = vmatpush.msra.mxu0 %v3493
    %3567 = vmatpush.msra.mxu0 %v3489
    %3568 = vmatpush.msra.mxu0 %v3485
    %3569 = vmatpush.msra.mxu0 %v3481
    %3570 = vmatpush.msra.mxu0 %v3477
    %3571 = vmatpush.msra.mxu0 %v3473
    %3572 = vmatmul.f32.gmra.mxu0 %v3466
    %v3573 = vpop.f32.mrf.mxu0
    %v3574 = vadd.f32 0.0, %v3573
    %3575 = vdwg.mxu0
    %3576 = vmatpush.msra.mxu0 %v3534
    %3577 = vmatpush.msra.mxu0 %v3530
    %3578 = vmatpush.msra.mxu0 %v3526
    %3579 = vmatpush.msra.mxu0 %v3522
    %3580 = vmatpush.msra.mxu0 %v3518
    %3581 = vmatpush.msra.mxu0 %v3514
    %3582 = vmatpush.msra.mxu0 %v3510
    %3583 = vmatpush.msra.mxu0 %v3506
    %3584 = vmatpush.msra.mxu0 %v3502
    %3585 = vmatpush.msra.mxu0 %v3498
    %3586 = vmatpush.msra.mxu0 %v3494
    %3587 = vmatpush.msra.mxu0 %v3490
    %3588 = vmatpush.msra.mxu0 %v3486
    %3589 = vmatpush.msra.mxu0 %v3482
    %3590 = vmatpush.msra.mxu0 %v3478
    %3591 = vmatpush.msra.mxu0 %v3474
    %3592 = vmatmul.f32.gmra.mxu0 %v3466
    %v3593 = vpop.f32.mrf.mxu0
    %v3594 = vadd.f32 0.0, %v3593
    %3595 = vdwg.mxu0
    %3596 = vmatpush.msra.mxu0 %v3535
    %3597 = vmatpush.msra.mxu0 %v3531
    %3598 = vmatpush.msra.mxu0 %v3527
    %3599 = vmatpush.msra.mxu0 %v3523
    %3600 = vmatpush.msra.mxu0 %v3519
    %3601 = vmatpush.msra.mxu0 %v3515
    %3602 = vmatpush.msra.mxu0 %v3511
    %3603 = vmatpush.msra.mxu0 %v3507
    %3604 = vmatpush.msra.mxu0 %v3503
    %3605 = vmatpush.msra.mxu0 %v3499
    %3606 = vmatpush.msra.mxu0 %v3495
    %3607 = vmatpush.msra.mxu0 %v3491
    %3608 = vmatpush.msra.mxu0 %v3487
    %3609 = vmatpush.msra.mxu0 %v3483
    %3610 = vmatpush.msra.mxu0 %v3479
    %3611 = vmatpush.msra.mxu0 %v3475
    %3612 = vmatmul.f32.gmra.mxu0 %v3466
    %v3613 = vpop.f32.mrf.mxu0
    %v3614 = vadd.f32 0.0, %v3613
    %3615 = vdwg.mxu0
    %v3616 = vadd.f32 %v3468, %v3554
    %v3617 = vadd.f32 %v3469, %v3574
    %v3618 = vadd.f32 %v3470, %v3594
    %v3619 = vadd.f32 %v3471, %v3614
    %v3620 = vxor.u32 %v3616, 2147483648
    %v3621 = vmul.f32 %v3620, 1.442695
    %v3622 = vpow.pop %v3621
    %v3623 = vadd.f32 %v3622, 1.0
    %v3624 = vrcp.pop %v3623
    %v3625 = vmul.f32 %v3623, %v3624
    %v3626 = vsub.f32 1.0, %v3625
    %v3627 = vmul.f32 %v3624, %v3626
    %v3628 = vadd.f32 %v3624, %v3627
    %vm3629 = vweird.f32 %v3623
    %vm3630 = vweird.f32 %v3624
    %vm3631 = vmor %vm3629, %vm3630
    %v3632 = vsel %vm3631, %v3624, %v3628
    %v3633 = vand.u32 2147483647, %v3623
    %vm3634 = vcmp.eq.f32.partialorder %v3633, 8.507059e+37
    %v3635 = vand.u32 %v3623, 2147483648
    %v3636 = vor.u32 1.1754944e-38, %v3635
    %v3637 = vsel %vm3634, %v3636, %v3632
    %v3638 = vmul.f32 1.0, %v3637
    %v3639 = vxor.u32 %v3617, 2147483648
    %v3640 = vmul.f32 %v3639, 1.442695
    %v3641 = vpow.pop %v3640
    %v3642 = vadd.f32 %v3641, 1.0
    %v3643 = vrcp.pop %v3642
    %v3644 = vmul.f32 %v3642, %v3643
    %v3645 = vsub.f32 1.0, %v3644
    %v3646 = vmul.f32 %v3643, %v3645
    %v3647 = vadd.f32 %v3643, %v3646
    %vm3648 = vweird.f32 %v3642
    %vm3649 = vweird.f32 %v3643
    %vm3650 = vmor %vm3648, %vm3649
    %v3651 = vsel %vm3650, %v3643, %v3647
    %v3652 = vand.u32 2147483647, %v3642
    %vm3653 = vcmp.eq.f32.partialorder %v3652, 8.507059e+37
    %v3654 = vand.u32 %v3642, 2147483648
    %v3655 = vor.u32 1.1754944e-38, %v3654
    %v3656 = vsel %vm3653, %v3655, %v3651
    %v3657 = vmul.f32 1.0, %v3656
    %v3658 = vtanh.pop %v3618
    %v3659 = vxor.u32 %v3619, 2147483648
    %v3660 = vmul.f32 %v3659, 1.442695
    %v3661 = vpow.pop %v3660
    %v3662 = vadd.f32 %v3661, 1.0
    %v3663 = vrcp.pop %v3662
    %v3664 = vmul.f32 %v3662, %v3663
    %v3665 = vsub.f32 1.0, %v3664
    %v3666 = vmul.f32 %v3663, %v3665
    %v3667 = vadd.f32 %v3663, %v3666
    %vm3668 = vweird.f32 %v3662
    %vm3669 = vweird.f32 %v3663
    %vm3670 = vmor %vm3668, %vm3669
    %v3671 = vsel %vm3670, %v3663, %v3667
    %v3672 = vand.u32 2147483647, %v3662
    %vm3673 = vcmp.eq.f32.partialorder %v3672, 8.507059e+37
    %v3674 = vand.u32 %v3662, 2147483648
    %v3675 = vor.u32 1.1754944e-38, %v3674
    %v3676 = vsel %vm3673, %v3675, %v3671
    %v3677 = vmul.f32 1.0, %v3676
    %v3678 = vmul.f32 %v3657, %v3464
    %v3679 = vmul.f32 %v3638, %v3658
    %v3680 = vadd.f32 %v3678, %v3679
    %v3681 = vtanh.pop %v3680
    %v3682 = vmul.f32 %v3677, %v3681
    %3683 = vst [vmem:[%s1669] sm:$0xff] %v3682
    %v3684 = vld [vmem:[%s1671] sm:$0xff]
    %v3685 = vld [vmem:[%s1671 + $0x8] sm:$0xff]
    %v3686 = vld [vmem:[%s1671 + $0x10] sm:$0xff]
    %v3687 = vld [vmem:[%s1671 + $0x18] sm:$0xff]
    %v3688 = vld [vmem:[%s2391] sm:$0xff]
    %v3689 = vld [vmem:[%s2391 + $0x8] sm:$0xff]
    %v3690 = vld [vmem:[%s2391 + $0x10] sm:$0xff]
    %v3691 = vld [vmem:[%s2391 + $0x18] sm:$0xff]
    %v3692 = vld [vmem:[%s2391 + $0x20] sm:$0xff]
    %v3693 = vld [vmem:[%s2391 + $0x28] sm:$0xff]
    %v3694 = vld [vmem:[%s2391 + $0x30] sm:$0xff]
    %v3695 = vld [vmem:[%s2391 + $0x38] sm:$0xff]
    %v3696 = vld [vmem:[%s2391 + $0x40] sm:$0xff]
    %v3697 = vld [vmem:[%s2391 + $0x48] sm:$0xff]
    %v3698 = vld [vmem:[%s2391 + $0x50] sm:$0xff]
    %v3699 = vld [vmem:[%s2391 + $0x58] sm:$0xff]
    %v3700 = vld [vmem:[%s2391 + $0x60] sm:$0xff]
    %v3701 = vld [vmem:[%s2391 + $0x68] sm:$0xff]
    %v3702 = vld [vmem:[%s2391 + $0x70] sm:$0xff]
    %v3703 = vld [vmem:[%s2391 + $0x78] sm:$0xff]
    %v3704 = vld [vmem:[%s2391 + $0x80] sm:$0xff]
    %v3705 = vld [vmem:[%s2391 + $0x88] sm:$0xff]
    %v3706 = vld [vmem:[%s2391 + $0x90] sm:$0xff]
    %v3707 = vld [vmem:[%s2391 + $0x98] sm:$0xff]
    %v3708 = vld [vmem:[%s2391 + $0xa0] sm:$0xff]
    %v3709 = vld [vmem:[%s2391 + $0xa8] sm:$0xff]
    %v3710 = vld [vmem:[%s2391 + $0xb0] sm:$0xff]
    %v3711 = vld [vmem:[%s2391 + $0xb8] sm:$0xff]
    %v3712 = vld [vmem:[%s2391 + $0xc0] sm:$0xff]
    %v3713 = vld [vmem:[%s2391 + $0xc8] sm:$0xff]
    %v3714 = vld [vmem:[%s2391 + $0xd0] sm:$0xff]
    %v3715 = vld [vmem:[%s2391 + $0xd8] sm:$0xff]
    %v3716 = vld [vmem:[%s2391 + $0xe0] sm:$0xff]
    %v3717 = vld [vmem:[%s2391 + $0xe8] sm:$0xff]
    %v3718 = vld [vmem:[%s2391 + $0xf0] sm:$0xff]
    %v3719 = vld [vmem:[%s2391 + $0xf8] sm:$0xff]
    %v3720 = vld [vmem:[%s2391 + $0x100] sm:$0xff]
    %v3721 = vld [vmem:[%s2391 + $0x108] sm:$0xff]
    %v3722 = vld [vmem:[%s2391 + $0x110] sm:$0xff]
    %v3723 = vld [vmem:[%s2391 + $0x118] sm:$0xff]
    %v3724 = vld [vmem:[%s2391 + $0x120] sm:$0xff]
    %v3725 = vld [vmem:[%s2391 + $0x128] sm:$0xff]
    %v3726 = vld [vmem:[%s2391 + $0x130] sm:$0xff]
    %v3727 = vld [vmem:[%s2391 + $0x138] sm:$0xff]
    %v3728 = vld [vmem:[%s2391 + $0x140] sm:$0xff]
    %v3729 = vld [vmem:[%s2391 + $0x148] sm:$0xff]
    %v3730 = vld [vmem:[%s2391 + $0x150] sm:$0xff]
    %v3731 = vld [vmem:[%s2391 + $0x158] sm:$0xff]
    %v3732 = vld [vmem:[%s2391 + $0x160] sm:$0xff]
    %v3733 = vld [vmem:[%s2391 + $0x168] sm:$0xff]
    %v3734 = vld [vmem:[%s2391 + $0x170] sm:$0xff]
    %v3735 = vld [vmem:[%s2391 + $0x178] sm:$0xff]
    %v3736 = vld [vmem:[%s2391 + $0x180] sm:$0xff]
    %v3737 = vld [vmem:[%s2391 + $0x188] sm:$0xff]
    %v3738 = vld [vmem:[%s2391 + $0x190] sm:$0xff]
    %v3739 = vld [vmem:[%s2391 + $0x198] sm:$0xff]
    %v3740 = vld [vmem:[%s2391 + $0x1a0] sm:$0xff]
    %v3741 = vld [vmem:[%s2391 + $0x1a8] sm:$0xff]
    %v3742 = vld [vmem:[%s2391 + $0x1b0] sm:$0xff]
    %v3743 = vld [vmem:[%s2391 + $0x1b8] sm:$0xff]
    %v3744 = vld [vmem:[%s2391 + $0x1c0] sm:$0xff]
    %v3745 = vld [vmem:[%s2391 + $0x1c8] sm:$0xff]
    %v3746 = vld [vmem:[%s2391 + $0x1d0] sm:$0xff]
    %v3747 = vld [vmem:[%s2391 + $0x1d8] sm:$0xff]
    %v3748 = vld [vmem:[%s2391 + $0x1e0] sm:$0xff]
    %v3749 = vld [vmem:[%s2391 + $0x1e8] sm:$0xff]
    %v3750 = vld [vmem:[%s2391 + $0x1f0] sm:$0xff]
    %v3751 = vld [vmem:[%s2391 + $0x1f8] sm:$0xff]
    %3752 = vmatpush.msra.mxu0 %v3748
    %3753 = vmatpush.msra.mxu0 %v3744
    %3754 = vmatpush.msra.mxu0 %v3740
    %3755 = vmatpush.msra.mxu0 %v3736
    %3756 = vmatpush.msra.mxu0 %v3732
    %3757 = vmatpush.msra.mxu0 %v3728
    %3758 = vmatpush.msra.mxu0 %v3724
    %3759 = vmatpush.msra.mxu0 %v3720
    %3760 = vmatpush.msra.mxu0 %v3716
    %3761 = vmatpush.msra.mxu0 %v3712
    %3762 = vmatpush.msra.mxu0 %v3708
    %3763 = vmatpush.msra.mxu0 %v3704
    %3764 = vmatpush.msra.mxu0 %v3700
    %3765 = vmatpush.msra.mxu0 %v3696
    %3766 = vmatpush.msra.mxu0 %v3692
    %3767 = vmatpush.msra.mxu0 %v3688
    %3768 = vmatmul.f32.gmra.mxu0 %v3682
    %v3769 = vpop.f32.mrf.mxu0
    %v3770 = vadd.f32 0.0, %v3769
    %3771 = vdwg.mxu0
    %3772 = vmatpush.msra.mxu0 %v3749
    %3773 = vmatpush.msra.mxu0 %v3745
    %3774 = vmatpush.msra.mxu0 %v3741
    %3775 = vmatpush.msra.mxu0 %v3737
    %3776 = vmatpush.msra.mxu0 %v3733
    %3777 = vmatpush.msra.mxu0 %v3729
    %3778 = vmatpush.msra.mxu0 %v3725
    %3779 = vmatpush.msra.mxu0 %v3721
    %3780 = vmatpush.msra.mxu0 %v3717
    %3781 = vmatpush.msra.mxu0 %v3713
    %3782 = vmatpush.msra.mxu0 %v3709
    %3783 = vmatpush.msra.mxu0 %v3705
    %3784 = vmatpush.msra.mxu0 %v3701
    %3785 = vmatpush.msra.mxu0 %v3697
    %3786 = vmatpush.msra.mxu0 %v3693
    %3787 = vmatpush.msra.mxu0 %v3689
    %3788 = vmatmul.f32.gmra.mxu0 %v3682
    %v3789 = vpop.f32.mrf.mxu0
    %v3790 = vadd.f32 0.0, %v3789
    %3791 = vdwg.mxu0
    %3792 = vmatpush.msra.mxu0 %v3750
    %3793 = vmatpush.msra.mxu0 %v3746
    %3794 = vmatpush.msra.mxu0 %v3742
    %3795 = vmatpush.msra.mxu0 %v3738
    %3796 = vmatpush.msra.mxu0 %v3734
    %3797 = vmatpush.msra.mxu0 %v3730
    %3798 = vmatpush.msra.mxu0 %v3726
    %3799 = vmatpush.msra.mxu0 %v3722
    %3800 = vmatpush.msra.mxu0 %v3718
    %3801 = vmatpush.msra.mxu0 %v3714
    %3802 = vmatpush.msra.mxu0 %v3710
    %3803 = vmatpush.msra.mxu0 %v3706
    %3804 = vmatpush.msra.mxu0 %v3702
    %3805 = vmatpush.msra.mxu0 %v3698
    %3806 = vmatpush.msra.mxu0 %v3694
    %3807 = vmatpush.msra.mxu0 %v3690
    %3808 = vmatmul.f32.gmra.mxu0 %v3682
    %v3809 = vpop.f32.mrf.mxu0
    %v3810 = vadd.f32 0.0, %v3809
    %3811 = vdwg.mxu0
    %3812 = vmatpush.msra.mxu0 %v3751
    %3813 = vmatpush.msra.mxu0 %v3747
    %3814 = vmatpush.msra.mxu0 %v3743
    %3815 = vmatpush.msra.mxu0 %v3739
    %3816 = vmatpush.msra.mxu0 %v3735
    %3817 = vmatpush.msra.mxu0 %v3731
    %3818 = vmatpush.msra.mxu0 %v3727
    %3819 = vmatpush.msra.mxu0 %v3723
    %3820 = vmatpush.msra.mxu0 %v3719
    %3821 = vmatpush.msra.mxu0 %v3715
    %3822 = vmatpush.msra.mxu0 %v3711
    %3823 = vmatpush.msra.mxu0 %v3707
    %3824 = vmatpush.msra.mxu0 %v3703
    %3825 = vmatpush.msra.mxu0 %v3699
    %3826 = vmatpush.msra.mxu0 %v3695
    %3827 = vmatpush.msra.mxu0 %v3691
    %3828 = vmatmul.f32.gmra.mxu0 %v3682
    %v3829 = vpop.f32.mrf.mxu0
    %v3830 = vadd.f32 0.0, %v3829
    %3831 = vdwg.mxu0
    %v3832 = vadd.f32 %v3684, %v3770
    %v3833 = vadd.f32 %v3685, %v3790
    %v3834 = vadd.f32 %v3686, %v3810
    %v3835 = vadd.f32 %v3687, %v3830
    %v3836 = vxor.u32 %v3832, 2147483648
    %v3837 = vmul.f32 %v3836, 1.442695
    %v3838 = vpow.pop %v3837
    %v3839 = vadd.f32 %v3838, 1.0
    %v3840 = vrcp.pop %v3839
    %v3841 = vmul.f32 %v3839, %v3840
    %v3842 = vsub.f32 1.0, %v3841
    %v3843 = vmul.f32 %v3840, %v3842
    %v3844 = vadd.f32 %v3840, %v3843
    %vm3845 = vweird.f32 %v3839
    %vm3846 = vweird.f32 %v3840
    %vm3847 = vmor %vm3845, %vm3846
    %v3848 = vsel %vm3847, %v3840, %v3844
    %v3849 = vand.u32 2147483647, %v3839
    %vm3850 = vcmp.eq.f32.partialorder %v3849, 8.507059e+37
    %v3851 = vand.u32 %v3839, 2147483648
    %v3852 = vor.u32 1.1754944e-38, %v3851
    %v3853 = vsel %vm3850, %v3852, %v3848
    %v3854 = vmul.f32 1.0, %v3853
    %v3855 = vxor.u32 %v3833, 2147483648
    %v3856 = vmul.f32 %v3855, 1.442695
    %v3857 = vpow.pop %v3856
    %v3858 = vadd.f32 %v3857, 1.0
    %v3859 = vrcp.pop %v3858
    %v3860 = vmul.f32 %v3858, %v3859
    %v3861 = vsub.f32 1.0, %v3860
    %v3862 = vmul.f32 %v3859, %v3861
    %v3863 = vadd.f32 %v3859, %v3862
    %vm3864 = vweird.f32 %v3858
    %vm3865 = vweird.f32 %v3859
    %vm3866 = vmor %vm3864, %vm3865
    %v3867 = vsel %vm3866, %v3859, %v3863
    %v3868 = vand.u32 2147483647, %v3858
    %vm3869 = vcmp.eq.f32.partialorder %v3868, 8.507059e+37
    %v3870 = vand.u32 %v3858, 2147483648
    %v3871 = vor.u32 1.1754944e-38, %v3870
    %v3872 = vsel %vm3869, %v3871, %v3867
    %v3873 = vmul.f32 1.0, %v3872
    %v3874 = vtanh.pop %v3834
    %v3875 = vxor.u32 %v3835, 2147483648
    %v3876 = vmul.f32 %v3875, 1.442695
    %v3877 = vpow.pop %v3876
    %v3878 = vadd.f32 %v3877, 1.0
    %v3879 = vrcp.pop %v3878
    %v3880 = vmul.f32 %v3878, %v3879
    %v3881 = vsub.f32 1.0, %v3880
    %v3882 = vmul.f32 %v3879, %v3881
    %v3883 = vadd.f32 %v3879, %v3882
    %vm3884 = vweird.f32 %v3878
    %vm3885 = vweird.f32 %v3879
    %vm3886 = vmor %vm3884, %vm3885
    %v3887 = vsel %vm3886, %v3879, %v3883
    %v3888 = vand.u32 2147483647, %v3878
    %vm3889 = vcmp.eq.f32.partialorder %v3888, 8.507059e+37
    %v3890 = vand.u32 %v3878, 2147483648
    %v3891 = vor.u32 1.1754944e-38, %v3890
    %v3892 = vsel %vm3889, %v3891, %v3887
    %v3893 = vmul.f32 1.0, %v3892
    %v3894 = vmul.f32 %v3873, %v3680
    %v3895 = vmul.f32 %v3854, %v3874
    %v3896 = vadd.f32 %v3894, %v3895
    %v3897 = vtanh.pop %v3896
    %v3898 = vmul.f32 %v3893, %v3897
    %3899 = vst [vmem:[%s1887] sm:$0xff] %v3898
    %v3900 = vld [vmem:[%s1889] sm:$0xff]
    %v3901 = vld [vmem:[%s1889 + $0x8] sm:$0xff]
    %v3902 = vld [vmem:[%s1889 + $0x10] sm:$0xff]
    %v3903 = vld [vmem:[%s1889 + $0x18] sm:$0xff]
    %v3904 = vld [vmem:[%s2391] sm:$0xff]
    %v3905 = vld [vmem:[%s2391 + $0x8] sm:$0xff]
    %v3906 = vld [vmem:[%s2391 + $0x10] sm:$0xff]
    %v3907 = vld [vmem:[%s2391 + $0x18] sm:$0xff]
    %v3908 = vld [vmem:[%s2391 + $0x20] sm:$0xff]
    %v3909 = vld [vmem:[%s2391 + $0x28] sm:$0xff]
    %v3910 = vld [vmem:[%s2391 + $0x30] sm:$0xff]
    %v3911 = vld [vmem:[%s2391 + $0x38] sm:$0xff]
    %v3912 = vld [vmem:[%s2391 + $0x40] sm:$0xff]
    %v3913 = vld [vmem:[%s2391 + $0x48] sm:$0xff]
    %v3914 = vld [vmem:[%s2391 + $0x50] sm:$0xff]
    %v3915 = vld [vmem:[%s2391 + $0x58] sm:$0xff]
    %v3916 = vld [vmem:[%s2391 + $0x60] sm:$0xff]
    %v3917 = vld [vmem:[%s2391 + $0x68] sm:$0xff]
    %v3918 = vld [vmem:[%s2391 + $0x70] sm:$0xff]
    %v3919 = vld [vmem:[%s2391 + $0x78] sm:$0xff]
    %v3920 = vld [vmem:[%s2391 + $0x80] sm:$0xff]
    %v3921 = vld [vmem:[%s2391 + $0x88] sm:$0xff]
    %v3922 = vld [vmem:[%s2391 + $0x90] sm:$0xff]
    %v3923 = vld [vmem:[%s2391 + $0x98] sm:$0xff]
    %v3924 = vld [vmem:[%s2391 + $0xa0] sm:$0xff]
    %v3925 = vld [vmem:[%s2391 + $0xa8] sm:$0xff]
    %v3926 = vld [vmem:[%s2391 + $0xb0] sm:$0xff]
    %v3927 = vld [vmem:[%s2391 + $0xb8] sm:$0xff]
    %v3928 = vld [vmem:[%s2391 + $0xc0] sm:$0xff]
    %v3929 = vld [vmem:[%s2391 + $0xc8] sm:$0xff]
    %v3930 = vld [vmem:[%s2391 + $0xd0] sm:$0xff]
    %v3931 = vld [vmem:[%s2391 + $0xd8] sm:$0xff]
    %v3932 = vld [vmem:[%s2391 + $0xe0] sm:$0xff]
    %v3933 = vld [vmem:[%s2391 + $0xe8] sm:$0xff]
    %v3934 = vld [vmem:[%s2391 + $0xf0] sm:$0xff]
    %v3935 = vld [vmem:[%s2391 + $0xf8] sm:$0xff]
    %v3936 = vld [vmem:[%s2391 + $0x100] sm:$0xff]
    %v3937 = vld [vmem:[%s2391 + $0x108] sm:$0xff]
    %v3938 = vld [vmem:[%s2391 + $0x110] sm:$0xff]
    %v3939 = vld [vmem:[%s2391 + $0x118] sm:$0xff]
    %v3940 = vld [vmem:[%s2391 + $0x120] sm:$0xff]
    %v3941 = vld [vmem:[%s2391 + $0x128] sm:$0xff]
    %v3942 = vld [vmem:[%s2391 + $0x130] sm:$0xff]
    %v3943 = vld [vmem:[%s2391 + $0x138] sm:$0xff]
    %v3944 = vld [vmem:[%s2391 + $0x140] sm:$0xff]
    %v3945 = vld [vmem:[%s2391 + $0x148] sm:$0xff]
    %v3946 = vld [vmem:[%s2391 + $0x150] sm:$0xff]
    %v3947 = vld [vmem:[%s2391 + $0x158] sm:$0xff]
    %v3948 = vld [vmem:[%s2391 + $0x160] sm:$0xff]
    %v3949 = vld [vmem:[%s2391 + $0x168] sm:$0xff]
    %v3950 = vld [vmem:[%s2391 + $0x170] sm:$0xff]
    %v3951 = vld [vmem:[%s2391 + $0x178] sm:$0xff]
    %v3952 = vld [vmem:[%s2391 + $0x180] sm:$0xff]
    %v3953 = vld [vmem:[%s2391 + $0x188] sm:$0xff]
    %v3954 = vld [vmem:[%s2391 + $0x190] sm:$0xff]
    %v3955 = vld [vmem:[%s2391 + $0x198] sm:$0xff]
    %v3956 = vld [vmem:[%s2391 + $0x1a0] sm:$0xff]
    %v3957 = vld [vmem:[%s2391 + $0x1a8] sm:$0xff]
    %v3958 = vld [vmem:[%s2391 + $0x1b0] sm:$0xff]
    %v3959 = vld [vmem:[%s2391 + $0x1b8] sm:$0xff]
    %v3960 = vld [vmem:[%s2391 + $0x1c0] sm:$0xff]
    %v3961 = vld [vmem:[%s2391 + $0x1c8] sm:$0xff]
    %v3962 = vld [vmem:[%s2391 + $0x1d0] sm:$0xff]
    %v3963 = vld [vmem:[%s2391 + $0x1d8] sm:$0xff]
    %v3964 = vld [vmem:[%s2391 + $0x1e0] sm:$0xff]
    %v3965 = vld [vmem:[%s2391 + $0x1e8] sm:$0xff]
    %v3966 = vld [vmem:[%s2391 + $0x1f0] sm:$0xff]
    %v3967 = vld [vmem:[%s2391 + $0x1f8] sm:$0xff]
    %3968 = vmatpush.msra.mxu0 %v3964
    %3969 = vmatpush.msra.mxu0 %v3960
    %3970 = vmatpush.msra.mxu0 %v3956
    %3971 = vmatpush.msra.mxu0 %v3952
    %3972 = vmatpush.msra.mxu0 %v3948
    %3973 = vmatpush.msra.mxu0 %v3944
    %3974 = vmatpush.msra.mxu0 %v3940
    %3975 = vmatpush.msra.mxu0 %v3936
    %3976 = vmatpush.msra.mxu0 %v3932
    %3977 = vmatpush.msra.mxu0 %v3928
    %3978 = vmatpush.msra.mxu0 %v3924
    %3979 = vmatpush.msra.mxu0 %v3920
    %3980 = vmatpush.msra.mxu0 %v3916
    %3981 = vmatpush.msra.mxu0 %v3912
    %3982 = vmatpush.msra.mxu0 %v3908
    %3983 = vmatpush.msra.mxu0 %v3904
    %3984 = vmatmul.f32.gmra.mxu0 %v3898
    %v3985 = vpop.f32.mrf.mxu0
    %v3986 = vadd.f32 0.0, %v3985
    %3987 = vdwg.mxu0
    %3988 = vmatpush.msra.mxu0 %v3965
    %3989 = vmatpush.msra.mxu0 %v3961
    %3990 = vmatpush.msra.mxu0 %v3957
    %3991 = vmatpush.msra.mxu0 %v3953
    %3992 = vmatpush.msra.mxu0 %v3949
    %3993 = vmatpush.msra.mxu0 %v3945
    %3994 = vmatpush.msra.mxu0 %v3941
    %3995 = vmatpush.msra.mxu0 %v3937
    %3996 = vmatpush.msra.mxu0 %v3933
    %3997 = vmatpush.msra.mxu0 %v3929
    %3998 = vmatpush.msra.mxu0 %v3925
    %3999 = vmatpush.msra.mxu0 %v3921
    %4000 = vmatpush.msra.mxu0 %v3917
    %4001 = vmatpush.msra.mxu0 %v3913
    %4002 = vmatpush.msra.mxu0 %v3909
    %4003 = vmatpush.msra.mxu0 %v3905
    %4004 = vmatmul.f32.gmra.mxu0 %v3898
    %v4005 = vpop.f32.mrf.mxu0
    %v4006 = vadd.f32 0.0, %v4005
    %4007 = vdwg.mxu0
    %4008 = vmatpush.msra.mxu0 %v3966
    %4009 = vmatpush.msra.mxu0 %v3962
    %4010 = vmatpush.msra.mxu0 %v3958
    %4011 = vmatpush.msra.mxu0 %v3954
    %4012 = vmatpush.msra.mxu0 %v3950
    %4013 = vmatpush.msra.mxu0 %v3946
    %4014 = vmatpush.msra.mxu0 %v3942
    %4015 = vmatpush.msra.mxu0 %v3938
    %4016 = vmatpush.msra.mxu0 %v3934
    %4017 = vmatpush.msra.mxu0 %v3930
    %4018 = vmatpush.msra.mxu0 %v3926
    %4019 = vmatpush.msra.mxu0 %v3922
    %4020 = vmatpush.msra.mxu0 %v3918
    %4021 = vmatpush.msra.mxu0 %v3914
    %4022 = vmatpush.msra.mxu0 %v3910
    %4023 = vmatpush.msra.mxu0 %v3906
    %4024 = vmatmul.f32.gmra.mxu0 %v3898
    %v4025 = vpop.f32.mrf.mxu0
    %v4026 = vadd.f32 0.0, %v4025
    %4027 = vdwg.mxu0
    %4028 = vmatpush.msra.mxu0 %v3967
    %4029 = vmatpush.msra.mxu0 %v3963
    %4030 = vmatpush.msra.mxu0 %v3959
    %4031 = vmatpush.msra.mxu0 %v3955
    %4032 = vmatpush.msra.mxu0 %v3951
    %4033 = vmatpush.msra.mxu0 %v3947
    %4034 = vmatpush.msra.mxu0 %v3943
    %4035 = vmatpush.msra.mxu0 %v3939
    %4036 = vmatpush.msra.mxu0 %v3935
    %4037 = vmatpush.msra.mxu0 %v3931
    %4038 = vmatpush.msra.mxu0 %v3927
    %4039 = vmatpush.msra.mxu0 %v3923
    %4040 = vmatpush.msra.mxu0 %v3919
    %4041 = vmatpush.msra.mxu0 %v3915
    %4042 = vmatpush.msra.mxu0 %v3911
    %4043 = vmatpush.msra.mxu0 %v3907
    %4044 = vmatmul.f32.gmra.mxu0 %v3898
    %v4045 = vpop.f32.mrf.mxu0
    %v4046 = vadd.f32 0.0, %v4045
    %4047 = vdwg.mxu0
    %v4048 = vadd.f32 %v3900, %v3986
    %v4049 = vadd.f32 %v3901, %v4006
    %v4050 = vadd.f32 %v3902, %v4026
    %v4051 = vadd.f32 %v3903, %v4046
    %v4052 = vxor.u32 %v4048, 2147483648
    %v4053 = vmul.f32 %v4052, 1.442695
    %v4054 = vpow.pop %v4053
    %v4055 = vadd.f32 %v4054, 1.0
    %v4056 = vrcp.pop %v4055
    %v4057 = vmul.f32 %v4055, %v4056
    %v4058 = vsub.f32 1.0, %v4057
    %v4059 = vmul.f32 %v4056, %v4058
    %v4060 = vadd.f32 %v4056, %v4059
    %vm4061 = vweird.f32 %v4055
    %vm4062 = vweird.f32 %v4056
    %vm4063 = vmor %vm4061, %vm4062
    %v4064 = vsel %vm4063, %v4056, %v4060
    %v4065 = vand.u32 2147483647, %v4055
    %vm4066 = vcmp.eq.f32.partialorder %v4065, 8.507059e+37
    %v4067 = vand.u32 %v4055, 2147483648
    %v4068 = vor.u32 1.1754944e-38, %v4067
    %v4069 = vsel %vm4066, %v4068, %v4064
    %v4070 = vmul.f32 1.0, %v4069
    %v4071 = vxor.u32 %v4049, 2147483648
    %v4072 = vmul.f32 %v4071, 1.442695
    %v4073 = vpow.pop %v4072
    %v4074 = vadd.f32 %v4073, 1.0
    %v4075 = vrcp.pop %v4074
    %v4076 = vmul.f32 %v4074, %v4075
    %v4077 = vsub.f32 1.0, %v4076
    %v4078 = vmul.f32 %v4075, %v4077
    %v4079 = vadd.f32 %v4075, %v4078
    %vm4080 = vweird.f32 %v4074
    %vm4081 = vweird.f32 %v4075
    %vm4082 = vmor %vm4080, %vm4081
    %v4083 = vsel %vm4082, %v4075, %v4079
    %v4084 = vand.u32 2147483647, %v4074
    %vm4085 = vcmp.eq.f32.partialorder %v4084, 8.507059e+37
    %v4086 = vand.u32 %v4074, 2147483648
    %v4087 = vor.u32 1.1754944e-38, %v4086
    %v4088 = vsel %vm4085, %v4087, %v4083
    %v4089 = vmul.f32 1.0, %v4088
    %v4090 = vtanh.pop %v4050
    %v4091 = vxor.u32 %v4051, 2147483648
    %v4092 = vmul.f32 %v4091, 1.442695
    %v4093 = vpow.pop %v4092
    %v4094 = vadd.f32 %v4093, 1.0
    %v4095 = vrcp.pop %v4094
    %v4096 = vmul.f32 %v4094, %v4095
    %v4097 = vsub.f32 1.0, %v4096
    %v4098 = vmul.f32 %v4095, %v4097
    %v4099 = vadd.f32 %v4095, %v4098
    %vm4100 = vweird.f32 %v4094
    %vm4101 = vweird.f32 %v4095
    %vm4102 = vmor %vm4100, %vm4101
    %v4103 = vsel %vm4102, %v4095, %v4099
    %v4104 = vand.u32 2147483647, %v4094
    %vm4105 = vcmp.eq.f32.partialorder %v4104, 8.507059e+37
    %v4106 = vand.u32 %v4094, 2147483648
    %v4107 = vor.u32 1.1754944e-38, %v4106
    %v4108 = vsel %vm4105, %v4107, %v4103
    %v4109 = vmul.f32 1.0, %v4108
    %v4110 = vmul.f32 %v4089, %v3896
    %v4111 = vmul.f32 %v4070, %v4090
    %v4112 = vadd.f32 %v4110, %v4111
    %v4113 = vtanh.pop %v4112
    %v4114 = vmul.f32 %v4109, %v4113
    %4115 = vst [vmem:[%s2105] sm:$0xff] %v4114
    %s4116 = scalar_lea.vmem [#allocation16], 8
    %4117 = vst [vmem:[%s4116] sm:$0xff] %v4114
    %s4118 = scalar_lea.vmem [#allocation18], 8
    %4119 = vst [vmem:[%s4118] sm:$0xff] %v4112
    %v4120 = vld [vmem:[#allocation3] sm:$0xff]
    %v4121 = vld [vmem:[#allocation3 + $0x8] sm:$0xff]
    %v4122 = vld [vmem:[#allocation3 + $0x10] sm:$0xff]
    %v4123 = vld [vmem:[#allocation3 + $0x18] sm:$0xff]
    %v4124 = vld [vmem:[#allocation3 + $0x20] sm:$0xff]
    %v4125 = vld [vmem:[#allocation3 + $0x28] sm:$0xff]
    %v4126 = vld [vmem:[#allocation3 + $0x30] sm:$0xff]
    %v4127 = vld [vmem:[#allocation3 + $0x38] sm:$0xff]
    %4128 = vst [vmem:[#allocation15] sm:$0xff] %v4120
    %4129 = vst [vmem:[#allocation15 + $0x8] sm:$0xff] %v4121
    %4130 = vst [vmem:[#allocation15 + $0x10] sm:$0xff] %v4122
    %4131 = vst [vmem:[#allocation15 + $0x18] sm:$0xff] %v4123
    %4132 = vst [vmem:[#allocation15 + $0x20] sm:$0xff] %v4124
    %4133 = vst [vmem:[#allocation15 + $0x28] sm:$0xff] %v4125
    %4134 = vst [vmem:[#allocation15 + $0x30] sm:$0xff] %v4126
    %4135 = vst [vmem:[#allocation15 + $0x38] sm:$0xff] %v4127
    // Predicated region
    $region50: #{tpu_custom_call.1} parent=1 // pred_check
      _
    $region51: #{tpu_custom_call.1} parent=1 // pred_check_branch
      %4137 = sbr.rel (0) target = $region53
    $region52: #{tpu_custom_call.1} parent=1 // pred_region
      %4139 = vsyncadd [#allocation6], 0
      %s4140 = sshll.u32 [#allocation15], 4
      %s4141 = int_to_ptr.vmem [resolvable:$true] %s4140
      %s4142 = sshll.u32 %s6, 4
      %s4143 = int_to_ptr.hbm [resolvable:$true] %s4142
      %4148 = dma.vmem_to_hbm [thread:$0]  %s4141, 1024, %s4143, [#allocation6], 128, 128, 8
    $region53: #{tpu_custom_call.1} parent=1 // pred_fallthru
      _
    // Predicated region
    $region54: #{tpu_custom_call.1} parent=1 // pred_check
      _
    $region55: #{tpu_custom_call.1} parent=1 // pred_check_branch
      %4150 = sbr.rel (0) target = $region57
    $region56: #{tpu_custom_call.1} parent=1 // pred_region
      %4152 = vsyncadd [#allocation17], 0
      %s4153 = sshll.u32 [#allocation16], 4
      %s4154 = int_to_ptr.vmem [resolvable:$true] %s4153
      %s4155 = sshll.u32 %s7, 4
      %s4156 = int_to_ptr.hbm [resolvable:$true] %s4155
      %4161 = dma.vmem_to_hbm [thread:$0]  %s4154, 256, %s4156, [#allocation17], 128, 128, 8
    $region57: #{tpu_custom_call.1} parent=1 // pred_fallthru
      _
    // Predicated region
    $region58: #{tpu_custom_call.1} parent=1 // pred_check
      _
    $region59: #{tpu_custom_call.1} parent=1 // pred_check_branch
      %4163 = sbr.rel (0) target = $region61
    $region60: #{tpu_custom_call.1} parent=1 // pred_region
      %4165 = vsyncadd [#allocation17], 0
      %s4166 = sshll.u32 [#allocation18], 4
      %s4167 = int_to_ptr.vmem [resolvable:$true] %s4166
      %s4168 = sshll.u32 %s8, 4
      %s4169 = int_to_ptr.hbm [resolvable:$true] %s4168
      %4174 = dma.vmem_to_hbm [thread:$0]  %s4167, 256, %s4169, [#allocation17], 128, 128, 8
    $region61: #{tpu_custom_call.1} parent=1 // pred_fallthru
      _
    // Predicated region
    $region62: #{tpu_custom_call.1} parent=1 // pred_check
      _
    $region63: #{tpu_custom_call.1} parent=1 // pred_check_branch
      %4176 = sbr.rel (0) target = $region65
    $region64: #{tpu_custom_call.1} parent=1 // pred_region
      %4178 = dma.done [#allocation6], 1024
    $region65: #{tpu_custom_call.1} parent=1 // pred_fallthru
      _
    // Predicated region
    $region66: #{tpu_custom_call.1} parent=1 // pred_check
      _
    $region67: #{tpu_custom_call.1} parent=1 // pred_check_branch
      %4180 = sbr.rel (0) target = $region69
    $region68: #{tpu_custom_call.1} parent=1 // pred_region
      %4182 = dma.done [#allocation17], 256
    $region69: #{tpu_custom_call.1} parent=1 // pred_fallthru
      _
    // Predicated region
    $region70: #{tpu_custom_call.1} parent=1 // pred_check
      _
    $region71: #{tpu_custom_call.1} parent=1 // pred_check_branch
      %4184 = sbr.rel (0) target = $region73
    $region72: #{tpu_custom_call.1} parent=1 // pred_region
      %4186 = dma.done [#allocation17], 256
    $region73: #{tpu_custom_call.1} parent=1 // pred_fallthru
      _
    %4187 = vsyncpa [#allocation5], 1
    %4188 = vsyncpa [#allocation8], 1
    %4189 = vsyncpa [#allocation11], 1
    %4190 = vsyncpa [#allocation14], 1
    %4191 = vsyncpa [#allocation6], 1
    %4192 = vsyncpa [#allocation17], 1

</llo_original>
